<compile_context>
chip_gen: v5e
topology: v5e:2x2
jax: 0.10.0
libtpu: 0.0.40
codegen_flags: <defaults>
</compile_context>

<pallas_src>
import functools
import math

import jax
import jax.numpy as jnp
from jax import lax
from jax.experimental import pallas as pl
from jax.experimental.pallas import tpu as pltpu


# ----------------------------------------------------------------------------
# Compiler params: generation-aware VMEM budget, parallel grid axes.
# ----------------------------------------------------------------------------
def _vmem_limit_bytes():
    try:
        info = pltpu.get_tpu_info()
        cap = getattr(info, "vmem_capacity_bytes", None) or (128 * 1024 * 1024)
        return int(min(100 * 1024 * 1024, max(32 * 1024 * 1024, 0.75 * cap)))
    except Exception:
        return 64 * 1024 * 1024


_VMEM_LIMIT = _vmem_limit_bytes()


def _cparams(n_grid_axes):
    return pltpu.CompilerParams(
        dimension_semantics=("parallel",) * n_grid_axes,
        vmem_limit_bytes=_VMEM_LIMIT,
    )


# ----------------------------------------------------------------------------
# Fused convolution kernel: in-VMEM im2col via contiguous row-window slices of
# a pre-flattened bf16 block, bf16 MXU matmuls into an f32 accumulator,
# bias (+ residual) added in-kernel.
# ----------------------------------------------------------------------------
def _conv_kernel(*refs, kt, kh, kw, H, W, Wp, has_res):
    x_refs = refs[:kt]                     # each (1, 1, R_in, Cin) bf16
    w_ref = refs[kt]                       # (ntaps, Cin, Cout) bf16
    b_ref = refs[kt + 1]                   # (1, Cout) f32
    r_ref = refs[kt + 2] if has_res else None
    o_ref = refs[-1]                       # (1, 1, H, W, Cout)

    Cout = w_ref.shape[2]
    HWp = H * Wp
    acc = jnp.zeros((HWp, Cout), jnp.float32)
    # TODO(synk): fold the kh*kw spatial taps into the MXU contraction dim
    # (K = kh*kw*Cin) once Cin is lane-aligned; per-tap K=Cin underfills the
    # 256-deep v6e/v7x MXU.
    for it in range(kt):
        xr = x_refs[it][0, 0]              # (R_in, Cin) bf16 — stays bf16
        for ih in range(kh):
            for iw in range(kw):
                off = ih * Wp + iw         # contiguous row-window slice
                tap = (it * kh + ih) * kw + iw
                acc = acc + jnp.dot(xr[off:off + HWp, :], w_ref[tap],
                                    preferred_element_type=jnp.float32)
    if kw > 1:
        # Columns [W, Wp) are pad-column garbage; drop them once, in VMEM.
        y = acc.reshape(H, Wp, Cout)[:, :W, :]
    else:
        y = acc.reshape(H, W, Cout)
    y = y + b_ref[...]
    if has_res:
        y = y + r_ref[0, 0].astype(jnp.float32)
    o_ref[0, 0] = y.astype(o_ref.dtype)


def fused_conv(x, p, *, taps, residual=None, t_upsample=False,
               out_dtype=jnp.bfloat16):
    """Channels-last fused convolution (stride 1, 'same' padding).

    x         : (B, T, H, W, Cin) bf16 activation.
    p         : {"w": (kt*kh*kw, Cin, Cout) bf16, "b": (1, Cout) f32}
    taps      : (kt, kh, kw), each 1 or 3.
    residual  : optional (B, T_out, H, W, Cout) tensor added inside the kernel.
    t_upsample: fuse a nearest-2x temporal upsample (T_out = 2*T) via the
                temporal tap index maps.
    """
    kt, kh, kw = taps
    w, b = p["w"], p["b"]
    ntaps, Cin, Cout = w.shape
    assert ntaps == kt * kh * kw
    B, T, H, W, _ = x.shape
    assert W % 8 == 0, "fused conv assumes W multiple of 8 (sublane tiling)"

    pt, ph, pw = kt // 2, kh // 2, kw // 2
    extra = 1 if kw > 1 else 0             # guard rows for the largest tap offset
    Wp = W + 2 * pw
    Tp = T + 2 * pt
    R_in = (H + 2 * ph + extra) * Wp
    T_out = 2 * T if t_upsample else T

    if pt or ph or pw or extra:
        xp = jnp.pad(x, ((0, 0), (pt, pt), (ph, ph + extra), (pw, pw), (0, 0)))
    else:
        xp = x
    xf = xp.reshape(B, Tp, R_in, Cin)      # free reshape (row-major merge)

    def t_src(ti, it):
        if t_upsample:
            return (ti + it + 1) // 2      # fused nearest-2x temporal upsample
        return ti + it

    x_specs = [
        pl.BlockSpec((1, 1, R_in, Cin),
                     (lambda bi, ti, _it=it: (bi, t_src(ti, _it), 0, 0)))
        for it in range(kt)
    ]
    # TODO(synk): single-buffer (pl.Buffered(1)) the weight/bias operands and
    # add a VMEM ring buffer over T so each temporal slice is DMA'd once, not kt x.
    w_spec = pl.BlockSpec((ntaps, Cin, Cout), lambda bi, ti: (0, 0, 0))
    b_spec = pl.BlockSpec((1, Cout), lambda bi, ti: (0, 0))
    o_spec = pl.BlockSpec((1, 1, H, W, Cout), lambda bi, ti: (bi, ti, 0, 0, 0))

    operands = [xf] * kt + [w, b]
    in_specs = x_specs + [w_spec, b_spec]
    has_res = residual is not None
    if has_res:
        assert residual.shape == (B, T_out, H, W, Cout)
        operands.append(residual)
        in_specs.append(pl.BlockSpec((1, 1, H, W, Cout),
                                     lambda bi, ti: (bi, ti, 0, 0, 0)))

    kern = functools.partial(_conv_kernel, kt=kt, kh=kh, kw=kw, H=H, W=W,
                             Wp=Wp, has_res=has_res)
    out_bytes = B * T_out * H * W * Cout * jnp.dtype(out_dtype).itemsize
    cost = pl.CostEstimate(
        flops=int(2 * B * T_out * H * W * Cin * Cout * ntaps),
        transcendentals=0,
        bytes_accessed=int(kt * xf.size * xf.dtype.itemsize + w.size * 2
                           + out_bytes + (out_bytes if has_res else 0)),
    )
    # TODO(synk): add an H-row grid axis (kh-row halo) for production spatial sizes.
    return pl.pallas_call(
        kern,
        out_shape=jax.ShapeDtypeStruct((B, T_out, H, W, Cout), out_dtype),
        grid=(B, T_out),
        in_specs=in_specs,
        out_specs=o_spec,
        compiler_params=_cparams(2),
        cost_estimate=cost,
    )(*operands)


# ----------------------------------------------------------------------------
# GroupNorm (+ optional swish) — channels-last, single pass (sum / sum-sq),
# per-group aggregation via one-hot matmul, affine folded into (scale, shift).
# ----------------------------------------------------------------------------
def _group_matrix(C, G):
    cg = C // G
    return (jnp.arange(C)[:, None] // cg == jnp.arange(G)[None, :]).astype(jnp.float32)


def _gn_spatial_kernel(x_ref, m_ref, g_ref, b_ref, o_ref, *, inv_n, eps, swish):
    x = x_ref[...].astype(jnp.float32)                       # (1, S, C)
    m = m_ref[...]                                           # (C, G) one-hot
    s1 = jnp.sum(x, axis=1)                                  # (1, C)
    s2 = jnp.sum(x * x, axis=1)                              # (1, C)
    mean_g = jnp.dot(s1, m, preferred_element_type=jnp.float32) * inv_n
    ex2_g = jnp.dot(s2, m, preferred_element_type=jnp.float32) * inv_n
    var_g = jnp.maximum(ex2_g - mean_g * mean_g, 0.0)
    rstd_g = lax.rsqrt(var_g + eps)
    mean_c = lax.dot_general(mean_g, m, (((1,), (1,)), ((), ())),
                             preferred_element_type=jnp.float32)       # (1, C)
    rstd_c = lax.dot_general(rstd_g, m, (((1,), (1,)), ((), ())),
                             preferred_element_type=jnp.float32)
    scale = rstd_c * g_ref[...]
    shift = b_ref[...] - mean_c * scale
    y = x * scale[:, None, :] + shift[:, None, :]
    if swish:
        y = y * jax.nn.sigmoid(y)                            # EUP path
    o_ref[...] = y.astype(o_ref.dtype)


def _gn_temporal_kernel(x_ref, m_ref, g_ref, b_ref, o_ref, *, inv_n, eps, swish):
    x = x_ref[0].astype(jnp.float32)                         # (T, St, C)
    m = m_ref[...]
    s1 = jnp.sum(x, axis=0)                                  # (St, C)
    s2 = jnp.sum(x * x, axis=0)
    mean_g = jnp.dot(s1, m, preferred_element_type=jnp.float32) * inv_n
    ex2_g = jnp.dot(s2, m, preferred_element_type=jnp.float32) * inv_n
    var_g = jnp.maximum(ex2_g - mean_g * mean_g, 0.0)
    rstd_g = lax.rsqrt(var_g + eps)
    mean_c = lax.dot_general(mean_g, m, (((1,), (1,)), ((), ())),
                             preferred_element_type=jnp.float32)       # (St, C)
    rstd_c = lax.dot_general(rstd_g, m, (((1,), (1,)), ((), ())),
                             preferred_element_type=jnp.float32)
    scale = rstd_c * g_ref[...]
    shift = b_ref[...] - mean_c * scale
    y = x * scale[None] + shift[None]
    if swish:
        y = y * jax.nn.sigmoid(y)
    o_ref[0] = y.astype(o_ref.dtype)


def group_norm_spatial(x, gamma, beta, *, per_frame, num_groups=32, eps=1e-6,
                       swish=True):
    """per_frame=False -> stats per (b, g) over (T, H, W, Cg)   [3D GroupNorm]
       per_frame=True  -> stats per (b, t, g) over (H, W, Cg)   [per-frame 2D GN]
       eps=1e-6 matches vidtok's Normalize(GroupNorm(..., eps=1e-6))."""
    B, T, H, W, C = x.shape
    if per_frame:
        R, S = B * T, H * W
    else:
        R, S = B, T * H * W
    xr = x.reshape(R, S, C)
    G = num_groups
    m = _group_matrix(C, G)
    g = gamma.reshape(1, C).astype(jnp.float32)
    bt = beta.reshape(1, C).astype(jnp.float32)
    # TODO(synk): two-pass S-tiled stats (sum / sum-of-squares accumulation over
    # an 'arbitrary' grid axis) for production spatial sizes.
    kern = functools.partial(_gn_spatial_kernel, inv_n=1.0 / (S * (C // G)),
                             eps=eps, swish=swish)
    out = pl.pallas_call(
        kern,
        out_shape=jax.ShapeDtypeStruct((R, S, C), x.dtype),
        grid=(R,),
        in_specs=[
            pl.BlockSpec((1, S, C), lambda i: (i, 0, 0)),
            pl.BlockSpec((C, G), lambda i: (0, 0)),
            pl.BlockSpec((1, C), lambda i: (0, 0)),
            pl.BlockSpec((1, C), lambda i: (0, 0)),
        ],
        out_specs=pl.BlockSpec((1, S, C), lambda i: (i, 0, 0)),
        compiler_params=_cparams(1),
    )(xr, m, g, bt)
    return out.reshape(B, T, H, W, C)


def _pick_s_tile(S, target=1024):
    if S <= target:
        return S
    for cand in range(target, 7, -8):
        if S % cand == 0:
            return cand
    return S


def group_norm_temporal(x, gamma, beta, *, num_groups=32, eps=1e-6, swish=True):
    """ResnetBlock1D GroupNorm: stats per (b, h, w, g) over (T, Cg); spatial
    locations are independent so they are tiled across the grid."""
    B, T, H, W, C = x.shape
    S = H * W
    St = _pick_s_tile(S)
    xr = x.reshape(B, T, S, C)
    G = num_groups
    m = _group_matrix(C, G)
    g = gamma.reshape(1, C).astype(jnp.float32)
    bt = beta.reshape(1, C).astype(jnp.float32)
    kern = functools.partial(_gn_temporal_kernel, inv_n=1.0 / (T * (C // G)),
                             eps=eps, swish=swish)
    out = pl.pallas_call(
        kern,
        out_shape=jax.ShapeDtypeStruct((B, T, S, C), x.dtype),
        grid=(B, S // St),
        in_specs=[
            pl.BlockSpec((1, T, St, C), lambda bi, si: (bi, 0, si, 0)),
            pl.BlockSpec((C, G), lambda bi, si: (0, 0)),
            pl.BlockSpec((1, C), lambda bi, si: (0, 0)),
            pl.BlockSpec((1, C), lambda bi, si: (0, 0)),
        ],
        out_specs=pl.BlockSpec((1, T, St, C), lambda bi, si: (bi, 0, si, 0)),
        compiler_params=_cparams(2),
    )(xr, m, g, bt)
    return out.reshape(B, T, H, W, C)


# ----------------------------------------------------------------------------
# Spatial attention — consumes the fused qkv tensor, grid over (b*t) slices.
# The 1/sqrt(C) SDPA scale is folded into the q rows of the qkv weights.
# ----------------------------------------------------------------------------
def _attn_kernel(qkv_ref, o_ref, *, C):
    x = qkv_ref[0]                                    # (N, 3C) bf16
    q = x[:, :C]
    k = x[:, C:2 * C]
    v = x[:, 2 * C:]
    s = lax.dot_general(q, k, (((1,), (1,)), ((), ())),
                        preferred_element_type=jnp.float32)
    s = s - jnp.max(s, axis=-1, keepdims=True)
    p = jnp.exp(s)
    p = p * pl.reciprocal(jnp.sum(p, axis=-1, keepdims=True), approx=True)
    o = jnp.dot(p.astype(v.dtype), v, preferred_element_type=jnp.float32)
    o_ref[0] = o.astype(o_ref.dtype)


def attention_pallas(qkv, C):
    """SDPA per (b, t) slice.  qkv: (BT, N, 3C) bf16 (q pre-scaled via weights).
    TODO(synk): flash-style KV tiling for large N (= H*W)."""
    BT, N, C3 = qkv.shape
    assert C3 == 3 * C
    kern = functools.partial(_attn_kernel, C=C)
    cost = pl.CostEstimate(flops=int(4 * BT * N * N * C),
                           transcendentals=int(BT * N * N),
                           bytes_accessed=int(qkv.size * 2 + BT * N * C * 2))
    return pl.pallas_call(
        kern,
        out_shape=jax.ShapeDtypeStruct((BT, N, C), qkv.dtype),
        grid=(BT,),
        in_specs=[pl.BlockSpec((1, N, 3 * C), lambda i: (i, 0, 0))],
        out_specs=pl.BlockSpec((1, N, C), lambda i: (i, 0, 0)),
        compiler_params=_cparams(1),
        cost_estimate=cost,
    )(qkv)


# ----------------------------------------------------------------------------
# Blocks
# ----------------------------------------------------------------------------
def resblock3d(p, x):
    # ResnetNoncausalBlock (in == out in mid blocks); dropout == identity.
    h = group_norm_spatial(x, p["norm1"]["g"], p["norm1"]["b"], per_frame=False, swish=True)
    h = fused_conv(h, p["conv1"], taps=(3, 3, 3))
    h = group_norm_spatial(h, p["norm2"]["g"], p["norm2"]["b"], per_frame=False, swish=True)
    return fused_conv(h, p["conv2"], taps=(3, 3, 3), residual=x)


def resblock2d(p, x):
    # ResnetBlock (spatial, per-frame) applied to the 5-D channels-last tensor.
    h = group_norm_spatial(x, p["norm1"]["g"], p["norm1"]["b"], per_frame=True, swish=True)
    h = fused_conv(h, p["conv1"], taps=(1, 3, 3))
    h = group_norm_spatial(h, p["norm2"]["g"], p["norm2"]["b"], per_frame=True, swish=True)
    if "nin" in p:
        sc = fused_conv(x, p["nin"], taps=(1, 1, 1))
    else:
        sc = x
    return fused_conv(h, p["conv2"], taps=(1, 3, 3), residual=sc)


def resblock1d(p, x):
    # ResnetBlock1D (temporal, per-pixel); conv2 zero-initialized per module init.
    h = group_norm_temporal(x, p["norm1"]["g"], p["norm1"]["b"], swish=True)
    h = fused_conv(h, p["conv1"], taps=(3, 1, 1))
    h = group_norm_temporal(h, p["norm2"]["g"], p["norm2"]["b"], swish=True)
    return fused_conv(h, p["conv2"], taps=(3, 1, 1), residual=x)


def attn_block(p, x):
    # AttnBlockWrapper: x + proj_out(SDPA over (h*w) tokens per (b,t) of qkv(norm(x)))
    B, T, H, W, C = x.shape
    hn = group_norm_spatial(x, p["norm"]["g"], p["norm"]["b"], per_frame=False, swish=False)
    qkv = fused_conv(hn, p["qkv"], taps=(1, 1, 1))            # fused q/k/v projection
    a = attention_pallas(qkv.reshape(B * T, H * W, 3 * C), C).reshape(B, T, H, W, C)
    return fused_conv(a, p["proj"], taps=(1, 1, 1), residual=x)


def upsample_spatial(p, x):
    # Upsample(with_conv=True): nearest 2x (H, W) + per-frame 3x3 conv.
    # TODO(synk): fold the nearest-2x repeat into the conv (4-phase transposed-conv
    # formulation) to avoid materializing the 4x tensor in HBM before the conv.
    x2 = jnp.repeat(jnp.repeat(x, 2, axis=2), 2, axis=3)
    return fused_conv(x2, p, taps=(1, 3, 3))


def time_upsample_res2x(p, x):
    # TimeUpsampleRes2x: out = a*up_t(x) + (1-a)*conv3d(up_t(x)), nearest up_t.
    # The nearest-2x temporal upsample is fused via the conv's temporal index
    # maps, and the alpha-mix is folded into the (static, inference) weights:
    #   W'[center] = (1-a) W[center] + a I,  W'[other] = (1-a) W,  b' = (1-a) b
    conv = p["conv"]
    cin, cout = conv["w"].shape[1], conv["w"].shape[2]
    alpha = jax.nn.sigmoid(p["mix_factor"]).astype(jnp.float32)
    w = conv["w"].astype(jnp.float32) * (1.0 - alpha)
    w = w.at[13].add(alpha * jnp.eye(cin, cout, dtype=jnp.float32))  # tap (1,1,1)
    b = conv["b"] * (1.0 - alpha)
    p_mix = {"w": w.astype(jnp.bfloat16), "b": b}
    return fused_conv(x, p_mix, taps=(3, 3, 3), t_upsample=True)


# ----------------------------------------------------------------------------
# Parameter init (deterministic, synthetic). Conv weights stored fused:
# (ntaps, Cin, Cout) bf16 with tap = (kt_i*kh + kh_i)*kw + kw_i; bias (1, Cout) f32.
# ----------------------------------------------------------------------------
class KeyGen:
    def __init__(self, key):
        self.key = key
        self.i = 0

    def __call__(self):
        self.i += 1
        return jax.random.fold_in(self.key, self.i)


def init_conv(kg, ntaps, cin, cout, zero=False):
    if zero:
        w = jnp.zeros((ntaps, cin, cout), jnp.float32)
        b = jnp.zeros((cout,), jnp.float32)
    else:
        w = jax.random.normal(kg(), (ntaps, cin, cout), jnp.float32) / math.sqrt(ntaps * cin)
        b = 0.01 * jax.random.normal(kg(), (cout,), jnp.float32)
    return {"w": w.astype(jnp.bfloat16), "b": b.reshape(1, cout)}


def init_norm(C):
    return {"g": jnp.ones((C,), jnp.float32), "b": jnp.zeros((C,), jnp.float32)}


def init_attn(kg, C):
    qkv = init_conv(kg, 1, C, 3 * C)
    # Fold SDPA's 1/sqrt(C) into the (static) q rows of the fused qkv projection.
    scale = 1.0 / math.sqrt(C)
    wq = qkv["w"].astype(jnp.float32).at[:, :, :C].multiply(scale)
    bq = qkv["b"].at[:, :C].multiply(scale)
    return {"norm": init_norm(C),
            "qkv": {"w": wq.astype(jnp.bfloat16), "b": bq},
            "proj": init_conv(kg, 1, C, C)}


def init_decoder(kg, *, ch, out_ch, ch_mult, num_res_blocks, z_channels):
    nres = len(ch_mult)
    block_in = ch * ch_mult[-1]
    P = {}
    P["conv_in"] = init_conv(kg, 27, z_channels, block_in)

    def res3d(c):
        return {"norm1": init_norm(c), "conv1": init_conv(kg, 27, c, c),
                "norm2": init_norm(c), "conv2": init_conv(kg, 27, c, c)}

    P["mid_block_1"] = res3d(block_in)
    P["mid_attn_1"] = init_attn(kg, block_in)
    P["mid_block_2"] = res3d(block_in)

    up = [None] * nres
    for i_level in reversed(range(nres)):
        block_out = ch * ch_mult[i_level]
        blocks = []
        for _ in range(num_res_blocks + 1):
            bp = {"norm1": init_norm(block_in),
                  "conv1": init_conv(kg, 9, block_in, block_out),
                  "norm2": init_norm(block_out),
                  "conv2": init_conv(kg, 9, block_out, block_out)}
            if block_in != block_out:
                bp["nin"] = init_conv(kg, 1, block_in, block_out)
            blocks.append(bp)
            block_in = block_out
        lvl = {"block": blocks}
        if i_level != 0:
            lvl["upsample"] = init_conv(kg, 9, block_in, block_in)
        up[i_level] = lvl
    P["up"] = up

    upt = [None] * nres
    for i_level in reversed(range(nres)):
        bi = ch * ch_mult[i_level]
        blocks = []
        for _ in range(num_res_blocks + 1):
            blocks.append({"norm1": init_norm(bi),
                           "conv1": init_conv(kg, 3, bi, bi),
                           "norm2": init_norm(bi),
                           # ResnetBlock1D(zero_init=True): conv2 zero-initialized
                           "conv2": init_conv(kg, 3, bi, bi, zero=True)})
        lvl = {"block": blocks}
        if i_level in (1, 2):      # tempo_us = [1, 2]
            lvl["upsample"] = {"conv": init_conv(kg, 27, bi, bi),
                               "mix_factor": jnp.array(2.0, jnp.float32)}
        upt[i_level] = lvl
    P["up_temporal"] = upt

    P["norm_out"] = init_norm(ch * ch_mult[0])
    P["conv_out"] = init_conv(kg, 27, ch * ch_mult[0], out_ch)
    return P


# ----------------------------------------------------------------------------
# Decoder3D forward
# ----------------------------------------------------------------------------
def decoder3d_forward(P, z, *, ch, ch_mult, num_res_blocks,
                      give_pre_end=False, tanh_out=False):
    del ch  # structure comes from params / ch_mult
    nres = len(ch_mult)

    # NCDHW -> channels-last NDHWC once; bf16 activations (f32 math in kernels).
    h = jnp.transpose(z, (0, 2, 3, 4, 1)).astype(jnp.bfloat16)

    h = fused_conv(h, P["conv_in"], taps=(3, 3, 3))
    h = resblock3d(P["mid_block_1"], h)
    h = attn_block(P["mid_attn_1"], h)
    h = resblock3d(P["mid_block_2"], h)

    for i_level in reversed(range(nres)):
        for i_block in range(num_res_blocks + 1):
            # spatial_temporal_resblk: per-frame 2D block, then temporal 1D block
            h = resblock2d(P["up"][i_level]["block"][i_block], h)
            h = resblock1d(P["up_temporal"][i_level]["block"][i_block], h)
        if i_level != 0:
            h = upsample_spatial(P["up"][i_level]["upsample"], h)
            if i_level in (1, 2):  # tempo_us
                h = time_upsample_res2x(P["up_temporal"][i_level]["upsample"], h)

    if give_pre_end:
        return jnp.transpose(h, (0, 4, 1, 2, 3)).astype(jnp.float32)

    h = group_norm_spatial(h, P["norm_out"]["g"], P["norm_out"]["b"],
                           per_frame=False, swish=True)
    h = fused_conv(h, P["conv_out"], taps=(3, 3, 3), out_dtype=jnp.float32)
    if tanh_out:
        h = jnp.tanh(h)
    return jnp.transpose(h, (0, 4, 1, 2, 3))


# ----------------------------------------------------------------------------
# Main
# ----------------------------------------------------------------------------
if __name__ == "__main__":
    # Small config consistent with Decoder3D(__init__):
    #   ch=32, out_ch=3, ch_mult=(1,2), num_res_blocks=1, z_channels=4
    cfg = dict(ch=32, out_ch=3, ch_mult=(1, 2), num_res_blocks=1, z_channels=4)

    key = jax.random.PRNGKey(0)
    kg = KeyGen(key)
    params = init_decoder(kg, **cfg)

    z = jax.random.normal(jax.random.fold_in(key, 9999),
                          (1, cfg["z_channels"], 2, 8, 8), jnp.float32)

    out = decoder3d_forward(params, z, ch=cfg["ch"], ch_mult=cfg["ch_mult"],
                            num_res_blocks=cfg["num_res_blocks"])
    out = jax.block_until_ready(out)

    # 2 resolutions -> spatial 2x once; level 1 in tempo_us -> temporal 2x once.
    assert out.shape == (1, cfg["out_ch"], 4, 16, 16), out.shape
    assert bool(jnp.all(jnp.isfinite(out)))
    print("KERNEL_OK")
</pallas_src>

<mosaic_0001>
module attributes {stable_mosaic.version = 11 : i64} {
  func.func @_conv_kernel(%arg0: i32, %arg1: i32, %arg2: memref<1x1x110x4xbf16, #tpu.memory_space<vmem>>, %arg3: memref<1x1x110x4xbf16, #tpu.memory_space<vmem>>, %arg4: memref<1x1x110x4xbf16, #tpu.memory_space<vmem>>, %arg5: memref<27x4x64xbf16, #tpu.memory_space<vmem>>, %arg6: memref<1x64xf32, #tpu.memory_space<vmem>>, %arg7: memref<1x1x8x8x64xbf16, #tpu.memory_space<vmem>>) attributes {dimension_semantics = [#tpu.dimension_semantics<parallel>, #tpu.dimension_semantics<parallel>], iteration_bounds = array<i64: 1, 2>, scalar_prefetch = 0 : i64, scratch_operands = 0 : i64, tpu.core_type = #tpu.core_type<tc>, window_params = [{transform_indices = @transform_0, window_bounds = array<i64: 1, 1, 110, 4>}, {transform_indices = @transform_1, window_bounds = array<i64: 1, 1, 110, 4>}, {transform_indices = @transform_2, window_bounds = array<i64: 1, 1, 110, 4>}, {pipeline_mode = #tpu.pipeline_mode<synchronous>, transform_indices = @transform_3, window_bounds = array<i64: 27, 4, 64>}, {pipeline_mode = #tpu.pipeline_mode<synchronous>, transform_indices = @transform_4, window_bounds = array<i64: 1, 64>}, {transform_indices = @transform_5, window_bounds = array<i64: 1, 1, 8, 8, 64>}]} {
    %cst = arith.constant 0.000000e+00 : f32
    %0 = vector.broadcast %cst : f32 to vector<80x64xf32>
    %c0 = arith.constant 0 : index
    %c0_0 = arith.constant 0 : index
    %c0_1 = arith.constant 0 : index
    %c0_2 = arith.constant 0 : index
    %1 = vector.load %arg2[%c0, %c0_0, %c0_1, %c0_2] : memref<1x1x110x4xbf16, #tpu.memory_space<vmem>>, vector<1x1x110x4xbf16>
    %2 = vector.shape_cast %1 : vector<1x1x110x4xbf16> to vector<110x4xbf16>
    %3 = vector.extract_strided_slice %2 {offsets = [0, 0], sizes = [80, 4], strides = [1, 1]} : vector<110x4xbf16> to vector<80x4xbf16>
    %c0_3 = arith.constant 0 : index
    %c0_4 = arith.constant 0 : index
    %c0_5 = arith.constant 0 : index
    %4 = vector.load %arg5[%c0_3, %c0_4, %c0_5] : memref<27x4x64xbf16, #tpu.memory_space<vmem>>, vector<1x4x64xbf16>
    %5 = vector.shape_cast %4 : vector<1x4x64xbf16> to vector<4x64xbf16>
    %cst_6 = arith.constant dense<0.000000e+00> : vector<80x64xf32>
    %6 = tpu.matmul %3, %5, %cst_6 {dimension_numbers = #tpu.dot_dimension_numbers<[1], [0], [0], [1], [0, 0, 1, 1], [], []>} : vector<80x4xbf16>, vector<4x64xbf16>, vector<80x64xf32> -> vector<80x64xf32>
    %7 = arith.addf %0, %6 : vector<80x64xf32>
    %8 = vector.extract_strided_slice %2 {offsets = [1, 0], sizes = [80, 4], strides = [1, 1]} : vector<110x4xbf16> to vector<80x4xbf16>
    %c1 = arith.constant 1 : index
    %c0_7 = arith.constant 0 : index
    %c0_8 = arith.constant 0 : index
    %9 = vector.load %arg5[%c1, %c0_7, %c0_8] : memref<27x4x64xbf16, #tpu.memory_space<vmem>>, vector<1x4x64xbf16>
    %10 = vector.shape_cast %9 : vector<1x4x64xbf16> to vector<4x64xbf16>
    %cst_9 = arith.constant dense<0.000000e+00> : vector<80x64xf32>
    %11 = tpu.matmul %8, %10, %cst_9 {dimension_numbers = #tpu.dot_dimension_numbers<[1], [0], [0], [1], [0, 0, 1, 1], [], []>} : vector<80x4xbf16>, vector<4x64xbf16>, vector<80x64xf32> -> vector<80x64xf32>
    %12 = arith.addf %7, %11 : vector<80x64xf32>
    %13 = vector.extract_strided_slice %2 {offsets = [2, 0], sizes = [80, 4], strides = [1, 1]} : vector<110x4xbf16> to vector<80x4xbf16>
    %c2 = arith.constant 2 : index
    %c0_10 = arith.constant 0 : index
    %c0_11 = arith.constant 0 : index
    %14 = vector.load %arg5[%c2, %c0_10, %c0_11] : memref<27x4x64xbf16, #tpu.memory_space<vmem>>, vector<1x4x64xbf16>
    %15 = vector.shape_cast %14 : vector<1x4x64xbf16> to vector<4x64xbf16>
    %cst_12 = arith.constant dense<0.000000e+00> : vector<80x64xf32>
    %16 = tpu.matmul %13, %15, %cst_12 {dimension_numbers = #tpu.dot_dimension_numbers<[1], [0], [0], [1], [0, 0, 1, 1], [], []>} : vector<80x4xbf16>, vector<4x64xbf16>, vector<80x64xf32> -> vector<80x64xf32>
    %17 = arith.addf %12, %16 : vector<80x64xf32>
    %18 = vector.extract_strided_slice %2 {offsets = [10, 0], sizes = [80, 4], strides = [1, 1]} : vector<110x4xbf16> to vector<80x4xbf16>
    %c3 = arith.constant 3 : index
    %c0_13 = arith.constant 0 : index
    %c0_14 = arith.constant 0 : index
    %19 = vector.load %arg5[%c3, %c0_13, %c0_14] : memref<27x4x64xbf16, #tpu.memory_space<vmem>>, vector<1x4x64xbf16>
    %20 = vector.shape_cast %19 : vector<1x4x64xbf16> to vector<4x64xbf16>
    %cst_15 = arith.constant dense<0.000000e+00> : vector<80x64xf32>
    %21 = tpu.matmul %18, %20, %cst_15 {dimension_numbers = #tpu.dot_dimension_numbers<[1], [0], [0], [1], [0, 0, 1, 1], [], []>} : vector<80x4xbf16>, vector<4x64xbf16>, vector<80x64xf32> -> vector<80x64xf32>
    %22 = arith.addf %17, %21 : vector<80x64xf32>
    %23 = vector.extract_strided_slice %2 {offsets = [11, 0], sizes = [80, 4], strides = [1, 1]} : vector<110x4xbf16> to vector<80x4xbf16>
    %c4 = arith.constant 4 : index
    %c0_16 = arith.constant 0 : index
    %c0_17 = arith.constant 0 : index
    %24 = vector.load %arg5[%c4, %c0_16, %c0_17] : memref<27x4x64xbf16, #tpu.memory_space<vmem>>, vector<1x4x64xbf16>
    %25 = vector.shape_cast %24 : vector<1x4x64xbf16> to vector<4x64xbf16>
    %cst_18 = arith.constant dense<0.000000e+00> : vector<80x64xf32>
    %26 = tpu.matmul %23, %25, %cst_18 {dimension_numbers = #tpu.dot_dimension_numbers<[1], [0], [0], [1], [0, 0, 1, 1], [], []>} : vector<80x4xbf16>, vector<4x64xbf16>, vector<80x64xf32> -> vector<80x64xf32>
    %27 = arith.addf %22, %26 : vector<80x64xf32>
    %28 = vector.extract_strided_slice %2 {offsets = [12, 0], sizes = [80, 4], strides = [1, 1]} : vector<110x4xbf16> to vector<80x4xbf16>
    %c5 = arith.constant 5 : index
    %c0_19 = arith.constant 0 : index
    %c0_20 = arith.constant 0 : index
    %29 = vector.load %arg5[%c5, %c0_19, %c0_20] : memref<27x4x64xbf16, #tpu.memory_space<vmem>>, vector<1x4x64xbf16>
    %30 = vector.shape_cast %29 : vector<1x4x64xbf16> to vector<4x64xbf16>
    %cst_21 = arith.constant dense<0.000000e+00> : vector<80x64xf32>
    %31 = tpu.matmul %28, %30, %cst_21 {dimension_numbers = #tpu.dot_dimension_numbers<[1], [0], [0], [1], [0, 0, 1, 1], [], []>} : vector<80x4xbf16>, vector<4x64xbf16>, vector<80x64xf32> -> vector<80x64xf32>
    %32 = arith.addf %27, %31 : vector<80x64xf32>
    %33 = vector.extract_strided_slice %2 {offsets = [20, 0], sizes = [80, 4], strides = [1, 1]} : vector<110x4xbf16> to vector<80x4xbf16>
    %c6 = arith.constant 6 : index
    %c0_22 = arith.constant 0 : index
    %c0_23 = arith.constant 0 : index
    %34 = vector.load %arg5[%c6, %c0_22, %c0_23] : memref<27x4x64xbf16, #tpu.memory_space<vmem>>, vector<1x4x64xbf16>
    %35 = vector.shape_cast %34 : vector<1x4x64xbf16> to vector<4x64xbf16>
    %cst_24 = arith.constant dense<0.000000e+00> : vector<80x64xf32>
    %36 = tpu.matmul %33, %35, %cst_24 {dimension_numbers = #tpu.dot_dimension_numbers<[1], [0], [0], [1], [0, 0, 1, 1], [], []>} : vector<80x4xbf16>, vector<4x64xbf16>, vector<80x64xf32> -> vector<80x64xf32>
    %37 = arith.addf %32, %36 : vector<80x64xf32>
    %38 = vector.extract_strided_slice %2 {offsets = [21, 0], sizes = [80, 4], strides = [1, 1]} : vector<110x4xbf16> to vector<80x4xbf16>
    %c7 = arith.constant 7 : index
    %c0_25 = arith.constant 0 : index
    %c0_26 = arith.constant 0 : index
    %39 = vector.load %arg5[%c7, %c0_25, %c0_26] : memref<27x4x64xbf16, #tpu.memory_space<vmem>>, vector<1x4x64xbf16>
    %40 = vector.shape_cast %39 : vector<1x4x64xbf16> to vector<4x64xbf16>
    %cst_27 = arith.constant dense<0.000000e+00> : vector<80x64xf32>
    %41 = tpu.matmul %38, %40, %cst_27 {dimension_numbers = #tpu.dot_dimension_numbers<[1], [0], [0], [1], [0, 0, 1, 1], [], []>} : vector<80x4xbf16>, vector<4x64xbf16>, vector<80x64xf32> -> vector<80x64xf32>
    %42 = arith.addf %37, %41 : vector<80x64xf32>
    %43 = vector.extract_strided_slice %2 {offsets = [22, 0], sizes = [80, 4], strides = [1, 1]} : vector<110x4xbf16> to vector<80x4xbf16>
    %c8 = arith.constant 8 : index
    %c0_28 = arith.constant 0 : index
    %c0_29 = arith.constant 0 : index
    %44 = vector.load %arg5[%c8, %c0_28, %c0_29] : memref<27x4x64xbf16, #tpu.memory_space<vmem>>, vector<1x4x64xbf16>
    %45 = vector.shape_cast %44 : vector<1x4x64xbf16> to vector<4x64xbf16>
    %cst_30 = arith.constant dense<0.000000e+00> : vector<80x64xf32>
    %46 = tpu.matmul %43, %45, %cst_30 {dimension_numbers = #tpu.dot_dimension_numbers<[1], [0], [0], [1], [0, 0, 1, 1], [], []>} : vector<80x4xbf16>, vector<4x64xbf16>, vector<80x64xf32> -> vector<80x64xf32>
    %47 = arith.addf %42, %46 : vector<80x64xf32>
    %c0_31 = arith.constant 0 : index
    %c0_32 = arith.constant 0 : index
    %c0_33 = arith.constant 0 : index
    %c0_34 = arith.constant 0 : index
    %48 = vector.load %arg3[%c0_31, %c0_32, %c0_33, %c0_34] : memref<1x1x110x4xbf16, #tpu.memory_space<vmem>>, vector<1x1x110x4xbf16>
    %49 = vector.shape_cast %48 : vector<1x1x110x4xbf16> to vector<110x4xbf16>
    %50 = vector.extract_strided_slice %49 {offsets = [0, 0], sizes = [80, 4], strides = [1, 1]} : vector<110x4xbf16> to vector<80x4xbf16>
    %c9 = arith.constant 9 : index
    %c0_35 = arith.constant 0 : index
    %c0_36 = arith.constant 0 : index
    %51 = vector.load %arg5[%c9, %c0_35, %c0_36] : memref<27x4x64xbf16, #tpu.memory_space<vmem>>, vector<1x4x64xbf16>
    %52 = vector.shape_cast %51 : vector<1x4x64xbf16> to vector<4x64xbf16>
    %cst_37 = arith.constant dense<0.000000e+00> : vector<80x64xf32>
    %53 = tpu.matmul %50, %52, %cst_37 {dimension_numbers = #tpu.dot_dimension_numbers<[1], [0], [0], [1], [0, 0, 1, 1], [], []>} : vector<80x4xbf16>, vector<4x64xbf16>, vector<80x64xf32> -> vector<80x64xf32>
    %54 = arith.addf %47, %53 : vector<80x64xf32>
    %55 = vector.extract_strided_slice %49 {offsets = [1, 0], sizes = [80, 4], strides = [1, 1]} : vector<110x4xbf16> to vector<80x4xbf16>
    %c10 = arith.constant 10 : index
    %c0_38 = arith.constant 0 : index
    %c0_39 = arith.constant 0 : index
    %56 = vector.load %arg5[%c10, %c0_38, %c0_39] : memref<27x4x64xbf16, #tpu.memory_space<vmem>>, vector<1x4x64xbf16>
    %57 = vector.shape_cast %56 : vector<1x4x64xbf16> to vector<4x64xbf16>
    %cst_40 = arith.constant dense<0.000000e+00> : vector<80x64xf32>
    %58 = tpu.matmul %55, %57, %cst_40 {dimension_numbers = #tpu.dot_dimension_numbers<[1], [0], [0], [1], [0, 0, 1, 1], [], []>} : vector<80x4xbf16>, vector<4x64xbf16>, vector<80x64xf32> -> vector<80x64xf32>
    %59 = arith.addf %54, %58 : vector<80x64xf32>
    %60 = vector.extract_strided_slice %49 {offsets = [2, 0], sizes = [80, 4], strides = [1, 1]} : vector<110x4xbf16> to vector<80x4xbf16>
    %c11 = arith.constant 11 : index
    %c0_41 = arith.constant 0 : index
    %c0_42 = arith.constant 0 : index
    %61 = vector.load %arg5[%c11, %c0_41, %c0_42] : memref<27x4x64xbf16, #tpu.memory_space<vmem>>, vector<1x4x64xbf16>
    %62 = vector.shape_cast %61 : vector<1x4x64xbf16> to vector<4x64xbf16>
    %cst_43 = arith.constant dense<0.000000e+00> : vector<80x64xf32>
    %63 = tpu.matmul %60, %62, %cst_43 {dimension_numbers = #tpu.dot_dimension_numbers<[1], [0], [0], [1], [0, 0, 1, 1], [], []>} : vector<80x4xbf16>, vector<4x64xbf16>, vector<80x64xf32> -> vector<80x64xf32>
    %64 = arith.addf %59, %63 : vector<80x64xf32>
    %65 = vector.extract_strided_slice %49 {offsets = [10, 0], sizes = [80, 4], strides = [1, 1]} : vector<110x4xbf16> to vector<80x4xbf16>
    %c12 = arith.constant 12 : index
    %c0_44 = arith.constant 0 : index
    %c0_45 = arith.constant 0 : index
    %66 = vector.load %arg5[%c12, %c0_44, %c0_45] : memref<27x4x64xbf16, #tpu.memory_space<vmem>>, vector<1x4x64xbf16>
    %67 = vector.shape_cast %66 : vector<1x4x64xbf16> to vector<4x64xbf16>
    %cst_46 = arith.constant dense<0.000000e+00> : vector<80x64xf32>
    %68 = tpu.matmul %65, %67, %cst_46 {dimension_numbers = #tpu.dot_dimension_numbers<[1], [0], [0], [1], [0, 0, 1, 1], [], []>} : vector<80x4xbf16>, vector<4x64xbf16>, vector<80x64xf32> -> vector<80x64xf32>
    %69 = arith.addf %64, %68 : vector<80x64xf32>
    %70 = vector.extract_strided_slice %49 {offsets = [11, 0], sizes = [80, 4], strides = [1, 1]} : vector<110x4xbf16> to vector<80x4xbf16>
    %c13 = arith.constant 13 : index
    %c0_47 = arith.constant 0 : index
    %c0_48 = arith.constant 0 : index
    %71 = vector.load %arg5[%c13, %c0_47, %c0_48] : memref<27x4x64xbf16, #tpu.memory_space<vmem>>, vector<1x4x64xbf16>
    %72 = vector.shape_cast %71 : vector<1x4x64xbf16> to vector<4x64xbf16>
    %cst_49 = arith.constant dense<0.000000e+00> : vector<80x64xf32>
    %73 = tpu.matmul %70, %72, %cst_49 {dimension_numbers = #tpu.dot_dimension_numbers<[1], [0], [0], [1], [0, 0, 1, 1], [], []>} : vector<80x4xbf16>, vector<4x64xbf16>, vector<80x64xf32> -> vector<80x64xf32>
    %74 = arith.addf %69, %73 : vector<80x64xf32>
    %75 = vector.extract_strided_slice %49 {offsets = [12, 0], sizes = [80, 4], strides = [1, 1]} : vector<110x4xbf16> to vector<80x4xbf16>
    %c14 = arith.constant 14 : index
    %c0_50 = arith.constant 0 : index
    %c0_51 = arith.constant 0 : index
    %76 = vector.load %arg5[%c14, %c0_50, %c0_51] : memref<27x4x64xbf16, #tpu.memory_space<vmem>>, vector<1x4x64xbf16>
    %77 = vector.shape_cast %76 : vector<1x4x64xbf16> to vector<4x64xbf16>
    %cst_52 = arith.constant dense<0.000000e+00> : vector<80x64xf32>
    %78 = tpu.matmul %75, %77, %cst_52 {dimension_numbers = #tpu.dot_dimension_numbers<[1], [0], [0], [1], [0, 0, 1, 1], [], []>} : vector<80x4xbf16>, vector<4x64xbf16>, vector<80x64xf32> -> vector<80x64xf32>
    %79 = arith.addf %74, %78 : vector<80x64xf32>
    %80 = vector.extract_strided_slice %49 {offsets = [20, 0], sizes = [80, 4], strides = [1, 1]} : vector<110x4xbf16> to vector<80x4xbf16>
    %c15 = arith.constant 15 : index
    %c0_53 = arith.constant 0 : index
    %c0_54 = arith.constant 0 : index
    %81 = vector.load %arg5[%c15, %c0_53, %c0_54] : memref<27x4x64xbf16, #tpu.memory_space<vmem>>, vector<1x4x64xbf16>
    %82 = vector.shape_cast %81 : vector<1x4x64xbf16> to vector<4x64xbf16>
    %cst_55 = arith.constant dense<0.000000e+00> : vector<80x64xf32>
    %83 = tpu.matmul %80, %82, %cst_55 {dimension_numbers = #tpu.dot_dimension_numbers<[1], [0], [0], [1], [0, 0, 1, 1], [], []>} : vector<80x4xbf16>, vector<4x64xbf16>, vector<80x64xf32> -> vector<80x64xf32>
    %84 = arith.addf %79, %83 : vector<80x64xf32>
    %85 = vector.extract_strided_slice %49 {offsets = [21, 0], sizes = [80, 4], strides = [1, 1]} : vector<110x4xbf16> to vector<80x4xbf16>
    %c16 = arith.constant 16 : index
    %c0_56 = arith.constant 0 : index
    %c0_57 = arith.constant 0 : index
    %86 = vector.load %arg5[%c16, %c0_56, %c0_57] : memref<27x4x64xbf16, #tpu.memory_space<vmem>>, vector<1x4x64xbf16>
    %87 = vector.shape_cast %86 : vector<1x4x64xbf16> to vector<4x64xbf16>
    %cst_58 = arith.constant dense<0.000000e+00> : vector<80x64xf32>
    %88 = tpu.matmul %85, %87, %cst_58 {dimension_numbers = #tpu.dot_dimension_numbers<[1], [0], [0], [1], [0, 0, 1, 1], [], []>} : vector<80x4xbf16>, vector<4x64xbf16>, vector<80x64xf32> -> vector<80x64xf32>
    %89 = arith.addf %84, %88 : vector<80x64xf32>
    %90 = vector.extract_strided_slice %49 {offsets = [22, 0], sizes = [80, 4], strides = [1, 1]} : vector<110x4xbf16> to vector<80x4xbf16>
    %c17 = arith.constant 17 : index
    %c0_59 = arith.constant 0 : index
    %c0_60 = arith.constant 0 : index
    %91 = vector.load %arg5[%c17, %c0_59, %c0_60] : memref<27x4x64xbf16, #tpu.memory_space<vmem>>, vector<1x4x64xbf16>
    %92 = vector.shape_cast %91 : vector<1x4x64xbf16> to vector<4x64xbf16>
    %cst_61 = arith.constant dense<0.000000e+00> : vector<80x64xf32>
    %93 = tpu.matmul %90, %92, %cst_61 {dimension_numbers = #tpu.dot_dimension_numbers<[1], [0], [0], [1], [0, 0, 1, 1], [], []>} : vector<80x4xbf16>, vector<4x64xbf16>, vector<80x64xf32> -> vector<80x64xf32>
    %94 = arith.addf %89, %93 : vector<80x64xf32>
    %c0_62 = arith.constant 0 : index
    %c0_63 = arith.constant 0 : index
    %c0_64 = arith.constant 0 : index
    %c0_65 = arith.constant 0 : index
    %95 = vector.load %arg4[%c0_62, %c0_63, %c0_64, %c0_65] : memref<1x1x110x4xbf16, #tpu.memory_space<vmem>>, vector<1x1x110x4xbf16>
    %96 = vector.shape_cast %95 : vector<1x1x110x4xbf16> to vector<110x4xbf16>
    %97 = vector.extract_strided_slice %96 {offsets = [0, 0], sizes = [80, 4], strides = [1, 1]} : vector<110x4xbf16> to vector<80x4xbf16>
    %c18 = arith.constant 18 : index
    %c0_66 = arith.constant 0 : index
    %c0_67 = arith.constant 0 : index
    %98 = vector.load %arg5[%c18, %c0_66, %c0_67] : memref<27x4x64xbf16, #tpu.memory_space<vmem>>, vector<1x4x64xbf16>
    %99 = vector.shape_cast %98 : vector<1x4x64xbf16> to vector<4x64xbf16>
    %cst_68 = arith.constant dense<0.000000e+00> : vector<80x64xf32>
    %100 = tpu.matmul %97, %99, %cst_68 {dimension_numbers = #tpu.dot_dimension_numbers<[1], [0], [0], [1], [0, 0, 1, 1], [], []>} : vector<80x4xbf16>, vector<4x64xbf16>, vector<80x64xf32> -> vector<80x64xf32>
    %101 = arith.addf %94, %100 : vector<80x64xf32>
    %102 = vector.extract_strided_slice %96 {offsets = [1, 0], sizes = [80, 4], strides = [1, 1]} : vector<110x4xbf16> to vector<80x4xbf16>
    %c19 = arith.constant 19 : index
    %c0_69 = arith.constant 0 : index
    %c0_70 = arith.constant 0 : index
    %103 = vector.load %arg5[%c19, %c0_69, %c0_70] : memref<27x4x64xbf16, #tpu.memory_space<vmem>>, vector<1x4x64xbf16>
    %104 = vector.shape_cast %103 : vector<1x4x64xbf16> to vector<4x64xbf16>
    %cst_71 = arith.constant dense<0.000000e+00> : vector<80x64xf32>
    %105 = tpu.matmul %102, %104, %cst_71 {dimension_numbers = #tpu.dot_dimension_numbers<[1], [0], [0], [1], [0, 0, 1, 1], [], []>} : vector<80x4xbf16>, vector<4x64xbf16>, vector<80x64xf32> -> vector<80x64xf32>
    %106 = arith.addf %101, %105 : vector<80x64xf32>
    %107 = vector.extract_strided_slice %96 {offsets = [2, 0], sizes = [80, 4], strides = [1, 1]} : vector<110x4xbf16> to vector<80x4xbf16>
    %c20 = arith.constant 20 : index
    %c0_72 = arith.constant 0 : index
    %c0_73 = arith.constant 0 : index
    %108 = vector.load %arg5[%c20, %c0_72, %c0_73] : memref<27x4x64xbf16, #tpu.memory_space<vmem>>, vector<1x4x64xbf16>
    %109 = vector.shape_cast %108 : vector<1x4x64xbf16> to vector<4x64xbf16>
    %cst_74 = arith.constant dense<0.000000e+00> : vector<80x64xf32>
    %110 = tpu.matmul %107, %109, %cst_74 {dimension_numbers = #tpu.dot_dimension_numbers<[1], [0], [0], [1], [0, 0, 1, 1], [], []>} : vector<80x4xbf16>, vector<4x64xbf16>, vector<80x64xf32> -> vector<80x64xf32>
    %111 = arith.addf %106, %110 : vector<80x64xf32>
    %112 = vector.extract_strided_slice %96 {offsets = [10, 0], sizes = [80, 4], strides = [1, 1]} : vector<110x4xbf16> to vector<80x4xbf16>
    %c21 = arith.constant 21 : index
    %c0_75 = arith.constant 0 : index
    %c0_76 = arith.constant 0 : index
    %113 = vector.load %arg5[%c21, %c0_75, %c0_76] : memref<27x4x64xbf16, #tpu.memory_space<vmem>>, vector<1x4x64xbf16>
    %114 = vector.shape_cast %113 : vector<1x4x64xbf16> to vector<4x64xbf16>
    %cst_77 = arith.constant dense<0.000000e+00> : vector<80x64xf32>
    %115 = tpu.matmul %112, %114, %cst_77 {dimension_numbers = #tpu.dot_dimension_numbers<[1], [0], [0], [1], [0, 0, 1, 1], [], []>} : vector<80x4xbf16>, vector<4x64xbf16>, vector<80x64xf32> -> vector<80x64xf32>
    %116 = arith.addf %111, %115 : vector<80x64xf32>
    %117 = vector.extract_strided_slice %96 {offsets = [11, 0], sizes = [80, 4], strides = [1, 1]} : vector<110x4xbf16> to vector<80x4xbf16>
    %c22 = arith.constant 22 : index
    %c0_78 = arith.constant 0 : index
    %c0_79 = arith.constant 0 : index
    %118 = vector.load %arg5[%c22, %c0_78, %c0_79] : memref<27x4x64xbf16, #tpu.memory_space<vmem>>, vector<1x4x64xbf16>
    %119 = vector.shape_cast %118 : vector<1x4x64xbf16> to vector<4x64xbf16>
    %cst_80 = arith.constant dense<0.000000e+00> : vector<80x64xf32>
    %120 = tpu.matmul %117, %119, %cst_80 {dimension_numbers = #tpu.dot_dimension_numbers<[1], [0], [0], [1], [0, 0, 1, 1], [], []>} : vector<80x4xbf16>, vector<4x64xbf16>, vector<80x64xf32> -> vector<80x64xf32>
    %121 = arith.addf %116, %120 : vector<80x64xf32>
    %122 = vector.extract_strided_slice %96 {offsets = [12, 0], sizes = [80, 4], strides = [1, 1]} : vector<110x4xbf16> to vector<80x4xbf16>
    %c23 = arith.constant 23 : index
    %c0_81 = arith.constant 0 : index
    %c0_82 = arith.constant 0 : index
    %123 = vector.load %arg5[%c23, %c0_81, %c0_82] : memref<27x4x64xbf16, #tpu.memory_space<vmem>>, vector<1x4x64xbf16>
    %124 = vector.shape_cast %123 : vector<1x4x64xbf16> to vector<4x64xbf16>
    %cst_83 = arith.constant dense<0.000000e+00> : vector<80x64xf32>
    %125 = tpu.matmul %122, %124, %cst_83 {dimension_numbers = #tpu.dot_dimension_numbers<[1], [0], [0], [1], [0, 0, 1, 1], [], []>} : vector<80x4xbf16>, vector<4x64xbf16>, vector<80x64xf32> -> vector<80x64xf32>
    %126 = arith.addf %121, %125 : vector<80x64xf32>
    %127 = vector.extract_strided_slice %96 {offsets = [20, 0], sizes = [80, 4], strides = [1, 1]} : vector<110x4xbf16> to vector<80x4xbf16>
    %c24 = arith.constant 24 : index
    %c0_84 = arith.constant 0 : index
    %c0_85 = arith.constant 0 : index
    %128 = vector.load %arg5[%c24, %c0_84, %c0_85] : memref<27x4x64xbf16, #tpu.memory_space<vmem>>, vector<1x4x64xbf16>
    %129 = vector.shape_cast %128 : vector<1x4x64xbf16> to vector<4x64xbf16>
    %cst_86 = arith.constant dense<0.000000e+00> : vector<80x64xf32>
    %130 = tpu.matmul %127, %129, %cst_86 {dimension_numbers = #tpu.dot_dimension_numbers<[1], [0], [0], [1], [0, 0, 1, 1], [], []>} : vector<80x4xbf16>, vector<4x64xbf16>, vector<80x64xf32> -> vector<80x64xf32>
    %131 = arith.addf %126, %130 : vector<80x64xf32>
    %132 = vector.extract_strided_slice %96 {offsets = [21, 0], sizes = [80, 4], strides = [1, 1]} : vector<110x4xbf16> to vector<80x4xbf16>
    %c25 = arith.constant 25 : index
    %c0_87 = arith.constant 0 : index
    %c0_88 = arith.constant 0 : index
    %133 = vector.load %arg5[%c25, %c0_87, %c0_88] : memref<27x4x64xbf16, #tpu.memory_space<vmem>>, vector<1x4x64xbf16>
    %134 = vector.shape_cast %133 : vector<1x4x64xbf16> to vector<4x64xbf16>
    %cst_89 = arith.constant dense<0.000000e+00> : vector<80x64xf32>
    %135 = tpu.matmul %132, %134, %cst_89 {dimension_numbers = #tpu.dot_dimension_numbers<[1], [0], [0], [1], [0, 0, 1, 1], [], []>} : vector<80x4xbf16>, vector<4x64xbf16>, vector<80x64xf32> -> vector<80x64xf32>
    %136 = arith.addf %131, %135 : vector<80x64xf32>
    %137 = vector.extract_strided_slice %96 {offsets = [22, 0], sizes = [80, 4], strides = [1, 1]} : vector<110x4xbf16> to vector<80x4xbf16>
    %c26 = arith.constant 26 : index
    %c0_90 = arith.constant 0 : index
    %c0_91 = arith.constant 0 : index
    %138 = vector.load %arg5[%c26, %c0_90, %c0_91] : memref<27x4x64xbf16, #tpu.memory_space<vmem>>, vector<1x4x64xbf16>
    %139 = vector.shape_cast %138 : vector<1x4x64xbf16> to vector<4x64xbf16>
    %cst_92 = arith.constant dense<0.000000e+00> : vector<80x64xf32>
    %140 = tpu.matmul %137, %139, %cst_92 {dimension_numbers = #tpu.dot_dimension_numbers<[1], [0], [0], [1], [0, 0, 1, 1], [], []>} : vector<80x4xbf16>, vector<4x64xbf16>, vector<80x64xf32> -> vector<80x64xf32>
    %141 = arith.addf %136, %140 : vector<80x64xf32>
    %142 = vector.shape_cast %141 : vector<80x64xf32> to vector<8x10x64xf32>
    %143 = vector.extract_strided_slice %142 {offsets = [0, 0, 0], sizes = [8, 8, 64], strides = [1, 1, 1]} : vector<8x10x64xf32> to vector<8x8x64xf32>
    %c0_93 = arith.constant 0 : index
    %c0_94 = arith.constant 0 : index
    %144 = vector.load %arg6[%c0_93, %c0_94] : memref<1x64xf32, #tpu.memory_space<vmem>>, vector<1x64xf32>
    %145 = vector.shape_cast %144 : vector<1x64xf32> to vector<1x1x64xf32>
    %146 = vector.broadcast %145 : vector<1x1x64xf32> to vector<8x8x64xf32>
    %147 = arith.addf %143, %146 : vector<8x8x64xf32>
    %148 = arith.truncf %147 : vector<8x8x64xf32> to vector<8x8x64xbf16>
    %c0_95 = arith.constant 0 : index
    %c0_96 = arith.constant 0 : index
    %c0_97 = arith.constant 0 : index
    %c0_98 = arith.constant 0 : index
    %c0_99 = arith.constant 0 : index
    %149 = vector.load %arg7[%c0_95, %c0_96, %c0_97, %c0_98, %c0_99] : memref<1x1x8x8x64xbf16, #tpu.memory_space<vmem>>, vector<1x1x8x8x64xbf16>
    %150 = vector.shape_cast %149 : vector<1x1x8x8x64xbf16> to vector<8x8x64xbf16>
    %151 = vector.shape_cast %148 : vector<8x8x64xbf16> to vector<1x1x8x8x64xbf16>
    tpu.vector_store %arg7[%c0_95, %c0_96, %c0_97, %c0_98, %c0_99], %151 {strides = array<i32>} : memref<1x1x8x8x64xbf16, #tpu.memory_space<vmem>>, vector<1x1x8x8x64xbf16>,
    return
  }
  func.func @transform_0(%arg0: i32, %arg1: i32) -> (i32, i32, i32, i32) {
    %c0_i32 = arith.constant 0 : i32
    %0 = arith.addi %arg1, %c0_i32 : i32
    %c0_i32_0 = arith.constant 0 : i32
    %c0_i32_1 = arith.constant 0 : i32
    %c0_i32_2 = arith.constant 0 : i32
    return %arg0, %0, %c0_i32_0, %c0_i32_1 : i32, i32, i32, i32
  }
  func.func @transform_1(%arg0: i32, %arg1: i32) -> (i32, i32, i32, i32) {
    %c1_i32 = arith.constant 1 : i32
    %0 = arith.addi %arg1, %c1_i32 : i32
    %c0_i32 = arith.constant 0 : i32
    %c0_i32_0 = arith.constant 0 : i32
    %c0_i32_1 = arith.constant 0 : i32
    return %arg0, %0, %c0_i32, %c0_i32_0 : i32, i32, i32, i32
  }
  func.func @transform_2(%arg0: i32, %arg1: i32) -> (i32, i32, i32, i32) {
    %c2_i32 = arith.constant 2 : i32
    %0 = arith.addi %arg1, %c2_i32 : i32
    %c0_i32 = arith.constant 0 : i32
    %c0_i32_0 = arith.constant 0 : i32
    %c0_i32_1 = arith.constant 0 : i32
    return %arg0, %0, %c0_i32, %c0_i32_0 : i32, i32, i32, i32
  }
  func.func @transform_3(%arg0: i32, %arg1: i32) -> (i32, i32, i32) {
    %c0_i32 = arith.constant 0 : i32
    %c0_i32_0 = arith.constant 0 : i32
    %c0_i32_1 = arith.constant 0 : i32
    %c0_i32_2 = arith.constant 0 : i32
    return %c0_i32, %c0_i32_0, %c0_i32_1 : i32, i32, i32
  }
  func.func @transform_4(%arg0: i32, %arg1: i32) -> (i32, i32) {
    %c0_i32 = arith.constant 0 : i32
    %c0_i32_0 = arith.constant 0 : i32
    %c0_i32_1 = arith.constant 0 : i32
    return %c0_i32, %c0_i32_0 : i32, i32
  }
  func.func @transform_5(%arg0: i32, %arg1: i32) -> (i32, i32, i32, i32, i32) {
    %c0_i32 = arith.constant 0 : i32
    %c0_i32_0 = arith.constant 0 : i32
    %c0_i32_1 = arith.constant 0 : i32
    %c0_i32_2 = arith.constant 0 : i32
    return %arg0, %arg1, %c0_i32, %c0_i32_0, %c0_i32_1 : i32, i32, i32, i32, i32
  }
}

</mosaic_0001>

<llo_original>
// kernel: tpu_custom_call.1
$region0: #{tpu_custom_call.1}
  #allocation0 [shape = 'u32[]', space=smem, size = 0x4, offset = 0x4, fixed_abs, tag = 'smem constant byte address 0x4 - core index']
  #allocation1 [shape = 'u32[72,128]{1,0:T(1,128)}', space=vmem, size = 0x9000, scoped, tag = 'internal scratch']
  %s0 = inlined_call_operand.vmem [shape: bf16[1,4,110,4], index: 0, kind: input, shape index: {}]
  %s1 = inlined_call_operand.vmem [shape: bf16[1,4,110,4], index: 1, kind: input, shape index: {}]
  %s2 = inlined_call_operand.vmem [shape: bf16[1,4,110,4], index: 2, kind: input, shape index: {}]
  %s3 = inlined_call_operand.vmem [shape: bf16[27,4,64], index: 3, kind: input, shape index: {}]
  %s4 = inlined_call_operand.vmem [shape: f32[1,64], index: 4, kind: input, shape index: {}]
  %s5 = inlined_call_operand.hbm [shape: bf16[1,2,8,8,64], index: 5, kind: output, shape index: {}]
  %s6 = sld [smem:[#allocation0]]
  $region53: #{tpu_custom_call.1} parent=0
    _
  %s8 = ssub.s32 1, %s6
  %s9 = scalar_select 0, %s8, %s6
  $region1: #{tpu_custom_call.1} parent=0
    #allocation2 [shape = 'u8[32768]{0}', space=vmem, size = 0x8000, scoped, tag = 'output window, operand 0']
    #allocation3 [shape = 's32[2]{0}', space=sflag, size = 0x8, scoped, tag = 'scoped memory for tpu_custom_call.1']
    %10 = vsyncpa [#allocation3], 0
    %s11 = scalar_lea.sflag [#allocation3], 1
    %12 = vsyncpa %s11, 0
    loop: start=0, step=1, limit=4
    $region2: #{tpu_custom_call.1} parent=1 // loop_pre_header
      _
    $region3: #{tpu_custom_call.1} parent=1 // loop_header
      %s14 = sphi 0, %s18
      %p15 = scmp.ge.s32.totalorder %s14, 4
      %s21 = sphi 0, %s33
      %s22 = sphi 0, %s29
      %s23 = sphi 0, %s21
      %s24 = sphi 0, %s22
      %s25 = sphi 0, %s23
      %s26 = sphi 0, %s24
      %s38 = sphi 0, %s40
      %s41 = sphi 0, %s38
      %s42 = sphi 0, %s41
      %s58 = sphi 0, %s42
      %s68 = sphi 0, %s70
      %s71 = sphi 0, %s68
      %s72 = sphi 0, %s71
      %s88 = sphi 0, %s72
      %s98 = sphi 0, %s100
      %s101 = sphi 0, %s98
      %s102 = sphi 0, %s101
      %s118 = sphi 0, %s102
      %s122 = sphi 0, %s122
      %s124 = sphi 0, %s122
      %s125 = sphi 0, %s124
      %s139 = sphi 0, %s125
      %s143 = sphi 0, %s143
      %s145 = sphi 0, %s143
      %s146 = sphi 0, %s145
      %s160 = sphi 0, %s146
      %s168 = sphi 0, %s170
      %s171 = sphi 0, %s168
      %s172 = sphi 0, %s171
      %s188 = sphi 0, %s172
    $region4: #{tpu_custom_call.1} parent=1 // loop_header_branch
      %17 = sbr.rel (%p15) target = $region8
    $region5: #{tpu_custom_call.1} parent=1 // loop_body
      %s19 = ssub.s32 %s14, 1
      %s20 = ssub.s32 %s14, 2
      %s27 = sadd.s32 1, %s22
      %p28 = scmp.ge.s32.totalorder %s27, 2
      %s29 = scalar_select %p28, 0, %s27
      %s30 = sadd.s32 1, %s21
      %s31 = scalar_select %p28, %s30, %s21
      %p32 = scmp.ge.s32.totalorder %s31, 1
      %s33 = scalar_select %p32, 0, %s31
      %s34 = ssub.s32 %s21, %s33
      %s35 = ssub.s32 %s22, %s29
      %s36 = sor.u32 %s34, %s35
      %p37 = scmp.eq.s32.totalorder %s36, 0
      %s39 = sadd.s32 %s38, 1
      %s40 = scalar_select %p37, %s38, %s39
      %p43 = pneg %p37
      %p44 = scmp.eq.s32.totalorder %s14, 1
      %p45 = por %p43, %p44
      %p46 = scmp.ne.s32.totalorder %s38, %s41
      %p47 = scmp.eq.s32.totalorder %s14, 0
      %p48 = por %p46, %p47
      %p49 = scmp.ne.s32.totalorder %s38, %s41
      %p50 = scmp.eq.s32.totalorder %s19, 1
      %p51 = por %p49, %p50
      %p52 = scmp.ne.s32.totalorder %s41, %s42
      %p53 = scmp.eq.s32.totalorder %s19, 0
      %p54 = por %p52, %p53
      %p55 = scmp.ne.s32.totalorder %s41, %s42
      %p56 = scmp.eq.s32.totalorder %s20, 1
      %p57 = por %p55, %p56
      %p59 = scmp.ne.s32.totalorder %s42, %s58
      %p60 = scmp.eq.s32.totalorder %s20, 0
      %p61 = por %p59, %p60
      %s62 = sadd.s32 %s22, 1
      %s63 = sadd.s32 %s29, 1
      %s64 = ssub.s32 %s21, %s33
      %s65 = ssub.s32 %s62, %s63
      %s66 = sor.u32 %s64, %s65
      %p67 = scmp.eq.s32.totalorder %s66, 0
      %s69 = sadd.s32 %s68, 1
      %s70 = scalar_select %p67, %s68, %s69
      %p73 = pneg %p67
      %p74 = scmp.eq.s32.totalorder %s14, 1
      %p75 = por %p73, %p74
      %p76 = scmp.ne.s32.totalorder %s68, %s71
      %p77 = scmp.eq.s32.totalorder %s14, 0
      %p78 = por %p76, %p77
      %p79 = scmp.ne.s32.totalorder %s68, %s71
      %p80 = scmp.eq.s32.totalorder %s19, 1
      %p81 = por %p79, %p80
      %p82 = scmp.ne.s32.totalorder %s71, %s72
      %p83 = scmp.eq.s32.totalorder %s19, 0
      %p84 = por %p82, %p83
      %p85 = scmp.ne.s32.totalorder %s71, %s72
      %p86 = scmp.eq.s32.totalorder %s20, 1
      %p87 = por %p85, %p86
      %p89 = scmp.ne.s32.totalorder %s72, %s88
      %p90 = scmp.eq.s32.totalorder %s20, 0
      %p91 = por %p89, %p90
      %s92 = sadd.s32 %s22, 2
      %s93 = sadd.s32 %s29, 2
      %s94 = ssub.s32 %s21, %s33
      %s95 = ssub.s32 %s92, %s93
      %s96 = sor.u32 %s94, %s95
      %p97 = scmp.eq.s32.totalorder %s96, 0
      %s99 = sadd.s32 %s98, 1
      %s100 = scalar_select %p97, %s98, %s99
      %p103 = pneg %p97
      %p104 = scmp.eq.s32.totalorder %s14, 1
      %p105 = por %p103, %p104
      %p106 = scmp.ne.s32.totalorder %s98, %s101
      %p107 = scmp.eq.s32.totalorder %s14, 0
      %p108 = por %p106, %p107
      %p109 = scmp.ne.s32.totalorder %s98, %s101
      %p110 = scmp.eq.s32.totalorder %s19, 1
      %p111 = por %p109, %p110
      %p112 = scmp.ne.s32.totalorder %s101, %s102
      %p113 = scmp.eq.s32.totalorder %s19, 0
      %p114 = por %p112, %p113
      %p115 = scmp.ne.s32.totalorder %s101, %s102
      %p116 = scmp.eq.s32.totalorder %s20, 1
      %p117 = por %p115, %p116
      %p119 = scmp.ne.s32.totalorder %s102, %s118
      %p120 = scmp.eq.s32.totalorder %s20, 0
      %p121 = por %p119, %p120
      %s123 = sadd.s32 %s122, 1
      %p126 = scmp.eq.s32.totalorder %s14, 1
      %p127 = scmp.ne.s32.totalorder %s122, %s124
      %p128 = scmp.eq.s32.totalorder %s14, 0
      %p129 = por %p127, %p128
      %p130 = scmp.ne.s32.totalorder %s122, %s124
      %p131 = scmp.eq.s32.totalorder %s19, 1
      %p132 = por %p130, %p131
      %p133 = scmp.ne.s32.totalorder %s124, %s125
      %p134 = scmp.eq.s32.totalorder %s19, 0
      %p135 = por %p133, %p134
      %p136 = scmp.ne.s32.totalorder %s124, %s125
      %p137 = scmp.eq.s32.totalorder %s20, 1
      %p138 = por %p136, %p137
      %p140 = scmp.ne.s32.totalorder %s125, %s139
      %p141 = scmp.eq.s32.totalorder %s20, 0
      %p142 = por %p140, %p141
      %s144 = sadd.s32 %s143, 1
      %p147 = scmp.eq.s32.totalorder %s14, 1
      %p148 = scmp.ne.s32.totalorder %s143, %s145
      %p149 = scmp.eq.s32.totalorder %s14, 0
      %p150 = por %p148, %p149
      %p151 = scmp.ne.s32.totalorder %s143, %s145
      %p152 = scmp.eq.s32.totalorder %s19, 1
      %p153 = por %p151, %p152
      %p154 = scmp.ne.s32.totalorder %s145, %s146
      %p155 = scmp.eq.s32.totalorder %s19, 0
      %p156 = por %p154, %p155
      %p157 = scmp.ne.s32.totalorder %s145, %s146
      %p158 = scmp.eq.s32.totalorder %s20, 1
      %p159 = por %p157, %p158
      %p161 = scmp.ne.s32.totalorder %s146, %s160
      %p162 = scmp.eq.s32.totalorder %s20, 0
      %p163 = por %p161, %p162
      %s164 = ssub.s32 %s21, %s33
      %s165 = ssub.s32 %s22, %s29
      %s166 = sor.u32 %s164, %s165
      %p167 = scmp.eq.s32.totalorder %s166, 0
      %s169 = sadd.s32 %s168, 1
      %s170 = scalar_select %p167, %s168, %s169
      %p173 = pneg %p167
      %p174 = scmp.eq.s32.totalorder %s14, 1
      %p175 = por %p173, %p174
      %p176 = scmp.ne.s32.totalorder %s168, %s171
      %p177 = scmp.eq.s32.totalorder %s14, 0
      %p178 = por %p176, %p177
      %p179 = scmp.ne.s32.totalorder %s168, %s171
      %p180 = scmp.eq.s32.totalorder %s19, 1
      %p181 = por %p179, %p180
      %p182 = scmp.ne.s32.totalorder %s171, %s172
      %p183 = scmp.eq.s32.totalorder %s19, 0
      %p184 = por %p182, %p183
      %p185 = scmp.ne.s32.totalorder %s171, %s172
      %p186 = scmp.eq.s32.totalorder %s20, 1
      %p187 = por %p185, %p186
      %p189 = scmp.ne.s32.totalorder %s172, %s188
      %p190 = scmp.eq.s32.totalorder %s20, 0
      %p191 = por %p189, %p190
      %p192 = scmp.le.s32.totalorder 1, %s14
      %p193 = scmp.lt.s32.totalorder %s14, 3
      %p194 = pnand %p192, %p193
      %p195 = pneg %p194
      // Predicated region
      $region9: #{tpu_custom_call.1} parent=5 // pred_check
        _
      $region10: #{tpu_custom_call.1} parent=5 // pred_check_branch
        %197 = sbr.rel (%p194) target = $region12
      $region11: #{tpu_custom_call.1} parent=5 // pred_region
        %s198 = ssub.s32 %s14, 1
        // Predicated region
        $region13: #{tpu_custom_call.1} parent=11 // pred_check
          %p199 = pneg %p135
        $region14: #{tpu_custom_call.1} parent=11 // pred_check_branch
          %201 = sbr.rel (%p199) target = $region16
        $region15: #{tpu_custom_call.1} parent=11 // pred_region
          _
        $region16: #{tpu_custom_call.1} parent=11 // pred_fallthru
          _
        // Predicated region
        $region17: #{tpu_custom_call.1} parent=11 // pred_check
          %p202 = pneg %p156
        $region18: #{tpu_custom_call.1} parent=11 // pred_check_branch
          %204 = sbr.rel (%p202) target = $region20
        $region19: #{tpu_custom_call.1} parent=11 // pred_region
          _
        $region20: #{tpu_custom_call.1} parent=11 // pred_fallthru
          _
      $region12: #{tpu_custom_call.1} parent=5 // pred_fallthru
        _
      %p205 = scmp.lt.s32.totalorder %s14, 2
      // Predicated region
      $region21: #{tpu_custom_call.1} parent=5 // pred_check
        %p206 = pneg %p205
      $region22: #{tpu_custom_call.1} parent=5 // pred_check_branch
        %208 = sbr.rel (%p206) target = $region24
      $region23: #{tpu_custom_call.1} parent=5 // pred_region
        // Predicated region
        $region25: #{tpu_custom_call.1} parent=23 // pred_check
          %p209 = pneg %p48
        $region26: #{tpu_custom_call.1} parent=23 // pred_check_branch
          %211 = sbr.rel (%p209) target = $region28
        $region27: #{tpu_custom_call.1} parent=23 // pred_region
          %p212 = scmp.lt.s32.totalorder %s21, 0
          %s213 = scalar_select %p212, %s21, 0
          %p214 = scmp.lt.s32.totalorder %s22, 3
          %s215 = scalar_select %p214, %s22, 3
          %s216 = smul.addr %s215, 14
          %s217 = smul.addr %s213, 56
          %s218 = sadd.s32 %s216, %s217
          %s219 = smul.addr %s218, 4
          %s220 = scalar_lea.vmem %s0, %s219
        $region28: #{tpu_custom_call.1} parent=23 // pred_fallthru
          _
        // Predicated region
        $region29: #{tpu_custom_call.1} parent=23 // pred_check
          %p221 = pneg %p78
        $region30: #{tpu_custom_call.1} parent=23 // pred_check_branch
          %223 = sbr.rel (%p221) target = $region32
        $region31: #{tpu_custom_call.1} parent=23 // pred_region
          %s224 = sadd.s32 %s22, 1
          %p225 = scmp.lt.s32.totalorder %s21, 0
          %s226 = scalar_select %p225, %s21, 0
          %p227 = scmp.lt.s32.totalorder %s224, 3
          %s228 = scalar_select %p227, %s224, 3
          %s229 = smul.addr %s228, 14
          %s230 = smul.addr %s226, 56
          %s231 = sadd.s32 %s229, %s230
          %s232 = smul.addr %s231, 4
          %s233 = scalar_lea.vmem %s1, %s232
          %s234 = sadd.s32 %s22, 1
        $region32: #{tpu_custom_call.1} parent=23 // pred_fallthru
          _
        // Predicated region
        $region33: #{tpu_custom_call.1} parent=23 // pred_check
          %p235 = pneg %p108
        $region34: #{tpu_custom_call.1} parent=23 // pred_check_branch
          %237 = sbr.rel (%p235) target = $region36
        $region35: #{tpu_custom_call.1} parent=23 // pred_region
          %s238 = sadd.s32 %s22, 2
          %p239 = scmp.lt.s32.totalorder %s21, 0
          %s240 = scalar_select %p239, %s21, 0
          %p241 = scmp.lt.s32.totalorder %s238, 3
          %s242 = scalar_select %p241, %s238, 3
          %s243 = smul.addr %s242, 14
          %s244 = smul.addr %s240, 56
          %s245 = sadd.s32 %s243, %s244
          %s246 = smul.addr %s245, 4
          %s247 = scalar_lea.vmem %s2, %s246
          %s248 = sadd.s32 %s22, 2
        $region36: #{tpu_custom_call.1} parent=23 // pred_fallthru
          _
      $region24: #{tpu_custom_call.1} parent=5 // pred_fallthru
        _
      %p249 = scmp.le.s32.totalorder 1, %s14
      %p250 = scmp.lt.s32.totalorder %s14, 3
      %p251 = pnand %p249, %p250
      %p252 = pneg %p251
      // Predicated region
      $region37: #{tpu_custom_call.1} parent=5 // pred_check
        _
      $region38: #{tpu_custom_call.1} parent=5 // pred_check_branch
        %254 = sbr.rel (%p251) target = $region40
      $region39: #{tpu_custom_call.1} parent=5 // pred_region
        %s255 = ssub.s32 %s14, 1
        %p256 = scmp.lt.s32.totalorder %s23, 0
        %s257 = scalar_select %p256, %s23, 0
        %p258 = scmp.lt.s32.totalorder %s24, 3
        %s259 = scalar_select %p258, %s24, 3
        %s260 = smul.addr %s259, 14
        %s261 = smul.addr %s257, 56
        %s262 = sadd.s32 %s260, %s261
        %s263 = smul.addr %s262, 4
        %s264 = scalar_lea.vmem %s0, %s263
        %p265 = pneg %p54
        %p266 = pneg %p51
        %s267 = sadd.s32 %s24, 1
        %p268 = scmp.lt.s32.totalorder %s23, 0
        %s269 = scalar_select %p268, %s23, 0
        %p270 = scmp.lt.s32.totalorder %s267, 3
        %s271 = scalar_select %p270, %s267, 3
        %s272 = smul.addr %s271, 14
        %s273 = smul.addr %s269, 56
        %s274 = sadd.s32 %s272, %s273
        %s275 = smul.addr %s274, 4
        %s276 = scalar_lea.vmem %s1, %s275
        %p277 = pneg %p84
        %p278 = pneg %p81
        %s279 = sadd.s32 %s24, 2
        %p280 = scmp.lt.s32.totalorder %s23, 0
        %s281 = scalar_select %p280, %s23, 0
        %p282 = scmp.lt.s32.totalorder %s279, 3
        %s283 = scalar_select %p282, %s279, 3
        %s284 = smul.addr %s283, 14
        %s285 = smul.addr %s281, 56
        %s286 = sadd.s32 %s284, %s285
        %s287 = smul.addr %s286, 4
        %s288 = scalar_lea.vmem %s2, %s287
        %p289 = pneg %p114
        %p290 = pneg %p111
        %p291 = pneg %p135
        %p292 = pneg %p132
        %p293 = pneg %p156
        %p294 = pneg %p153
        %p295 = pneg %p184
        %p296 = pneg %p181
        %s297 = sand.u32 %s171, 1
        %s298 = scalar_lea.sflag [#allocation3], %s297
        %s299 = sand.u32 %s171, 1
        %s300 = smul.addr %s299, 32
        %s301 = scalar_lea.vmem [#allocation2], %s300
        %p302 = scmp.lt.s32.totalorder %s23, 0
        %s303 = scalar_select %p302, %s23, 0
        %p304 = scmp.lt.s32.totalorder %s24, 3
        %s305 = scalar_select %p304, %s24, 3
        %s306 = smul.addr %s305, 14
        %s307 = smul.addr %s303, 56
        %s308 = sadd.s32 %s306, %s307
        %s309 = smul.addr %s308, 4
        %s310 = scalar_lea.vmem %s0, %s309
        %s311 = sadd.s32 %s24, 1
        %p312 = scmp.lt.s32.totalorder %s23, 0
        %s313 = scalar_select %p312, %s23, 0
        %p314 = scmp.lt.s32.totalorder %s311, 3
        %s315 = scalar_select %p314, %s311, 3
        %s316 = smul.addr %s315, 14
        %s317 = smul.addr %s313, 56
        %s318 = sadd.s32 %s316, %s317
        %s319 = smul.addr %s318, 4
        %s320 = scalar_lea.vmem %s1, %s319
        %s321 = sadd.s32 %s24, 1
        %s322 = sadd.s32 %s24, 2
        %p323 = scmp.lt.s32.totalorder %s23, 0
        %s324 = scalar_select %p323, %s23, 0
        %p325 = scmp.lt.s32.totalorder %s322, 3
        %s326 = scalar_select %p325, %s322, 3
        %s327 = smul.addr %s326, 14
        %s328 = smul.addr %s324, 56
        %s329 = sadd.s32 %s327, %s328
        %s330 = smul.addr %s329, 4
        %s331 = scalar_lea.vmem %s2, %s330
        %s332 = sadd.s32 %s24, 2
        %v334 = vld [vmem:[%s310] sm:$0xf]
        %v335 = vld [vmem:[%s310 + $0x4] sm:$0xf]
        %v336 = vld [vmem:[%s310 + $0x8] sm:$0xf]
        %v337 = vld [vmem:[%s310 + $0xc] sm:$0xf]
        %v338 = vld [vmem:[%s310 + $0x10] sm:$0xf]
        %v339 = vld [vmem:[%s310 + $0x14] sm:$0xf]
        %v340 = vld [vmem:[%s310 + $0x18] sm:$0xf]
        %v341 = vld [vmem:[%s310 + $0x1c] sm:$0xf]
        %v342 = vld [vmem:[%s310 + $0x20] sm:$0xf]
        %v343 = vld [vmem:[%s310 + $0x24] sm:$0xf]
        %v344 = vld [vmem:[%s310 + $0x28] sm:$0xf]
        %v345 = vld [vmem:[%s310 + $0x2c] sm:$0xf]
        %v346 = vld [vmem:[%s310 + $0x30] sm:$0xf]
        %v347 = vld [vmem:[%s3] sm:$0x3]
        %s348 = scalar_lea.vmem %s3, 2
        %v349 = vld [vmem:[%s348] sm:$0x3]
        %v361 = vunpack.c.l.b16 %v334
        %v362 = vunpack.c.l.b16 %v335
        %v363 = vunpack.c.l.b16 %v336
        %v364 = vunpack.c.l.b16 %v337
        %v365 = vunpack.c.l.b16 %v338
        %v366 = vunpack.c.l.b16 %v339
        %v367 = vunpack.c.l.b16 %v340
        %v368 = vunpack.c.l.b16 %v341
        %v369 = vunpack.c.l.b16 %v342
        %v370 = vunpack.c.l.b16 %v343
        %v371 = vunpack.c.l.b16 %v344
        %v372 = vpack.c.b16 %v362, %v361
        %v373 = vpack.c.b16 %v364, %v363
        %v374 = vpack.c.b16 %v366, %v365
        %v375 = vpack.c.b16 %v368, %v367
        %v376 = vpack.c.b16 %v370, %v369
        %v377 = vpack.c.b16 %v371, %v371
        %vm378 = vsmask.f32 7424
        %v380 = vshrl.u32 %v372, 16
        %v382 = vshll.u32 %v372, 16
        %v384 = vrot.slane %v382, 1
        %v385 = vor.u32 %v380, %v384
        %v387 = vshll.u32 %v373, 16
        %v389 = vrot.slane %v387, 1
        %v390 = vsel %vm378, %v385, %v389
        %v391 = vshrl.u32 %v373, 16
        %v393 = vor.u32 %v391, %v389
        %v395 = vshll.u32 %v374, 16
        %v397 = vrot.slane %v395, 1
        %v398 = vsel %vm378, %v393, %v397
        %v399 = vshrl.u32 %v374, 16
        %v401 = vor.u32 %v399, %v397
        %v403 = vshll.u32 %v375, 16
        %v405 = vrot.slane %v403, 1
        %v406 = vsel %vm378, %v401, %v405
        %v407 = vshrl.u32 %v375, 16
        %v409 = vor.u32 %v407, %v405
        %v411 = vshll.u32 %v376, 16
        %v413 = vrot.slane %v411, 1
        %v414 = vsel %vm378, %v409, %v413
        %v415 = vshrl.u32 %v376, 16
        %v417 = vor.u32 %v415, %v413
        %v419 = vshll.u32 %v377, 16
        %v421 = vrot.slane %v419, 1
        %v422 = vsel %vm378, %v417, %v421
        %vm423 = vcmask 31744
        %v425 = vsel %vm423, %v390, 0
        %v428 = vsel %vm423, %v398, 0
        %v431 = vsel %vm423, %v406, 0
        %v434 = vsel %vm423, %v414, 0
        %v437 = vsel %vm423, %v422, 0
        %vm439 = vcmask 1041408
        %v441 = vsel %vm439, %v349, 0
        %443 = vmatpush.bf16.msra.mxu0 0
        %444 = vmatpush.bf16.msra.mxu0 0
        %445 = vmatpush.bf16.msra.mxu0 0
        %446 = vmatpush.bf16.msra.mxu0 0
        %447 = vmatpush.bf16.msra.mxu0 0
        %448 = vmatpush.bf16.msra.mxu0 0
        %449 = vmatpush.bf16.msra.mxu0 0
        %450 = vmatpush.bf16.msra.mxu0 %v441
        %451 = vmatmul.bf16.gmra.mxu0 %v425
        %v452 = vpop.f32.mrf.mxu0
        %v453 = vadd.f32 0.0, %v452
        %v454 = vpop.f32.mrf.mxu0
        %v455 = vadd.f32 0.0, %v454
        %456 = vmatmul.bf16.gmra.mxu0 %v428
        %v457 = vpop.f32.mrf.mxu0
        %v458 = vadd.f32 0.0, %v457
        %v459 = vpop.f32.mrf.mxu0
        %v460 = vadd.f32 0.0, %v459
        %461 = vmatmul.bf16.gmra.mxu0 %v431
        %v462 = vpop.f32.mrf.mxu0
        %v463 = vadd.f32 0.0, %v462
        %v464 = vpop.f32.mrf.mxu0
        %v465 = vadd.f32 0.0, %v464
        %466 = vmatmul.bf16.gmra.mxu0 %v434
        %v467 = vpop.f32.mrf.mxu0
        %v468 = vadd.f32 0.0, %v467
        %v469 = vpop.f32.mrf.mxu0
        %v470 = vadd.f32 0.0, %v469
        %471 = vmatmul.bf16.gmra.mxu0 %v437
        %v472 = vpop.f32.mrf.mxu0
        %v473 = vadd.f32 0.0, %v472
        %v474 = vpop.f32.mrf.mxu0
        %v475 = vadd.f32 0.0, %v474
        %476 = vdwg.mxu0
        %v477 = vsel %vm423, %v372, 0
        %v479 = vsel %vm423, %v373, 0
        %v481 = vsel %vm423, %v374, 0
        %v483 = vsel %vm423, %v375, 0
        %v485 = vsel %vm423, %v376, 0
        %v488 = vsel %vm439, %v347, 0
        %490 = vmatpush.bf16.msra.mxu0 0
        %491 = vmatpush.bf16.msra.mxu0 0
        %492 = vmatpush.bf16.msra.mxu0 0
        %493 = vmatpush.bf16.msra.mxu0 0
        %494 = vmatpush.bf16.msra.mxu0 0
        %495 = vmatpush.bf16.msra.mxu0 0
        %496 = vmatpush.bf16.msra.mxu0 0
        %497 = vmatpush.bf16.msra.mxu0 %v488
        %498 = vmatmul.bf16.gmra.mxu0 %v477
        %v499 = vpop.f32.mrf.mxu0
        %v500 = vadd.f32 %v453, %v499
        %v501 = vpop.f32.mrf.mxu0
        %v502 = vadd.f32 %v455, %v501
        %503 = vmatmul.bf16.gmra.mxu0 %v479
        %v504 = vpop.f32.mrf.mxu0
        %v505 = vadd.f32 %v458, %v504
        %v506 = vpop.f32.mrf.mxu0
        %v507 = vadd.f32 %v460, %v506
        %508 = vmatmul.bf16.gmra.mxu0 %v481
        %v509 = vpop.f32.mrf.mxu0
        %v510 = vadd.f32 %v463, %v509
        %v511 = vpop.f32.mrf.mxu0
        %v512 = vadd.f32 %v465, %v511
        %513 = vmatmul.bf16.gmra.mxu0 %v483
        %v514 = vpop.f32.mrf.mxu0
        %v515 = vadd.f32 %v468, %v514
        %v516 = vpop.f32.mrf.mxu0
        %v517 = vadd.f32 %v470, %v516
        %518 = vmatmul.bf16.gmra.mxu0 %v485
        %v519 = vpop.f32.mrf.mxu0
        %v520 = vadd.f32 %v473, %v519
        %v521 = vpop.f32.mrf.mxu0
        %v522 = vadd.f32 %v475, %v521
        %523 = vdwg.mxu0
        %s524 = scalar_lea.vmem %s3, 4
        %v525 = vld [vmem:[%s524] sm:$0x3]
        %vm526 = vcmask 1046528
        %v527 = vrot.slane %v372, 1
        %v528 = vrot.slane %v373, 1
        %v529 = vsel %vm526, %v527, %v528
        %v530 = vrot.slane %v374, 1
        %v531 = vsel %vm526, %v528, %v530
        %v532 = vrot.slane %v375, 1
        %v533 = vsel %vm526, %v530, %v532
        %v534 = vrot.slane %v376, 1
        %v535 = vsel %vm526, %v532, %v534
        %v536 = vrot.slane %v377, 1
        %v537 = vsel %vm526, %v534, %v536
        %v539 = vsel %vm423, %v529, 0
        %v542 = vsel %vm423, %v531, 0
        %v545 = vsel %vm423, %v533, 0
        %v548 = vsel %vm423, %v535, 0
        %v551 = vsel %vm423, %v537, 0
        %v554 = vsel %vm439, %v525, 0
        %556 = vmatpush.bf16.msra.mxu0 0
        %557 = vmatpush.bf16.msra.mxu0 0
        %558 = vmatpush.bf16.msra.mxu0 0
        %559 = vmatpush.bf16.msra.mxu0 0
        %560 = vmatpush.bf16.msra.mxu0 0
        %561 = vmatpush.bf16.msra.mxu0 0
        %562 = vmatpush.bf16.msra.mxu0 0
        %563 = vmatpush.bf16.msra.mxu0 %v554
        %564 = vmatmul.bf16.gmra.mxu0 %v539
        %v565 = vpop.f32.mrf.mxu0
        %v566 = vadd.f32 0.0, %v565
        %v567 = vpop.f32.mrf.mxu0
        %v568 = vadd.f32 0.0, %v567
        %569 = vmatmul.bf16.gmra.mxu0 %v542
        %v570 = vpop.f32.mrf.mxu0
        %v571 = vadd.f32 0.0, %v570
        %v572 = vpop.f32.mrf.mxu0
        %v573 = vadd.f32 0.0, %v572
        %574 = vmatmul.bf16.gmra.mxu0 %v545
        %v575 = vpop.f32.mrf.mxu0
        %v576 = vadd.f32 0.0, %v575
        %v577 = vpop.f32.mrf.mxu0
        %v578 = vadd.f32 0.0, %v577
        %579 = vmatmul.bf16.gmra.mxu0 %v548
        %v580 = vpop.f32.mrf.mxu0
        %v581 = vadd.f32 0.0, %v580
        %v582 = vpop.f32.mrf.mxu0
        %v583 = vadd.f32 0.0, %v582
        %584 = vmatmul.bf16.gmra.mxu0 %v551
        %v585 = vpop.f32.mrf.mxu0
        %v586 = vadd.f32 0.0, %v585
        %v587 = vpop.f32.mrf.mxu0
        %v588 = vadd.f32 0.0, %v587
        %589 = vdwg.mxu0
        %v590 = vadd.f32 %v500, %v566
        %v591 = vadd.f32 %v502, %v568
        %v592 = vadd.f32 %v505, %v571
        %v593 = vadd.f32 %v507, %v573
        %v594 = vadd.f32 %v510, %v576
        %v595 = vadd.f32 %v512, %v578
        %v596 = vadd.f32 %v515, %v581
        %v597 = vadd.f32 %v517, %v583
        %v598 = vadd.f32 %v520, %v586
        %v599 = vadd.f32 %v522, %v588
        %s600 = scalar_lea.vmem %s3, 6
        %v601 = vld [vmem:[%s600] sm:$0x3]
        %v603 = vunpack.c.l.b16 %v345
        %v604 = vpack.c.b16 %v363, %v362
        %v605 = vpack.c.b16 %v365, %v364
        %v606 = vpack.c.b16 %v367, %v366
        %v607 = vpack.c.b16 %v369, %v368
        %v608 = vpack.c.b16 %v371, %v370
        %v609 = vpack.c.b16 %v603, %v603
        %v610 = vrot.slane %v604, 1
        %v611 = vrot.slane %v605, 1
        %v612 = vsel %vm526, %v610, %v611
        %v613 = vrot.slane %v606, 1
        %v614 = vsel %vm526, %v611, %v613
        %v615 = vrot.slane %v607, 1
        %v616 = vsel %vm526, %v613, %v615
        %v617 = vrot.slane %v608, 1
        %v618 = vsel %vm526, %v615, %v617
        %v619 = vrot.slane %v609, 1
        %v620 = vsel %vm526, %v617, %v619
        %v622 = vsel %vm423, %v612, 0
        %v625 = vsel %vm423, %v614, 0
        %v628 = vsel %vm423, %v616, 0
        %v631 = vsel %vm423, %v618, 0
        %v634 = vsel %vm423, %v620, 0
        %v637 = vsel %vm439, %v601, 0
        %639 = vmatpush.bf16.msra.mxu0 0
        %640 = vmatpush.bf16.msra.mxu0 0
        %641 = vmatpush.bf16.msra.mxu0 0
        %642 = vmatpush.bf16.msra.mxu0 0
        %643 = vmatpush.bf16.msra.mxu0 0
        %644 = vmatpush.bf16.msra.mxu0 0
        %645 = vmatpush.bf16.msra.mxu0 0
        %646 = vmatpush.bf16.msra.mxu0 %v637
        %647 = vmatmul.bf16.gmra.mxu0 %v622
        %v648 = vpop.f32.mrf.mxu0
        %v649 = vadd.f32 0.0, %v648
        %v650 = vpop.f32.mrf.mxu0
        %v651 = vadd.f32 0.0, %v650
        %652 = vmatmul.bf16.gmra.mxu0 %v625
        %v653 = vpop.f32.mrf.mxu0
        %v654 = vadd.f32 0.0, %v653
        %v655 = vpop.f32.mrf.mxu0
        %v656 = vadd.f32 0.0, %v655
        %657 = vmatmul.bf16.gmra.mxu0 %v628
        %v658 = vpop.f32.mrf.mxu0
        %v659 = vadd.f32 0.0, %v658
        %v660 = vpop.f32.mrf.mxu0
        %v661 = vadd.f32 0.0, %v660
        %662 = vmatmul.bf16.gmra.mxu0 %v631
        %v663 = vpop.f32.mrf.mxu0
        %v664 = vadd.f32 0.0, %v663
        %v665 = vpop.f32.mrf.mxu0
        %v666 = vadd.f32 0.0, %v665
        %667 = vmatmul.bf16.gmra.mxu0 %v634
        %v668 = vpop.f32.mrf.mxu0
        %v669 = vadd.f32 0.0, %v668
        %v670 = vpop.f32.mrf.mxu0
        %v671 = vadd.f32 0.0, %v670
        %672 = vdwg.mxu0
        %v673 = vadd.f32 %v590, %v649
        %v674 = vadd.f32 %v591, %v651
        %v675 = vadd.f32 %v592, %v654
        %v676 = vadd.f32 %v593, %v656
        %v677 = vadd.f32 %v594, %v659
        %v678 = vadd.f32 %v595, %v661
        %v679 = vadd.f32 %v596, %v664
        %v680 = vadd.f32 %v597, %v666
        %v681 = vadd.f32 %v598, %v669
        %v682 = vadd.f32 %v599, %v671
        %s683 = scalar_lea.vmem %s3, 8
        %v684 = vld [vmem:[%s683] sm:$0x3]
        %vm685 = vsmask.f32 6400
        %v687 = vshrl.u32 %v604, 16
        %v689 = vrot.slane %v687, 1
        %v690 = vshll.u32 %v604, 16
        %v692 = vrot.slane %v690, 2
        %v693 = vor.u32 %v689, %v692
        %v695 = vshrl.u32 %v605, 16
        %v697 = vrot.slane %v695, 1
        %v698 = vshll.u32 %v605, 16
        %v700 = vrot.slane %v698, 2
        %v701 = vor.u32 %v697, %v700
        %v702 = vsel %vm685, %v693, %v701
        %v704 = vshrl.u32 %v606, 16
        %v706 = vrot.slane %v704, 1
        %v707 = vshll.u32 %v606, 16
        %v709 = vrot.slane %v707, 2
        %v710 = vor.u32 %v706, %v709
        %v711 = vsel %vm685, %v701, %v710
        %v713 = vshrl.u32 %v607, 16
        %v715 = vrot.slane %v713, 1
        %v716 = vshll.u32 %v607, 16
        %v718 = vrot.slane %v716, 2
        %v719 = vor.u32 %v715, %v718
        %v720 = vsel %vm685, %v710, %v719
        %v722 = vshrl.u32 %v608, 16
        %v724 = vrot.slane %v722, 1
        %v725 = vshll.u32 %v608, 16
        %v727 = vrot.slane %v725, 2
        %v728 = vor.u32 %v724, %v727
        %v729 = vsel %vm685, %v719, %v728
        %v731 = vshrl.u32 %v609, 16
        %v733 = vrot.slane %v731, 1
        %v734 = vshll.u32 %v609, 16
        %v736 = vrot.slane %v734, 2
        %v737 = vor.u32 %v733, %v736
        %v738 = vsel %vm685, %v728, %v737
        %v740 = vsel %vm423, %v702, 0
        %v743 = vsel %vm423, %v711, 0
        %v746 = vsel %vm423, %v720, 0
        %v749 = vsel %vm423, %v729, 0
        %v752 = vsel %vm423, %v738, 0
        %v755 = vsel %vm439, %v684, 0
        %757 = vmatpush.bf16.msra.mxu0 0
        %758 = vmatpush.bf16.msra.mxu0 0
        %759 = vmatpush.bf16.msra.mxu0 0
        %760 = vmatpush.bf16.msra.mxu0 0
        %761 = vmatpush.bf16.msra.mxu0 0
        %762 = vmatpush.bf16.msra.mxu0 0
        %763 = vmatpush.bf16.msra.mxu0 0
        %764 = vmatpush.bf16.msra.mxu0 %v755
        %765 = vmatmul.bf16.gmra.mxu0 %v740
        %v766 = vpop.f32.mrf.mxu0
        %v767 = vadd.f32 0.0, %v766
        %v768 = vpop.f32.mrf.mxu0
        %v769 = vadd.f32 0.0, %v768
        %770 = vmatmul.bf16.gmra.mxu0 %v743
        %v771 = vpop.f32.mrf.mxu0
        %v772 = vadd.f32 0.0, %v771
        %v773 = vpop.f32.mrf.mxu0
        %v774 = vadd.f32 0.0, %v773
        %775 = vmatmul.bf16.gmra.mxu0 %v746
        %v776 = vpop.f32.mrf.mxu0
        %v777 = vadd.f32 0.0, %v776
        %v778 = vpop.f32.mrf.mxu0
        %v779 = vadd.f32 0.0, %v778
        %780 = vmatmul.bf16.gmra.mxu0 %v749
        %v781 = vpop.f32.mrf.mxu0
        %v782 = vadd.f32 0.0, %v781
        %v783 = vpop.f32.mrf.mxu0
        %v784 = vadd.f32 0.0, %v783
        %785 = vmatmul.bf16.gmra.mxu0 %v752
        %v786 = vpop.f32.mrf.mxu0
        %v787 = vadd.f32 0.0, %v786
        %v788 = vpop.f32.mrf.mxu0
        %v789 = vadd.f32 0.0, %v788
        %790 = vdwg.mxu0
        %v791 = vadd.f32 %v673, %v767
        %v792 = vadd.f32 %v674, %v769
        %v793 = vadd.f32 %v675, %v772
        %v794 = vadd.f32 %v676, %v774
        %v795 = vadd.f32 %v677, %v777
        %v796 = vadd.f32 %v678, %v779
        %v797 = vadd.f32 %v679, %v782
        %v798 = vadd.f32 %v680, %v784
        %v799 = vadd.f32 %v681, %v787
        %v800 = vadd.f32 %v682, %v789
        %s801 = scalar_lea.vmem %s3, 10
        %v802 = vld [vmem:[%s801] sm:$0x3]
        %vm803 = vcmask 1045504
        %v804 = vrot.slane %v604, 2
        %v805 = vrot.slane %v605, 2
        %v806 = vsel %vm803, %v804, %v805
        %v807 = vrot.slane %v606, 2
        %v808 = vsel %vm803, %v805, %v807
        %v809 = vrot.slane %v607, 2
        %v810 = vsel %vm803, %v807, %v809
        %v811 = vrot.slane %v608, 2
        %v812 = vsel %vm803, %v809, %v811
        %v813 = vrot.slane %v609, 2
        %v814 = vsel %vm803, %v811, %v813
        %v816 = vsel %vm423, %v806, 0
        %v819 = vsel %vm423, %v808, 0
        %v822 = vsel %vm423, %v810, 0
        %v825 = vsel %vm423, %v812, 0
        %v828 = vsel %vm423, %v814, 0
        %v831 = vsel %vm439, %v802, 0
        %833 = vmatpush.bf16.msra.mxu0 0
        %834 = vmatpush.bf16.msra.mxu0 0
        %835 = vmatpush.bf16.msra.mxu0 0
        %836 = vmatpush.bf16.msra.mxu0 0
        %837 = vmatpush.bf16.msra.mxu0 0
        %838 = vmatpush.bf16.msra.mxu0 0
        %839 = vmatpush.bf16.msra.mxu0 0
        %840 = vmatpush.bf16.msra.mxu0 %v831
        %841 = vmatmul.bf16.gmra.mxu0 %v816
        %v842 = vpop.f32.mrf.mxu0
        %v843 = vadd.f32 0.0, %v842
        %v844 = vpop.f32.mrf.mxu0
        %v845 = vadd.f32 0.0, %v844
        %846 = vmatmul.bf16.gmra.mxu0 %v819
        %v847 = vpop.f32.mrf.mxu0
        %v848 = vadd.f32 0.0, %v847
        %v849 = vpop.f32.mrf.mxu0
        %v850 = vadd.f32 0.0, %v849
        %851 = vmatmul.bf16.gmra.mxu0 %v822
        %v852 = vpop.f32.mrf.mxu0
        %v853 = vadd.f32 0.0, %v852
        %v854 = vpop.f32.mrf.mxu0
        %v855 = vadd.f32 0.0, %v854
        %856 = vmatmul.bf16.gmra.mxu0 %v825
        %v857 = vpop.f32.mrf.mxu0
        %v858 = vadd.f32 0.0, %v857
        %v859 = vpop.f32.mrf.mxu0
        %v860 = vadd.f32 0.0, %v859
        %861 = vmatmul.bf16.gmra.mxu0 %v828
        %v862 = vpop.f32.mrf.mxu0
        %v863 = vadd.f32 0.0, %v862
        %v864 = vpop.f32.mrf.mxu0
        %v865 = vadd.f32 0.0, %v864
        %866 = vdwg.mxu0
        %v867 = vadd.f32 %v791, %v843
        %v868 = vadd.f32 %v792, %v845
        %v869 = vadd.f32 %v793, %v848
        %v870 = vadd.f32 %v794, %v850
        %v871 = vadd.f32 %v795, %v853
        %v872 = vadd.f32 %v796, %v855
        %v873 = vadd.f32 %v797, %v858
        %v874 = vadd.f32 %v798, %v860
        %v875 = vadd.f32 %v799, %v863
        %v876 = vadd.f32 %v800, %v865
        %s877 = scalar_lea.vmem %s3, 12
        %v878 = vld [vmem:[%s877] sm:$0x3]
        %v880 = vunpack.c.l.b16 %v346
        %v881 = vpack.c.b16 %v603, %v371
        %v882 = vpack.c.b16 %v880, %v880
        %v883 = vrot.slane %v373, 2
        %v884 = vrot.slane %v374, 2
        %v885 = vsel %vm803, %v883, %v884
        %v886 = vrot.slane %v375, 2
        %v887 = vsel %vm803, %v884, %v886
        %v888 = vrot.slane %v376, 2
        %v889 = vsel %vm803, %v886, %v888
        %v890 = vrot.slane %v881, 2
        %v891 = vsel %vm803, %v888, %v890
        %v892 = vrot.slane %v882, 2
        %v893 = vsel %vm803, %v890, %v892
        %v895 = vsel %vm423, %v885, 0
        %v898 = vsel %vm423, %v887, 0
        %v901 = vsel %vm423, %v889, 0
        %v904 = vsel %vm423, %v891, 0
        %v907 = vsel %vm423, %v893, 0
        %v910 = vsel %vm439, %v878, 0
        %912 = vmatpush.bf16.msra.mxu0 0
        %913 = vmatpush.bf16.msra.mxu0 0
        %914 = vmatpush.bf16.msra.mxu0 0
        %915 = vmatpush.bf16.msra.mxu0 0
        %916 = vmatpush.bf16.msra.mxu0 0
        %917 = vmatpush.bf16.msra.mxu0 0
        %918 = vmatpush.bf16.msra.mxu0 0
        %919 = vmatpush.bf16.msra.mxu0 %v910
        %920 = vmatmul.bf16.gmra.mxu0 %v895
        %v921 = vpop.f32.mrf.mxu0
        %v922 = vadd.f32 0.0, %v921
        %v923 = vpop.f32.mrf.mxu0
        %v924 = vadd.f32 0.0, %v923
        %925 = vmatmul.bf16.gmra.mxu0 %v898
        %v926 = vpop.f32.mrf.mxu0
        %v927 = vadd.f32 0.0, %v926
        %v928 = vpop.f32.mrf.mxu0
        %v929 = vadd.f32 0.0, %v928
        %930 = vmatmul.bf16.gmra.mxu0 %v901
        %v931 = vpop.f32.mrf.mxu0
        %v932 = vadd.f32 0.0, %v931
        %v933 = vpop.f32.mrf.mxu0
        %v934 = vadd.f32 0.0, %v933
        %935 = vmatmul.bf16.gmra.mxu0 %v904
        %v936 = vpop.f32.mrf.mxu0
        %v937 = vadd.f32 0.0, %v936
        %v938 = vpop.f32.mrf.mxu0
        %v939 = vadd.f32 0.0, %v938
        %940 = vmatmul.bf16.gmra.mxu0 %v907
        %v941 = vpop.f32.mrf.mxu0
        %v942 = vadd.f32 0.0, %v941
        %v943 = vpop.f32.mrf.mxu0
        %v944 = vadd.f32 0.0, %v943
        %945 = vdwg.mxu0
        %v946 = vadd.f32 %v867, %v922
        %v947 = vadd.f32 %v868, %v924
        %v948 = vadd.f32 %v869, %v927
        %v949 = vadd.f32 %v870, %v929
        %v950 = vadd.f32 %v871, %v932
        %v951 = vadd.f32 %v872, %v934
        %v952 = vadd.f32 %v873, %v937
        %v953 = vadd.f32 %v874, %v939
        %v954 = vadd.f32 %v875, %v942
        %v955 = vadd.f32 %v876, %v944
        %s956 = scalar_lea.vmem %s3, 14
        %v957 = vld [vmem:[%s956] sm:$0x3]
        %vm958 = vsmask.f32 5376
        %v959 = vrot.slane %v391, 2
        %v960 = vrot.slane %v387, 3
        %v961 = vor.u32 %v959, %v960
        %v962 = vrot.slane %v399, 2
        %v963 = vrot.slane %v395, 3
        %v964 = vor.u32 %v962, %v963
        %v965 = vsel %vm958, %v961, %v964
        %v966 = vrot.slane %v407, 2
        %v967 = vrot.slane %v403, 3
        %v968 = vor.u32 %v966, %v967
        %v969 = vsel %vm958, %v964, %v968
        %v970 = vrot.slane %v415, 2
        %v971 = vrot.slane %v411, 3
        %v972 = vor.u32 %v970, %v971
        %v973 = vsel %vm958, %v968, %v972
        %v975 = vshrl.u32 %v881, 16
        %v977 = vrot.slane %v975, 2
        %v978 = vshll.u32 %v881, 16
        %v980 = vrot.slane %v978, 3
        %v981 = vor.u32 %v977, %v980
        %v982 = vsel %vm958, %v972, %v981
        %v984 = vshrl.u32 %v882, 16
        %v986 = vrot.slane %v984, 2
        %v987 = vshll.u32 %v882, 16
        %v989 = vrot.slane %v987, 3
        %v990 = vor.u32 %v986, %v989
        %v991 = vsel %vm958, %v981, %v990
        %v993 = vsel %vm423, %v965, 0
        %v996 = vsel %vm423, %v969, 0
        %v999 = vsel %vm423, %v973, 0
        %v1002 = vsel %vm423, %v982, 0
        %v1005 = vsel %vm423, %v991, 0
        %v1008 = vsel %vm439, %v957, 0
        %1010 = vmatpush.bf16.msra.mxu0 0
        %1011 = vmatpush.bf16.msra.mxu0 0
        %1012 = vmatpush.bf16.msra.mxu0 0
        %1013 = vmatpush.bf16.msra.mxu0 0
        %1014 = vmatpush.bf16.msra.mxu0 0
        %1015 = vmatpush.bf16.msra.mxu0 0
        %1016 = vmatpush.bf16.msra.mxu0 0
        %1017 = vmatpush.bf16.msra.mxu0 %v1008
        %1018 = vmatmul.bf16.gmra.mxu0 %v993
        %v1019 = vpop.f32.mrf.mxu0
        %v1020 = vadd.f32 0.0, %v1019
        %v1021 = vpop.f32.mrf.mxu0
        %v1022 = vadd.f32 0.0, %v1021
        %1023 = vmatmul.bf16.gmra.mxu0 %v996
        %v1024 = vpop.f32.mrf.mxu0
        %v1025 = vadd.f32 0.0, %v1024
        %v1026 = vpop.f32.mrf.mxu0
        %v1027 = vadd.f32 0.0, %v1026
        %1028 = vmatmul.bf16.gmra.mxu0 %v999
        %v1029 = vpop.f32.mrf.mxu0
        %v1030 = vadd.f32 0.0, %v1029
        %v1031 = vpop.f32.mrf.mxu0
        %v1032 = vadd.f32 0.0, %v1031
        %1033 = vmatmul.bf16.gmra.mxu0 %v1002
        %v1034 = vpop.f32.mrf.mxu0
        %v1035 = vadd.f32 0.0, %v1034
        %v1036 = vpop.f32.mrf.mxu0
        %v1037 = vadd.f32 0.0, %v1036
        %1038 = vmatmul.bf16.gmra.mxu0 %v1005
        %v1039 = vpop.f32.mrf.mxu0
        %v1040 = vadd.f32 0.0, %v1039
        %v1041 = vpop.f32.mrf.mxu0
        %v1042 = vadd.f32 0.0, %v1041
        %1043 = vdwg.mxu0
        %v1044 = vadd.f32 %v946, %v1020
        %v1045 = vadd.f32 %v947, %v1022
        %v1046 = vadd.f32 %v948, %v1025
        %v1047 = vadd.f32 %v949, %v1027
        %v1048 = vadd.f32 %v950, %v1030
        %v1049 = vadd.f32 %v951, %v1032
        %v1050 = vadd.f32 %v952, %v1035
        %v1051 = vadd.f32 %v953, %v1037
        %v1052 = vadd.f32 %v954, %v1040
        %v1053 = vadd.f32 %v955, %v1042
        %s1054 = scalar_lea.vmem %s3, 16
        %v1055 = vld [vmem:[%s1054] sm:$0x3]
        %vm1056 = vcmask 1044480
        %v1057 = vrot.slane %v373, 3
        %v1058 = vrot.slane %v374, 3
        %v1059 = vsel %vm1056, %v1057, %v1058
        %v1060 = vrot.slane %v375, 3
        %v1061 = vsel %vm1056, %v1058, %v1060
        %v1062 = vrot.slane %v376, 3
        %v1063 = vsel %vm1056, %v1060, %v1062
        %v1064 = vrot.slane %v881, 3
        %v1065 = vsel %vm1056, %v1062, %v1064
        %v1066 = vrot.slane %v882, 3
        %v1067 = vsel %vm1056, %v1064, %v1066
        %v1069 = vsel %vm423, %v1059, 0
        %v1072 = vsel %vm423, %v1061, 0
        %v1075 = vsel %vm423, %v1063, 0
        %v1078 = vsel %vm423, %v1065, 0
        %v1081 = vsel %vm423, %v1067, 0
        %v1084 = vsel %vm439, %v1055, 0
        %1086 = vmatpush.bf16.msra.mxu0 0
        %1087 = vmatpush.bf16.msra.mxu0 0
        %1088 = vmatpush.bf16.msra.mxu0 0
        %1089 = vmatpush.bf16.msra.mxu0 0
        %1090 = vmatpush.bf16.msra.mxu0 0
        %1091 = vmatpush.bf16.msra.mxu0 0
        %1092 = vmatpush.bf16.msra.mxu0 0
        %1093 = vmatpush.bf16.msra.mxu0 %v1084
        %1094 = vmatmul.bf16.gmra.mxu0 %v1069
        %v1095 = vpop.f32.mrf.mxu0
        %v1096 = vadd.f32 0.0, %v1095
        %v1097 = vpop.f32.mrf.mxu0
        %v1098 = vadd.f32 0.0, %v1097
        %1099 = vmatmul.bf16.gmra.mxu0 %v1072
        %v1100 = vpop.f32.mrf.mxu0
        %v1101 = vadd.f32 0.0, %v1100
        %v1102 = vpop.f32.mrf.mxu0
        %v1103 = vadd.f32 0.0, %v1102
        %1104 = vmatmul.bf16.gmra.mxu0 %v1075
        %v1105 = vpop.f32.mrf.mxu0
        %v1106 = vadd.f32 0.0, %v1105
        %v1107 = vpop.f32.mrf.mxu0
        %v1108 = vadd.f32 0.0, %v1107
        %1109 = vmatmul.bf16.gmra.mxu0 %v1078
        %v1110 = vpop.f32.mrf.mxu0
        %v1111 = vadd.f32 0.0, %v1110
        %v1112 = vpop.f32.mrf.mxu0
        %v1113 = vadd.f32 0.0, %v1112
        %1114 = vmatmul.bf16.gmra.mxu0 %v1081
        %v1115 = vpop.f32.mrf.mxu0
        %v1116 = vadd.f32 0.0, %v1115
        %v1117 = vpop.f32.mrf.mxu0
        %v1118 = vadd.f32 0.0, %v1117
        %1119 = vdwg.mxu0
        %v1120 = vadd.f32 %v1044, %v1096
        %v1121 = vadd.f32 %v1045, %v1098
        %v1122 = vadd.f32 %v1046, %v1101
        %v1123 = vadd.f32 %v1047, %v1103
        %v1124 = vadd.f32 %v1048, %v1106
        %v1125 = vadd.f32 %v1049, %v1108
        %v1126 = vadd.f32 %v1050, %v1111
        %v1127 = vadd.f32 %v1051, %v1113
        %v1128 = vadd.f32 %v1052, %v1116
        %v1129 = vadd.f32 %v1053, %v1118
        %v1130 = vld [vmem:[%s320] sm:$0xf]
        %v1131 = vld [vmem:[%s320 + $0x4] sm:$0xf]
        %v1132 = vld [vmem:[%s320 + $0x8] sm:$0xf]
        %v1133 = vld [vmem:[%s320 + $0xc] sm:$0xf]
        %v1134 = vld [vmem:[%s320 + $0x10] sm:$0xf]
        %v1135 = vld [vmem:[%s320 + $0x14] sm:$0xf]
        %v1136 = vld [vmem:[%s320 + $0x18] sm:$0xf]
        %v1137 = vld [vmem:[%s320 + $0x1c] sm:$0xf]
        %v1138 = vld [vmem:[%s320 + $0x20] sm:$0xf]
        %v1139 = vld [vmem:[%s320 + $0x24] sm:$0xf]
        %v1140 = vld [vmem:[%s320 + $0x28] sm:$0xf]
        %v1141 = vld [vmem:[%s320 + $0x2c] sm:$0xf]
        %v1142 = vld [vmem:[%s320 + $0x30] sm:$0xf]
        %s1143 = scalar_lea.vmem %s3, 18
        %v1144 = vld [vmem:[%s1143] sm:$0x3]
        %v1155 = vunpack.c.l.b16 %v1130
        %v1156 = vunpack.c.l.b16 %v1131
        %v1157 = vunpack.c.l.b16 %v1132
        %v1158 = vunpack.c.l.b16 %v1133
        %v1159 = vunpack.c.l.b16 %v1134
        %v1160 = vunpack.c.l.b16 %v1135
        %v1161 = vunpack.c.l.b16 %v1136
        %v1162 = vunpack.c.l.b16 %v1137
        %v1163 = vunpack.c.l.b16 %v1138
        %v1164 = vunpack.c.l.b16 %v1139
        %v1165 = vpack.c.b16 %v1156, %v1155
        %v1166 = vpack.c.b16 %v1158, %v1157
        %v1167 = vpack.c.b16 %v1160, %v1159
        %v1168 = vpack.c.b16 %v1162, %v1161
        %v1169 = vpack.c.b16 %v1164, %v1163
        %v1171 = vsel %vm423, %v1165, 0
        %v1174 = vsel %vm423, %v1166, 0
        %v1177 = vsel %vm423, %v1167, 0
        %v1180 = vsel %vm423, %v1168, 0
        %v1183 = vsel %vm423, %v1169, 0
        %v1186 = vsel %vm439, %v1144, 0
        %1188 = vmatpush.bf16.msra.mxu0 0
        %1189 = vmatpush.bf16.msra.mxu0 0
        %1190 = vmatpush.bf16.msra.mxu0 0
        %1191 = vmatpush.bf16.msra.mxu0 0
        %1192 = vmatpush.bf16.msra.mxu0 0
        %1193 = vmatpush.bf16.msra.mxu0 0
        %1194 = vmatpush.bf16.msra.mxu0 0
        %1195 = vmatpush.bf16.msra.mxu0 %v1186
        %1196 = vmatmul.bf16.gmra.mxu0 %v1171
        %v1197 = vpop.f32.mrf.mxu0
        %v1198 = vadd.f32 0.0, %v1197
        %v1199 = vpop.f32.mrf.mxu0
        %v1200 = vadd.f32 0.0, %v1199
        %1201 = vmatmul.bf16.gmra.mxu0 %v1174
        %v1202 = vpop.f32.mrf.mxu0
        %v1203 = vadd.f32 0.0, %v1202
        %v1204 = vpop.f32.mrf.mxu0
        %v1205 = vadd.f32 0.0, %v1204
        %1206 = vmatmul.bf16.gmra.mxu0 %v1177
        %v1207 = vpop.f32.mrf.mxu0
        %v1208 = vadd.f32 0.0, %v1207
        %v1209 = vpop.f32.mrf.mxu0
        %v1210 = vadd.f32 0.0, %v1209
        %1211 = vmatmul.bf16.gmra.mxu0 %v1180
        %v1212 = vpop.f32.mrf.mxu0
        %v1213 = vadd.f32 0.0, %v1212
        %v1214 = vpop.f32.mrf.mxu0
        %v1215 = vadd.f32 0.0, %v1214
        %1216 = vmatmul.bf16.gmra.mxu0 %v1183
        %v1217 = vpop.f32.mrf.mxu0
        %v1218 = vadd.f32 0.0, %v1217
        %v1219 = vpop.f32.mrf.mxu0
        %v1220 = vadd.f32 0.0, %v1219
        %1221 = vdwg.mxu0
        %v1222 = vadd.f32 %v1120, %v1198
        %v1223 = vadd.f32 %v1121, %v1200
        %v1224 = vadd.f32 %v1122, %v1203
        %v1225 = vadd.f32 %v1123, %v1205
        %v1226 = vadd.f32 %v1124, %v1208
        %v1227 = vadd.f32 %v1125, %v1210
        %v1228 = vadd.f32 %v1126, %v1213
        %v1229 = vadd.f32 %v1127, %v1215
        %v1230 = vadd.f32 %v1128, %v1218
        %v1231 = vadd.f32 %v1129, %v1220
        %s1232 = scalar_lea.vmem %s3, 20
        %v1233 = vld [vmem:[%s1232] sm:$0x3]
        %v1235 = vunpack.c.l.b16 %v1140
        %v1236 = vpack.c.b16 %v1235, %v1235
        %v1237 = vshrl.u32 %v1165, 16
        %v1239 = vshll.u32 %v1165, 16
        %v1241 = vrot.slane %v1239, 1
        %v1242 = vor.u32 %v1237, %v1241
        %v1243 = vshll.u32 %v1166, 16
        %v1245 = vrot.slane %v1243, 1
        %v1246 = vsel %vm378, %v1242, %v1245
        %v1247 = vshrl.u32 %v1166, 16
        %v1249 = vor.u32 %v1247, %v1245
        %v1250 = vshll.u32 %v1167, 16
        %v1252 = vrot.slane %v1250, 1
        %v1253 = vsel %vm378, %v1249, %v1252
        %v1254 = vshrl.u32 %v1167, 16
        %v1256 = vor.u32 %v1254, %v1252
        %v1257 = vshll.u32 %v1168, 16
        %v1259 = vrot.slane %v1257, 1
        %v1260 = vsel %vm378, %v1256, %v1259
        %v1261 = vshrl.u32 %v1168, 16
        %v1263 = vor.u32 %v1261, %v1259
        %v1264 = vshll.u32 %v1169, 16
        %v1266 = vrot.slane %v1264, 1
        %v1267 = vsel %vm378, %v1263, %v1266
        %v1268 = vshrl.u32 %v1169, 16
        %v1270 = vor.u32 %v1268, %v1266
        %v1272 = vshll.u32 %v1236, 16
        %v1274 = vrot.slane %v1272, 1
        %v1275 = vsel %vm378, %v1270, %v1274
        %v1277 = vsel %vm423, %v1246, 0
        %v1280 = vsel %vm423, %v1253, 0
        %v1283 = vsel %vm423, %v1260, 0
        %v1286 = vsel %vm423, %v1267, 0
        %v1289 = vsel %vm423, %v1275, 0
        %v1292 = vsel %vm439, %v1233, 0
        %1294 = vmatpush.bf16.msra.mxu0 0
        %1295 = vmatpush.bf16.msra.mxu0 0
        %1296 = vmatpush.bf16.msra.mxu0 0
        %1297 = vmatpush.bf16.msra.mxu0 0
        %1298 = vmatpush.bf16.msra.mxu0 0
        %1299 = vmatpush.bf16.msra.mxu0 0
        %1300 = vmatpush.bf16.msra.mxu0 0
        %1301 = vmatpush.bf16.msra.mxu0 %v1292
        %1302 = vmatmul.bf16.gmra.mxu0 %v1277
        %v1303 = vpop.f32.mrf.mxu0
        %v1304 = vadd.f32 0.0, %v1303
        %v1305 = vpop.f32.mrf.mxu0
        %v1306 = vadd.f32 0.0, %v1305
        %1307 = vmatmul.bf16.gmra.mxu0 %v1280
        %v1308 = vpop.f32.mrf.mxu0
        %v1309 = vadd.f32 0.0, %v1308
        %v1310 = vpop.f32.mrf.mxu0
        %v1311 = vadd.f32 0.0, %v1310
        %1312 = vmatmul.bf16.gmra.mxu0 %v1283
        %v1313 = vpop.f32.mrf.mxu0
        %v1314 = vadd.f32 0.0, %v1313
        %v1315 = vpop.f32.mrf.mxu0
        %v1316 = vadd.f32 0.0, %v1315
        %1317 = vmatmul.bf16.gmra.mxu0 %v1286
        %v1318 = vpop.f32.mrf.mxu0
        %v1319 = vadd.f32 0.0, %v1318
        %v1320 = vpop.f32.mrf.mxu0
        %v1321 = vadd.f32 0.0, %v1320
        %1322 = vmatmul.bf16.gmra.mxu0 %v1289
        %v1323 = vpop.f32.mrf.mxu0
        %v1324 = vadd.f32 0.0, %v1323
        %v1325 = vpop.f32.mrf.mxu0
        %v1326 = vadd.f32 0.0, %v1325
        %1327 = vdwg.mxu0
        %v1328 = vadd.f32 %v1222, %v1304
        %v1329 = vadd.f32 %v1223, %v1306
        %v1330 = vadd.f32 %v1224, %v1309
        %v1331 = vadd.f32 %v1225, %v1311
        %v1332 = vadd.f32 %v1226, %v1314
        %v1333 = vadd.f32 %v1227, %v1316
        %v1334 = vadd.f32 %v1228, %v1319
        %v1335 = vadd.f32 %v1229, %v1321
        %v1336 = vadd.f32 %v1230, %v1324
        %v1337 = vadd.f32 %v1231, %v1326
        %s1338 = scalar_lea.vmem %s3, 22
        %v1339 = vld [vmem:[%s1338] sm:$0x3]
        %v1340 = vrot.slane %v1165, 1
        %v1341 = vrot.slane %v1166, 1
        %v1342 = vsel %vm526, %v1340, %v1341
        %v1343 = vrot.slane %v1167, 1
        %v1344 = vsel %vm526, %v1341, %v1343
        %v1345 = vrot.slane %v1168, 1
        %v1346 = vsel %vm526, %v1343, %v1345
        %v1347 = vrot.slane %v1169, 1
        %v1348 = vsel %vm526, %v1345, %v1347
        %v1349 = vrot.slane %v1236, 1
        %v1350 = vsel %vm526, %v1347, %v1349
        %v1352 = vsel %vm423, %v1342, 0
        %v1355 = vsel %vm423, %v1344, 0
        %v1358 = vsel %vm423, %v1346, 0
        %v1361 = vsel %vm423, %v1348, 0
        %v1364 = vsel %vm423, %v1350, 0
        %v1367 = vsel %vm439, %v1339, 0
        %1369 = vmatpush.bf16.msra.mxu0 0
        %1370 = vmatpush.bf16.msra.mxu0 0
        %1371 = vmatpush.bf16.msra.mxu0 0
        %1372 = vmatpush.bf16.msra.mxu0 0
        %1373 = vmatpush.bf16.msra.mxu0 0
        %1374 = vmatpush.bf16.msra.mxu0 0
        %1375 = vmatpush.bf16.msra.mxu0 0
        %1376 = vmatpush.bf16.msra.mxu0 %v1367
        %1377 = vmatmul.bf16.gmra.mxu0 %v1352
        %v1378 = vpop.f32.mrf.mxu0
        %v1379 = vadd.f32 0.0, %v1378
        %v1380 = vpop.f32.mrf.mxu0
        %v1381 = vadd.f32 0.0, %v1380
        %1382 = vmatmul.bf16.gmra.mxu0 %v1355
        %v1383 = vpop.f32.mrf.mxu0
        %v1384 = vadd.f32 0.0, %v1383
        %v1385 = vpop.f32.mrf.mxu0
        %v1386 = vadd.f32 0.0, %v1385
        %1387 = vmatmul.bf16.gmra.mxu0 %v1358
        %v1388 = vpop.f32.mrf.mxu0
        %v1389 = vadd.f32 0.0, %v1388
        %v1390 = vpop.f32.mrf.mxu0
        %v1391 = vadd.f32 0.0, %v1390
        %1392 = vmatmul.bf16.gmra.mxu0 %v1361
        %v1393 = vpop.f32.mrf.mxu0
        %v1394 = vadd.f32 0.0, %v1393
        %v1395 = vpop.f32.mrf.mxu0
        %v1396 = vadd.f32 0.0, %v1395
        %1397 = vmatmul.bf16.gmra.mxu0 %v1364
        %v1398 = vpop.f32.mrf.mxu0
        %v1399 = vadd.f32 0.0, %v1398
        %v1400 = vpop.f32.mrf.mxu0
        %v1401 = vadd.f32 0.0, %v1400
        %1402 = vdwg.mxu0
        %v1403 = vadd.f32 %v1328, %v1379
        %v1404 = vadd.f32 %v1329, %v1381
        %v1405 = vadd.f32 %v1330, %v1384
        %v1406 = vadd.f32 %v1331, %v1386
        %v1407 = vadd.f32 %v1332, %v1389
        %v1408 = vadd.f32 %v1333, %v1391
        %v1409 = vadd.f32 %v1334, %v1394
        %v1410 = vadd.f32 %v1335, %v1396
        %v1411 = vadd.f32 %v1336, %v1399
        %v1412 = vadd.f32 %v1337, %v1401
        %s1413 = scalar_lea.vmem %s3, 24
        %v1414 = vld [vmem:[%s1413] sm:$0x3]
        %v1416 = vunpack.c.l.b16 %v1141
        %v1417 = vpack.c.b16 %v1157, %v1156
        %v1418 = vpack.c.b16 %v1159, %v1158
        %v1419 = vpack.c.b16 %v1161, %v1160
        %v1420 = vpack.c.b16 %v1163, %v1162
        %v1421 = vpack.c.b16 %v1235, %v1164
        %v1422 = vpack.c.b16 %v1416, %v1416
        %v1423 = vrot.slane %v1417, 1
        %v1424 = vrot.slane %v1418, 1
        %v1425 = vsel %vm526, %v1423, %v1424
        %v1426 = vrot.slane %v1419, 1
        %v1427 = vsel %vm526, %v1424, %v1426
        %v1428 = vrot.slane %v1420, 1
        %v1429 = vsel %vm526, %v1426, %v1428
        %v1430 = vrot.slane %v1421, 1
        %v1431 = vsel %vm526, %v1428, %v1430
        %v1432 = vrot.slane %v1422, 1
        %v1433 = vsel %vm526, %v1430, %v1432
        %v1435 = vsel %vm423, %v1425, 0
        %v1438 = vsel %vm423, %v1427, 0
        %v1441 = vsel %vm423, %v1429, 0
        %v1444 = vsel %vm423, %v1431, 0
        %v1447 = vsel %vm423, %v1433, 0
        %v1450 = vsel %vm439, %v1414, 0
        %1452 = vmatpush.bf16.msra.mxu0 0
        %1453 = vmatpush.bf16.msra.mxu0 0
        %1454 = vmatpush.bf16.msra.mxu0 0
        %1455 = vmatpush.bf16.msra.mxu0 0
        %1456 = vmatpush.bf16.msra.mxu0 0
        %1457 = vmatpush.bf16.msra.mxu0 0
        %1458 = vmatpush.bf16.msra.mxu0 0
        %1459 = vmatpush.bf16.msra.mxu0 %v1450
        %1460 = vmatmul.bf16.gmra.mxu0 %v1435
        %v1461 = vpop.f32.mrf.mxu0
        %v1462 = vadd.f32 0.0, %v1461
        %v1463 = vpop.f32.mrf.mxu0
        %v1464 = vadd.f32 0.0, %v1463
        %1465 = vmatmul.bf16.gmra.mxu0 %v1438
        %v1466 = vpop.f32.mrf.mxu0
        %v1467 = vadd.f32 0.0, %v1466
        %v1468 = vpop.f32.mrf.mxu0
        %v1469 = vadd.f32 0.0, %v1468
        %1470 = vmatmul.bf16.gmra.mxu0 %v1441
        %v1471 = vpop.f32.mrf.mxu0
        %v1472 = vadd.f32 0.0, %v1471
        %v1473 = vpop.f32.mrf.mxu0
        %v1474 = vadd.f32 0.0, %v1473
        %1475 = vmatmul.bf16.gmra.mxu0 %v1444
        %v1476 = vpop.f32.mrf.mxu0
        %v1477 = vadd.f32 0.0, %v1476
        %v1478 = vpop.f32.mrf.mxu0
        %v1479 = vadd.f32 0.0, %v1478
        %1480 = vmatmul.bf16.gmra.mxu0 %v1447
        %v1481 = vpop.f32.mrf.mxu0
        %v1482 = vadd.f32 0.0, %v1481
        %v1483 = vpop.f32.mrf.mxu0
        %v1484 = vadd.f32 0.0, %v1483
        %1485 = vdwg.mxu0
        %v1486 = vadd.f32 %v1403, %v1462
        %v1487 = vadd.f32 %v1404, %v1464
        %v1488 = vadd.f32 %v1405, %v1467
        %v1489 = vadd.f32 %v1406, %v1469
        %v1490 = vadd.f32 %v1407, %v1472
        %v1491 = vadd.f32 %v1408, %v1474
        %v1492 = vadd.f32 %v1409, %v1477
        %v1493 = vadd.f32 %v1410, %v1479
        %v1494 = vadd.f32 %v1411, %v1482
        %v1495 = vadd.f32 %v1412, %v1484
        %s1496 = scalar_lea.vmem %s3, 26
        %v1497 = vld [vmem:[%s1496] sm:$0x3]
        %v1499 = vshrl.u32 %v1417, 16
        %v1501 = vrot.slane %v1499, 1
        %v1502 = vshll.u32 %v1417, 16
        %v1504 = vrot.slane %v1502, 2
        %v1505 = vor.u32 %v1501, %v1504
        %v1507 = vshrl.u32 %v1418, 16
        %v1509 = vrot.slane %v1507, 1
        %v1510 = vshll.u32 %v1418, 16
        %v1512 = vrot.slane %v1510, 2
        %v1513 = vor.u32 %v1509, %v1512
        %v1514 = vsel %vm685, %v1505, %v1513
        %v1516 = vshrl.u32 %v1419, 16
        %v1518 = vrot.slane %v1516, 1
        %v1519 = vshll.u32 %v1419, 16
        %v1521 = vrot.slane %v1519, 2
        %v1522 = vor.u32 %v1518, %v1521
        %v1523 = vsel %vm685, %v1513, %v1522
        %v1525 = vshrl.u32 %v1420, 16
        %v1527 = vrot.slane %v1525, 1
        %v1528 = vshll.u32 %v1420, 16
        %v1530 = vrot.slane %v1528, 2
        %v1531 = vor.u32 %v1527, %v1530
        %v1532 = vsel %vm685, %v1522, %v1531
        %v1534 = vshrl.u32 %v1421, 16
        %v1536 = vrot.slane %v1534, 1
        %v1537 = vshll.u32 %v1421, 16
        %v1539 = vrot.slane %v1537, 2
        %v1540 = vor.u32 %v1536, %v1539
        %v1541 = vsel %vm685, %v1531, %v1540
        %v1543 = vshrl.u32 %v1422, 16
        %v1545 = vrot.slane %v1543, 1
        %v1546 = vshll.u32 %v1422, 16
        %v1548 = vrot.slane %v1546, 2
        %v1549 = vor.u32 %v1545, %v1548
        %v1550 = vsel %vm685, %v1540, %v1549
        %v1552 = vsel %vm423, %v1514, 0
        %v1555 = vsel %vm423, %v1523, 0
        %v1558 = vsel %vm423, %v1532, 0
        %v1561 = vsel %vm423, %v1541, 0
        %v1564 = vsel %vm423, %v1550, 0
        %v1567 = vsel %vm439, %v1497, 0
        %1569 = vmatpush.bf16.msra.mxu0 0
        %1570 = vmatpush.bf16.msra.mxu0 0
        %1571 = vmatpush.bf16.msra.mxu0 0
        %1572 = vmatpush.bf16.msra.mxu0 0
        %1573 = vmatpush.bf16.msra.mxu0 0
        %1574 = vmatpush.bf16.msra.mxu0 0
        %1575 = vmatpush.bf16.msra.mxu0 0
        %1576 = vmatpush.bf16.msra.mxu0 %v1567
        %1577 = vmatmul.bf16.gmra.mxu0 %v1552
        %v1578 = vpop.f32.mrf.mxu0
        %v1579 = vadd.f32 0.0, %v1578
        %v1580 = vpop.f32.mrf.mxu0
        %v1581 = vadd.f32 0.0, %v1580
        %1582 = vmatmul.bf16.gmra.mxu0 %v1555
        %v1583 = vpop.f32.mrf.mxu0
        %v1584 = vadd.f32 0.0, %v1583
        %v1585 = vpop.f32.mrf.mxu0
        %v1586 = vadd.f32 0.0, %v1585
        %1587 = vmatmul.bf16.gmra.mxu0 %v1558
        %v1588 = vpop.f32.mrf.mxu0
        %v1589 = vadd.f32 0.0, %v1588
        %v1590 = vpop.f32.mrf.mxu0
        %v1591 = vadd.f32 0.0, %v1590
        %1592 = vmatmul.bf16.gmra.mxu0 %v1561
        %v1593 = vpop.f32.mrf.mxu0
        %v1594 = vadd.f32 0.0, %v1593
        %v1595 = vpop.f32.mrf.mxu0
        %v1596 = vadd.f32 0.0, %v1595
        %1597 = vmatmul.bf16.gmra.mxu0 %v1564
        %v1598 = vpop.f32.mrf.mxu0
        %v1599 = vadd.f32 0.0, %v1598
        %v1600 = vpop.f32.mrf.mxu0
        %v1601 = vadd.f32 0.0, %v1600
        %1602 = vdwg.mxu0
        %v1603 = vadd.f32 %v1486, %v1579
        %v1604 = vadd.f32 %v1487, %v1581
        %v1605 = vadd.f32 %v1488, %v1584
        %v1606 = vadd.f32 %v1489, %v1586
        %v1607 = vadd.f32 %v1490, %v1589
        %v1608 = vadd.f32 %v1491, %v1591
        %v1609 = vadd.f32 %v1492, %v1594
        %v1610 = vadd.f32 %v1493, %v1596
        %v1611 = vadd.f32 %v1494, %v1599
        %v1612 = vadd.f32 %v1495, %v1601
        %s1613 = scalar_lea.vmem %s3, 28
        %v1614 = vld [vmem:[%s1613] sm:$0x3]
        %v1615 = vrot.slane %v1417, 2
        %v1616 = vrot.slane %v1418, 2
        %v1617 = vsel %vm803, %v1615, %v1616
        %v1618 = vrot.slane %v1419, 2
        %v1619 = vsel %vm803, %v1616, %v1618
        %v1620 = vrot.slane %v1420, 2
        %v1621 = vsel %vm803, %v1618, %v1620
        %v1622 = vrot.slane %v1421, 2
        %v1623 = vsel %vm803, %v1620, %v1622
        %v1624 = vrot.slane %v1422, 2
        %v1625 = vsel %vm803, %v1622, %v1624
        %v1627 = vsel %vm423, %v1617, 0
        %v1630 = vsel %vm423, %v1619, 0
        %v1633 = vsel %vm423, %v1621, 0
        %v1636 = vsel %vm423, %v1623, 0
        %v1639 = vsel %vm423, %v1625, 0
        %v1642 = vsel %vm439, %v1614, 0
        %1644 = vmatpush.bf16.msra.mxu0 0
        %1645 = vmatpush.bf16.msra.mxu0 0
        %1646 = vmatpush.bf16.msra.mxu0 0
        %1647 = vmatpush.bf16.msra.mxu0 0
        %1648 = vmatpush.bf16.msra.mxu0 0
        %1649 = vmatpush.bf16.msra.mxu0 0
        %1650 = vmatpush.bf16.msra.mxu0 0
        %1651 = vmatpush.bf16.msra.mxu0 %v1642
        %1652 = vmatmul.bf16.gmra.mxu0 %v1627
        %v1653 = vpop.f32.mrf.mxu0
        %v1654 = vadd.f32 0.0, %v1653
        %v1655 = vpop.f32.mrf.mxu0
        %v1656 = vadd.f32 0.0, %v1655
        %1657 = vmatmul.bf16.gmra.mxu0 %v1630
        %v1658 = vpop.f32.mrf.mxu0
        %v1659 = vadd.f32 0.0, %v1658
        %v1660 = vpop.f32.mrf.mxu0
        %v1661 = vadd.f32 0.0, %v1660
        %1662 = vmatmul.bf16.gmra.mxu0 %v1633
        %v1663 = vpop.f32.mrf.mxu0
        %v1664 = vadd.f32 0.0, %v1663
        %v1665 = vpop.f32.mrf.mxu0
        %v1666 = vadd.f32 0.0, %v1665
        %1667 = vmatmul.bf16.gmra.mxu0 %v1636
        %v1668 = vpop.f32.mrf.mxu0
        %v1669 = vadd.f32 0.0, %v1668
        %v1670 = vpop.f32.mrf.mxu0
        %v1671 = vadd.f32 0.0, %v1670
        %1672 = vmatmul.bf16.gmra.mxu0 %v1639
        %v1673 = vpop.f32.mrf.mxu0
        %v1674 = vadd.f32 0.0, %v1673
        %v1675 = vpop.f32.mrf.mxu0
        %v1676 = vadd.f32 0.0, %v1675
        %1677 = vdwg.mxu0
        %v1678 = vadd.f32 %v1603, %v1654
        %v1679 = vadd.f32 %v1604, %v1656
        %v1680 = vadd.f32 %v1605, %v1659
        %v1681 = vadd.f32 %v1606, %v1661
        %v1682 = vadd.f32 %v1607, %v1664
        %v1683 = vadd.f32 %v1608, %v1666
        %v1684 = vadd.f32 %v1609, %v1669
        %v1685 = vadd.f32 %v1610, %v1671
        %v1686 = vadd.f32 %v1611, %v1674
        %v1687 = vadd.f32 %v1612, %v1676
        %s1688 = scalar_lea.vmem %s3, 30
        %v1689 = vld [vmem:[%s1688] sm:$0x3]
        %v1691 = vunpack.c.l.b16 %v1142
        %v1692 = vpack.c.b16 %v1416, %v1235
        %v1693 = vpack.c.b16 %v1691, %v1691
        %v1694 = vrot.slane %v1166, 2
        %v1695 = vrot.slane %v1167, 2
        %v1696 = vsel %vm803, %v1694, %v1695
        %v1697 = vrot.slane %v1168, 2
        %v1698 = vsel %vm803, %v1695, %v1697
        %v1699 = vrot.slane %v1169, 2
        %v1700 = vsel %vm803, %v1697, %v1699
        %v1701 = vrot.slane %v1692, 2
        %v1702 = vsel %vm803, %v1699, %v1701
        %v1703 = vrot.slane %v1693, 2
        %v1704 = vsel %vm803, %v1701, %v1703
        %v1706 = vsel %vm423, %v1696, 0
        %v1709 = vsel %vm423, %v1698, 0
        %v1712 = vsel %vm423, %v1700, 0
        %v1715 = vsel %vm423, %v1702, 0
        %v1718 = vsel %vm423, %v1704, 0
        %v1721 = vsel %vm439, %v1689, 0
        %1723 = vmatpush.bf16.msra.mxu0 0
        %1724 = vmatpush.bf16.msra.mxu0 0
        %1725 = vmatpush.bf16.msra.mxu0 0
        %1726 = vmatpush.bf16.msra.mxu0 0
        %1727 = vmatpush.bf16.msra.mxu0 0
        %1728 = vmatpush.bf16.msra.mxu0 0
        %1729 = vmatpush.bf16.msra.mxu0 0
        %1730 = vmatpush.bf16.msra.mxu0 %v1721
        %1731 = vmatmul.bf16.gmra.mxu0 %v1706
        %v1732 = vpop.f32.mrf.mxu0
        %v1733 = vadd.f32 0.0, %v1732
        %v1734 = vpop.f32.mrf.mxu0
        %v1735 = vadd.f32 0.0, %v1734
        %1736 = vmatmul.bf16.gmra.mxu0 %v1709
        %v1737 = vpop.f32.mrf.mxu0
        %v1738 = vadd.f32 0.0, %v1737
        %v1739 = vpop.f32.mrf.mxu0
        %v1740 = vadd.f32 0.0, %v1739
        %1741 = vmatmul.bf16.gmra.mxu0 %v1712
        %v1742 = vpop.f32.mrf.mxu0
        %v1743 = vadd.f32 0.0, %v1742
        %v1744 = vpop.f32.mrf.mxu0
        %v1745 = vadd.f32 0.0, %v1744
        %1746 = vmatmul.bf16.gmra.mxu0 %v1715
        %v1747 = vpop.f32.mrf.mxu0
        %v1748 = vadd.f32 0.0, %v1747
        %v1749 = vpop.f32.mrf.mxu0
        %v1750 = vadd.f32 0.0, %v1749
        %1751 = vmatmul.bf16.gmra.mxu0 %v1718
        %v1752 = vpop.f32.mrf.mxu0
        %v1753 = vadd.f32 0.0, %v1752
        %v1754 = vpop.f32.mrf.mxu0
        %v1755 = vadd.f32 0.0, %v1754
        %1756 = vdwg.mxu0
        %v1757 = vadd.f32 %v1678, %v1733
        %v1758 = vadd.f32 %v1679, %v1735
        %v1759 = vadd.f32 %v1680, %v1738
        %v1760 = vadd.f32 %v1681, %v1740
        %v1761 = vadd.f32 %v1682, %v1743
        %v1762 = vadd.f32 %v1683, %v1745
        %v1763 = vadd.f32 %v1684, %v1748
        %v1764 = vadd.f32 %v1685, %v1750
        %v1765 = vadd.f32 %v1686, %v1753
        %v1766 = vadd.f32 %v1687, %v1755
        %s1767 = scalar_lea.vmem %s3, 32
        %v1768 = vld [vmem:[%s1767] sm:$0x3]
        %v1769 = vrot.slane %v1247, 2
        %v1770 = vrot.slane %v1243, 3
        %v1771 = vor.u32 %v1769, %v1770
        %v1772 = vrot.slane %v1254, 2
        %v1773 = vrot.slane %v1250, 3
        %v1774 = vor.u32 %v1772, %v1773
        %v1775 = vsel %vm958, %v1771, %v1774
        %v1776 = vrot.slane %v1261, 2
        %v1777 = vrot.slane %v1257, 3
        %v1778 = vor.u32 %v1776, %v1777
        %v1779 = vsel %vm958, %v1774, %v1778
        %v1780 = vrot.slane %v1268, 2
        %v1781 = vrot.slane %v1264, 3
        %v1782 = vor.u32 %v1780, %v1781
        %v1783 = vsel %vm958, %v1778, %v1782
        %v1785 = vshrl.u32 %v1692, 16
        %v1787 = vrot.slane %v1785, 2
        %v1788 = vshll.u32 %v1692, 16
        %v1790 = vrot.slane %v1788, 3
        %v1791 = vor.u32 %v1787, %v1790
        %v1792 = vsel %vm958, %v1782, %v1791
        %v1794 = vshrl.u32 %v1693, 16
        %v1796 = vrot.slane %v1794, 2
        %v1797 = vshll.u32 %v1693, 16
        %v1799 = vrot.slane %v1797, 3
        %v1800 = vor.u32 %v1796, %v1799
        %v1801 = vsel %vm958, %v1791, %v1800
        %v1803 = vsel %vm423, %v1775, 0
        %v1806 = vsel %vm423, %v1779, 0
        %v1809 = vsel %vm423, %v1783, 0
        %v1812 = vsel %vm423, %v1792, 0
        %v1815 = vsel %vm423, %v1801, 0
        %v1818 = vsel %vm439, %v1768, 0
        %1820 = vmatpush.bf16.msra.mxu0 0
        %1821 = vmatpush.bf16.msra.mxu0 0
        %1822 = vmatpush.bf16.msra.mxu0 0
        %1823 = vmatpush.bf16.msra.mxu0 0
        %1824 = vmatpush.bf16.msra.mxu0 0
        %1825 = vmatpush.bf16.msra.mxu0 0
        %1826 = vmatpush.bf16.msra.mxu0 0
        %1827 = vmatpush.bf16.msra.mxu0 %v1818
        %1828 = vmatmul.bf16.gmra.mxu0 %v1803
        %v1829 = vpop.f32.mrf.mxu0
        %v1830 = vadd.f32 0.0, %v1829
        %v1831 = vpop.f32.mrf.mxu0
        %v1832 = vadd.f32 0.0, %v1831
        %1833 = vmatmul.bf16.gmra.mxu0 %v1806
        %v1834 = vpop.f32.mrf.mxu0
        %v1835 = vadd.f32 0.0, %v1834
        %v1836 = vpop.f32.mrf.mxu0
        %v1837 = vadd.f32 0.0, %v1836
        %1838 = vmatmul.bf16.gmra.mxu0 %v1809
        %v1839 = vpop.f32.mrf.mxu0
        %v1840 = vadd.f32 0.0, %v1839
        %v1841 = vpop.f32.mrf.mxu0
        %v1842 = vadd.f32 0.0, %v1841
        %1843 = vmatmul.bf16.gmra.mxu0 %v1812
        %v1844 = vpop.f32.mrf.mxu0
        %v1845 = vadd.f32 0.0, %v1844
        %v1846 = vpop.f32.mrf.mxu0
        %v1847 = vadd.f32 0.0, %v1846
        %1848 = vmatmul.bf16.gmra.mxu0 %v1815
        %v1849 = vpop.f32.mrf.mxu0
        %v1850 = vadd.f32 0.0, %v1849
        %v1851 = vpop.f32.mrf.mxu0
        %v1852 = vadd.f32 0.0, %v1851
        %1853 = vdwg.mxu0
        %v1854 = vadd.f32 %v1757, %v1830
        %v1855 = vadd.f32 %v1758, %v1832
        %v1856 = vadd.f32 %v1759, %v1835
        %v1857 = vadd.f32 %v1760, %v1837
        %v1858 = vadd.f32 %v1761, %v1840
        %v1859 = vadd.f32 %v1762, %v1842
        %v1860 = vadd.f32 %v1763, %v1845
        %v1861 = vadd.f32 %v1764, %v1847
        %v1862 = vadd.f32 %v1765, %v1850
        %v1863 = vadd.f32 %v1766, %v1852
        %s1864 = scalar_lea.vmem %s3, 34
        %v1865 = vld [vmem:[%s1864] sm:$0x3]
        %v1866 = vrot.slane %v1166, 3
        %v1867 = vrot.slane %v1167, 3
        %v1868 = vsel %vm1056, %v1866, %v1867
        %v1869 = vrot.slane %v1168, 3
        %v1870 = vsel %vm1056, %v1867, %v1869
        %v1871 = vrot.slane %v1169, 3
        %v1872 = vsel %vm1056, %v1869, %v1871
        %v1873 = vrot.slane %v1692, 3
        %v1874 = vsel %vm1056, %v1871, %v1873
        %v1875 = vrot.slane %v1693, 3
        %v1876 = vsel %vm1056, %v1873, %v1875
        %v1878 = vsel %vm423, %v1868, 0
        %v1881 = vsel %vm423, %v1870, 0
        %v1884 = vsel %vm423, %v1872, 0
        %v1887 = vsel %vm423, %v1874, 0
        %v1890 = vsel %vm423, %v1876, 0
        %v1893 = vsel %vm439, %v1865, 0
        %1895 = vmatpush.bf16.msra.mxu0 0
        %1896 = vmatpush.bf16.msra.mxu0 0
        %1897 = vmatpush.bf16.msra.mxu0 0
        %1898 = vmatpush.bf16.msra.mxu0 0
        %1899 = vmatpush.bf16.msra.mxu0 0
        %1900 = vmatpush.bf16.msra.mxu0 0
        %1901 = vmatpush.bf16.msra.mxu0 0
        %1902 = vmatpush.bf16.msra.mxu0 %v1893
        %1903 = vmatmul.bf16.gmra.mxu0 %v1878
        %v1904 = vpop.f32.mrf.mxu0
        %v1905 = vadd.f32 0.0, %v1904
        %v1906 = vpop.f32.mrf.mxu0
        %v1907 = vadd.f32 0.0, %v1906
        %1908 = vmatmul.bf16.gmra.mxu0 %v1881
        %v1909 = vpop.f32.mrf.mxu0
        %v1910 = vadd.f32 0.0, %v1909
        %v1911 = vpop.f32.mrf.mxu0
        %v1912 = vadd.f32 0.0, %v1911
        %1913 = vmatmul.bf16.gmra.mxu0 %v1884
        %v1914 = vpop.f32.mrf.mxu0
        %v1915 = vadd.f32 0.0, %v1914
        %v1916 = vpop.f32.mrf.mxu0
        %v1917 = vadd.f32 0.0, %v1916
        %1918 = vmatmul.bf16.gmra.mxu0 %v1887
        %v1919 = vpop.f32.mrf.mxu0
        %v1920 = vadd.f32 0.0, %v1919
        %v1921 = vpop.f32.mrf.mxu0
        %v1922 = vadd.f32 0.0, %v1921
        %1923 = vmatmul.bf16.gmra.mxu0 %v1890
        %v1924 = vpop.f32.mrf.mxu0
        %v1925 = vadd.f32 0.0, %v1924
        %v1926 = vpop.f32.mrf.mxu0
        %v1927 = vadd.f32 0.0, %v1926
        %1928 = vdwg.mxu0
        %v1929 = vadd.f32 %v1854, %v1905
        %v1930 = vadd.f32 %v1855, %v1907
        %v1931 = vadd.f32 %v1856, %v1910
        %v1932 = vadd.f32 %v1857, %v1912
        %v1933 = vadd.f32 %v1858, %v1915
        %v1934 = vadd.f32 %v1859, %v1917
        %v1935 = vadd.f32 %v1860, %v1920
        %v1936 = vadd.f32 %v1861, %v1922
        %v1937 = vadd.f32 %v1862, %v1925
        %v1938 = vadd.f32 %v1863, %v1927
        %v1939 = vld [vmem:[%s331] sm:$0xf]
        %v1940 = vld [vmem:[%s331 + $0x4] sm:$0xf]
        %v1941 = vld [vmem:[%s331 + $0x8] sm:$0xf]
        %v1942 = vld [vmem:[%s331 + $0xc] sm:$0xf]
        %v1943 = vld [vmem:[%s331 + $0x10] sm:$0xf]
        %v1944 = vld [vmem:[%s331 + $0x14] sm:$0xf]
        %v1945 = vld [vmem:[%s331 + $0x18] sm:$0xf]
        %v1946 = vld [vmem:[%s331 + $0x1c] sm:$0xf]
        %v1947 = vld [vmem:[%s331 + $0x20] sm:$0xf]
        %v1948 = vld [vmem:[%s331 + $0x24] sm:$0xf]
        %v1949 = vld [vmem:[%s331 + $0x28] sm:$0xf]
        %v1950 = vld [vmem:[%s331 + $0x2c] sm:$0xf]
        %v1951 = vld [vmem:[%s331 + $0x30] sm:$0xf]
        %s1952 = scalar_lea.vmem %s3, 36
        %v1953 = vld [vmem:[%s1952] sm:$0x3]
        %v1964 = vunpack.c.l.b16 %v1939
        %v1965 = vunpack.c.l.b16 %v1940
        %v1966 = vunpack.c.l.b16 %v1941
        %v1967 = vunpack.c.l.b16 %v1942
        %v1968 = vunpack.c.l.b16 %v1943
        %v1969 = vunpack.c.l.b16 %v1944
        %v1970 = vunpack.c.l.b16 %v1945
        %v1971 = vunpack.c.l.b16 %v1946
        %v1972 = vunpack.c.l.b16 %v1947
        %v1973 = vunpack.c.l.b16 %v1948
        %v1974 = vpack.c.b16 %v1965, %v1964
        %v1975 = vpack.c.b16 %v1967, %v1966
        %v1976 = vpack.c.b16 %v1969, %v1968
        %v1977 = vpack.c.b16 %v1971, %v1970
        %v1978 = vpack.c.b16 %v1973, %v1972
        %v1980 = vsel %vm423, %v1974, 0
        %v1983 = vsel %vm423, %v1975, 0
        %v1986 = vsel %vm423, %v1976, 0
        %v1989 = vsel %vm423, %v1977, 0
        %v1992 = vsel %vm423, %v1978, 0
        %v1995 = vsel %vm439, %v1953, 0
        %1997 = vmatpush.bf16.msra.mxu0 0
        %1998 = vmatpush.bf16.msra.mxu0 0
        %1999 = vmatpush.bf16.msra.mxu0 0
        %2000 = vmatpush.bf16.msra.mxu0 0
        %2001 = vmatpush.bf16.msra.mxu0 0
        %2002 = vmatpush.bf16.msra.mxu0 0
        %2003 = vmatpush.bf16.msra.mxu0 0
        %2004 = vmatpush.bf16.msra.mxu0 %v1995
        %2005 = vmatmul.bf16.gmra.mxu0 %v1980
        %v2006 = vpop.f32.mrf.mxu0
        %v2007 = vadd.f32 0.0, %v2006
        %v2008 = vpop.f32.mrf.mxu0
        %v2009 = vadd.f32 0.0, %v2008
        %2010 = vmatmul.bf16.gmra.mxu0 %v1983
        %v2011 = vpop.f32.mrf.mxu0
        %v2012 = vadd.f32 0.0, %v2011
        %v2013 = vpop.f32.mrf.mxu0
        %v2014 = vadd.f32 0.0, %v2013
        %2015 = vmatmul.bf16.gmra.mxu0 %v1986
        %v2016 = vpop.f32.mrf.mxu0
        %v2017 = vadd.f32 0.0, %v2016
        %v2018 = vpop.f32.mrf.mxu0
        %v2019 = vadd.f32 0.0, %v2018
        %2020 = vmatmul.bf16.gmra.mxu0 %v1989
        %v2021 = vpop.f32.mrf.mxu0
        %v2022 = vadd.f32 0.0, %v2021
        %v2023 = vpop.f32.mrf.mxu0
        %v2024 = vadd.f32 0.0, %v2023
        %2025 = vmatmul.bf16.gmra.mxu0 %v1992
        %v2026 = vpop.f32.mrf.mxu0
        %v2027 = vadd.f32 0.0, %v2026
        %v2028 = vpop.f32.mrf.mxu0
        %v2029 = vadd.f32 0.0, %v2028
        %2030 = vdwg.mxu0
        %v2031 = vadd.f32 %v1929, %v2007
        %v2032 = vadd.f32 %v1930, %v2009
        %v2033 = vadd.f32 %v1931, %v2012
        %v2034 = vadd.f32 %v1932, %v2014
        %v2035 = vadd.f32 %v1933, %v2017
        %v2036 = vadd.f32 %v1934, %v2019
        %v2037 = vadd.f32 %v1935, %v2022
        %v2038 = vadd.f32 %v1936, %v2024
        %v2039 = vadd.f32 %v1937, %v2027
        %v2040 = vadd.f32 %v1938, %v2029
        %s2041 = scalar_lea.vmem %s3, 38
        %v2042 = vld [vmem:[%s2041] sm:$0x3]
        %v2044 = vunpack.c.l.b16 %v1949
        %v2045 = vpack.c.b16 %v2044, %v2044
        %v2046 = vshrl.u32 %v1974, 16
        %v2048 = vshll.u32 %v1974, 16
        %v2050 = vrot.slane %v2048, 1
        %v2051 = vor.u32 %v2046, %v2050
        %v2052 = vshll.u32 %v1975, 16
        %v2054 = vrot.slane %v2052, 1
        %v2055 = vsel %vm378, %v2051, %v2054
        %v2056 = vshrl.u32 %v1975, 16
        %v2058 = vor.u32 %v2056, %v2054
        %v2059 = vshll.u32 %v1976, 16
        %v2061 = vrot.slane %v2059, 1
        %v2062 = vsel %vm378, %v2058, %v2061
        %v2063 = vshrl.u32 %v1976, 16
        %v2065 = vor.u32 %v2063, %v2061
        %v2066 = vshll.u32 %v1977, 16
        %v2068 = vrot.slane %v2066, 1
        %v2069 = vsel %vm378, %v2065, %v2068
        %v2070 = vshrl.u32 %v1977, 16
        %v2072 = vor.u32 %v2070, %v2068
        %v2073 = vshll.u32 %v1978, 16
        %v2075 = vrot.slane %v2073, 1
        %v2076 = vsel %vm378, %v2072, %v2075
        %v2077 = vshrl.u32 %v1978, 16
        %v2079 = vor.u32 %v2077, %v2075
        %v2081 = vshll.u32 %v2045, 16
        %v2083 = vrot.slane %v2081, 1
        %v2084 = vsel %vm378, %v2079, %v2083
        %v2086 = vsel %vm423, %v2055, 0
        %v2089 = vsel %vm423, %v2062, 0
        %v2092 = vsel %vm423, %v2069, 0
        %v2095 = vsel %vm423, %v2076, 0
        %v2098 = vsel %vm423, %v2084, 0
        %v2101 = vsel %vm439, %v2042, 0
        %2103 = vmatpush.bf16.msra.mxu0 0
        %2104 = vmatpush.bf16.msra.mxu0 0
        %2105 = vmatpush.bf16.msra.mxu0 0
        %2106 = vmatpush.bf16.msra.mxu0 0
        %2107 = vmatpush.bf16.msra.mxu0 0
        %2108 = vmatpush.bf16.msra.mxu0 0
        %2109 = vmatpush.bf16.msra.mxu0 0
        %2110 = vmatpush.bf16.msra.mxu0 %v2101
        %2111 = vmatmul.bf16.gmra.mxu0 %v2086
        %v2112 = vpop.f32.mrf.mxu0
        %v2113 = vadd.f32 0.0, %v2112
        %v2114 = vpop.f32.mrf.mxu0
        %v2115 = vadd.f32 0.0, %v2114
        %2116 = vmatmul.bf16.gmra.mxu0 %v2089
        %v2117 = vpop.f32.mrf.mxu0
        %v2118 = vadd.f32 0.0, %v2117
        %v2119 = vpop.f32.mrf.mxu0
        %v2120 = vadd.f32 0.0, %v2119
        %2121 = vmatmul.bf16.gmra.mxu0 %v2092
        %v2122 = vpop.f32.mrf.mxu0
        %v2123 = vadd.f32 0.0, %v2122
        %v2124 = vpop.f32.mrf.mxu0
        %v2125 = vadd.f32 0.0, %v2124
        %2126 = vmatmul.bf16.gmra.mxu0 %v2095
        %v2127 = vpop.f32.mrf.mxu0
        %v2128 = vadd.f32 0.0, %v2127
        %v2129 = vpop.f32.mrf.mxu0
        %v2130 = vadd.f32 0.0, %v2129
        %2131 = vmatmul.bf16.gmra.mxu0 %v2098
        %v2132 = vpop.f32.mrf.mxu0
        %v2133 = vadd.f32 0.0, %v2132
        %v2134 = vpop.f32.mrf.mxu0
        %v2135 = vadd.f32 0.0, %v2134
        %2136 = vdwg.mxu0
        %v2137 = vadd.f32 %v2031, %v2113
        %v2138 = vadd.f32 %v2032, %v2115
        %v2139 = vadd.f32 %v2033, %v2118
        %v2140 = vadd.f32 %v2034, %v2120
        %v2141 = vadd.f32 %v2035, %v2123
        %v2142 = vadd.f32 %v2036, %v2125
        %v2143 = vadd.f32 %v2037, %v2128
        %v2144 = vadd.f32 %v2038, %v2130
        %v2145 = vadd.f32 %v2039, %v2133
        %v2146 = vadd.f32 %v2040, %v2135
        %s2147 = scalar_lea.vmem %s3, 40
        %v2148 = vld [vmem:[%s2147] sm:$0x3]
        %v2149 = vrot.slane %v1974, 1
        %v2150 = vrot.slane %v1975, 1
        %v2151 = vsel %vm526, %v2149, %v2150
        %v2152 = vrot.slane %v1976, 1
        %v2153 = vsel %vm526, %v2150, %v2152
        %v2154 = vrot.slane %v1977, 1
        %v2155 = vsel %vm526, %v2152, %v2154
        %v2156 = vrot.slane %v1978, 1
        %v2157 = vsel %vm526, %v2154, %v2156
        %v2158 = vrot.slane %v2045, 1
        %v2159 = vsel %vm526, %v2156, %v2158
        %v2161 = vsel %vm423, %v2151, 0
        %v2164 = vsel %vm423, %v2153, 0
        %v2167 = vsel %vm423, %v2155, 0
        %v2170 = vsel %vm423, %v2157, 0
        %v2173 = vsel %vm423, %v2159, 0
        %v2176 = vsel %vm439, %v2148, 0
        %2178 = vmatpush.bf16.msra.mxu0 0
        %2179 = vmatpush.bf16.msra.mxu0 0
        %2180 = vmatpush.bf16.msra.mxu0 0
        %2181 = vmatpush.bf16.msra.mxu0 0
        %2182 = vmatpush.bf16.msra.mxu0 0
        %2183 = vmatpush.bf16.msra.mxu0 0
        %2184 = vmatpush.bf16.msra.mxu0 0
        %2185 = vmatpush.bf16.msra.mxu0 %v2176
        %2186 = vmatmul.bf16.gmra.mxu0 %v2161
        %v2187 = vpop.f32.mrf.mxu0
        %v2188 = vadd.f32 0.0, %v2187
        %v2189 = vpop.f32.mrf.mxu0
        %v2190 = vadd.f32 0.0, %v2189
        %2191 = vmatmul.bf16.gmra.mxu0 %v2164
        %v2192 = vpop.f32.mrf.mxu0
        %v2193 = vadd.f32 0.0, %v2192
        %v2194 = vpop.f32.mrf.mxu0
        %v2195 = vadd.f32 0.0, %v2194
        %2196 = vmatmul.bf16.gmra.mxu0 %v2167
        %v2197 = vpop.f32.mrf.mxu0
        %v2198 = vadd.f32 0.0, %v2197
        %v2199 = vpop.f32.mrf.mxu0
        %v2200 = vadd.f32 0.0, %v2199
        %2201 = vmatmul.bf16.gmra.mxu0 %v2170
        %v2202 = vpop.f32.mrf.mxu0
        %v2203 = vadd.f32 0.0, %v2202
        %v2204 = vpop.f32.mrf.mxu0
        %v2205 = vadd.f32 0.0, %v2204
        %2206 = vmatmul.bf16.gmra.mxu0 %v2173
        %v2207 = vpop.f32.mrf.mxu0
        %v2208 = vadd.f32 0.0, %v2207
        %v2209 = vpop.f32.mrf.mxu0
        %v2210 = vadd.f32 0.0, %v2209
        %2211 = vdwg.mxu0
        %v2212 = vadd.f32 %v2137, %v2188
        %v2213 = vadd.f32 %v2138, %v2190
        %v2214 = vadd.f32 %v2139, %v2193
        %v2215 = vadd.f32 %v2140, %v2195
        %v2216 = vadd.f32 %v2141, %v2198
        %v2217 = vadd.f32 %v2142, %v2200
        %v2218 = vadd.f32 %v2143, %v2203
        %v2219 = vadd.f32 %v2144, %v2205
        %v2220 = vadd.f32 %v2145, %v2208
        %v2221 = vadd.f32 %v2146, %v2210
        %s2222 = scalar_lea.vmem %s3, 42
        %v2223 = vld [vmem:[%s2222] sm:$0x3]
        %v2225 = vunpack.c.l.b16 %v1950
        %v2226 = vpack.c.b16 %v1966, %v1965
        %v2227 = vpack.c.b16 %v1968, %v1967
        %v2228 = vpack.c.b16 %v1970, %v1969
        %v2229 = vpack.c.b16 %v1972, %v1971
        %v2230 = vpack.c.b16 %v2044, %v1973
        %v2231 = vpack.c.b16 %v2225, %v2225
        %v2232 = vrot.slane %v2226, 1
        %v2233 = vrot.slane %v2227, 1
        %v2234 = vsel %vm526, %v2232, %v2233
        %v2235 = vrot.slane %v2228, 1
        %v2236 = vsel %vm526, %v2233, %v2235
        %v2237 = vrot.slane %v2229, 1
        %v2238 = vsel %vm526, %v2235, %v2237
        %v2239 = vrot.slane %v2230, 1
        %v2240 = vsel %vm526, %v2237, %v2239
        %v2241 = vrot.slane %v2231, 1
        %v2242 = vsel %vm526, %v2239, %v2241
        %v2244 = vsel %vm423, %v2234, 0
        %v2247 = vsel %vm423, %v2236, 0
        %v2250 = vsel %vm423, %v2238, 0
        %v2253 = vsel %vm423, %v2240, 0
        %v2256 = vsel %vm423, %v2242, 0
        %v2259 = vsel %vm439, %v2223, 0
        %2261 = vmatpush.bf16.msra.mxu0 0
        %2262 = vmatpush.bf16.msra.mxu0 0
        %2263 = vmatpush.bf16.msra.mxu0 0
        %2264 = vmatpush.bf16.msra.mxu0 0
        %2265 = vmatpush.bf16.msra.mxu0 0
        %2266 = vmatpush.bf16.msra.mxu0 0
        %2267 = vmatpush.bf16.msra.mxu0 0
        %2268 = vmatpush.bf16.msra.mxu0 %v2259
        %2269 = vmatmul.bf16.gmra.mxu0 %v2244
        %v2270 = vpop.f32.mrf.mxu0
        %v2271 = vadd.f32 0.0, %v2270
        %v2272 = vpop.f32.mrf.mxu0
        %v2273 = vadd.f32 0.0, %v2272
        %2274 = vmatmul.bf16.gmra.mxu0 %v2247
        %v2275 = vpop.f32.mrf.mxu0
        %v2276 = vadd.f32 0.0, %v2275
        %v2277 = vpop.f32.mrf.mxu0
        %v2278 = vadd.f32 0.0, %v2277
        %2279 = vmatmul.bf16.gmra.mxu0 %v2250
        %v2280 = vpop.f32.mrf.mxu0
        %v2281 = vadd.f32 0.0, %v2280
        %v2282 = vpop.f32.mrf.mxu0
        %v2283 = vadd.f32 0.0, %v2282
        %2284 = vmatmul.bf16.gmra.mxu0 %v2253
        %v2285 = vpop.f32.mrf.mxu0
        %v2286 = vadd.f32 0.0, %v2285
        %v2287 = vpop.f32.mrf.mxu0
        %v2288 = vadd.f32 0.0, %v2287
        %2289 = vmatmul.bf16.gmra.mxu0 %v2256
        %v2290 = vpop.f32.mrf.mxu0
        %v2291 = vadd.f32 0.0, %v2290
        %v2292 = vpop.f32.mrf.mxu0
        %v2293 = vadd.f32 0.0, %v2292
        %2294 = vdwg.mxu0
        %v2295 = vadd.f32 %v2212, %v2271
        %v2296 = vadd.f32 %v2213, %v2273
        %v2297 = vadd.f32 %v2214, %v2276
        %v2298 = vadd.f32 %v2215, %v2278
        %v2299 = vadd.f32 %v2216, %v2281
        %v2300 = vadd.f32 %v2217, %v2283
        %v2301 = vadd.f32 %v2218, %v2286
        %v2302 = vadd.f32 %v2219, %v2288
        %v2303 = vadd.f32 %v2220, %v2291
        %v2304 = vadd.f32 %v2221, %v2293
        %s2305 = scalar_lea.vmem %s3, 44
        %v2306 = vld [vmem:[%s2305] sm:$0x3]
        %v2308 = vshrl.u32 %v2226, 16
        %v2310 = vrot.slane %v2308, 1
        %v2311 = vshll.u32 %v2226, 16
        %v2313 = vrot.slane %v2311, 2
        %v2314 = vor.u32 %v2310, %v2313
        %v2316 = vshrl.u32 %v2227, 16
        %v2318 = vrot.slane %v2316, 1
        %v2319 = vshll.u32 %v2227, 16
        %v2321 = vrot.slane %v2319, 2
        %v2322 = vor.u32 %v2318, %v2321
        %v2323 = vsel %vm685, %v2314, %v2322
        %v2325 = vshrl.u32 %v2228, 16
        %v2327 = vrot.slane %v2325, 1
        %v2328 = vshll.u32 %v2228, 16
        %v2330 = vrot.slane %v2328, 2
        %v2331 = vor.u32 %v2327, %v2330
        %v2332 = vsel %vm685, %v2322, %v2331
        %v2334 = vshrl.u32 %v2229, 16
        %v2336 = vrot.slane %v2334, 1
        %v2337 = vshll.u32 %v2229, 16
        %v2339 = vrot.slane %v2337, 2
        %v2340 = vor.u32 %v2336, %v2339
        %v2341 = vsel %vm685, %v2331, %v2340
        %v2343 = vshrl.u32 %v2230, 16
        %v2345 = vrot.slane %v2343, 1
        %v2346 = vshll.u32 %v2230, 16
        %v2348 = vrot.slane %v2346, 2
        %v2349 = vor.u32 %v2345, %v2348
        %v2350 = vsel %vm685, %v2340, %v2349
        %v2352 = vshrl.u32 %v2231, 16
        %v2354 = vrot.slane %v2352, 1
        %v2355 = vshll.u32 %v2231, 16
        %v2357 = vrot.slane %v2355, 2
        %v2358 = vor.u32 %v2354, %v2357
        %v2359 = vsel %vm685, %v2349, %v2358
        %v2361 = vsel %vm423, %v2323, 0
        %v2364 = vsel %vm423, %v2332, 0
        %v2367 = vsel %vm423, %v2341, 0
        %v2370 = vsel %vm423, %v2350, 0
        %v2373 = vsel %vm423, %v2359, 0
        %v2376 = vsel %vm439, %v2306, 0
        %2378 = vmatpush.bf16.msra.mxu0 0
        %2379 = vmatpush.bf16.msra.mxu0 0
        %2380 = vmatpush.bf16.msra.mxu0 0
        %2381 = vmatpush.bf16.msra.mxu0 0
        %2382 = vmatpush.bf16.msra.mxu0 0
        %2383 = vmatpush.bf16.msra.mxu0 0
        %2384 = vmatpush.bf16.msra.mxu0 0
        %2385 = vmatpush.bf16.msra.mxu0 %v2376
        %2386 = vmatmul.bf16.gmra.mxu0 %v2361
        %v2387 = vpop.f32.mrf.mxu0
        %v2388 = vadd.f32 0.0, %v2387
        %v2389 = vpop.f32.mrf.mxu0
        %v2390 = vadd.f32 0.0, %v2389
        %2391 = vmatmul.bf16.gmra.mxu0 %v2364
        %v2392 = vpop.f32.mrf.mxu0
        %v2393 = vadd.f32 0.0, %v2392
        %v2394 = vpop.f32.mrf.mxu0
        %v2395 = vadd.f32 0.0, %v2394
        %2396 = vmatmul.bf16.gmra.mxu0 %v2367
        %v2397 = vpop.f32.mrf.mxu0
        %v2398 = vadd.f32 0.0, %v2397
        %v2399 = vpop.f32.mrf.mxu0
        %v2400 = vadd.f32 0.0, %v2399
        %2401 = vmatmul.bf16.gmra.mxu0 %v2370
        %v2402 = vpop.f32.mrf.mxu0
        %v2403 = vadd.f32 0.0, %v2402
        %v2404 = vpop.f32.mrf.mxu0
        %v2405 = vadd.f32 0.0, %v2404
        %2406 = vmatmul.bf16.gmra.mxu0 %v2373
        %v2407 = vpop.f32.mrf.mxu0
        %v2408 = vadd.f32 0.0, %v2407
        %v2409 = vpop.f32.mrf.mxu0
        %v2410 = vadd.f32 0.0, %v2409
        %2411 = vdwg.mxu0
        %v2412 = vadd.f32 %v2295, %v2388
        %v2413 = vadd.f32 %v2296, %v2390
        %v2414 = vadd.f32 %v2297, %v2393
        %v2415 = vadd.f32 %v2298, %v2395
        %v2416 = vadd.f32 %v2299, %v2398
        %v2417 = vadd.f32 %v2300, %v2400
        %v2418 = vadd.f32 %v2301, %v2403
        %v2419 = vadd.f32 %v2302, %v2405
        %v2420 = vadd.f32 %v2303, %v2408
        %v2421 = vadd.f32 %v2304, %v2410
        %s2422 = scalar_lea.vmem %s3, 46
        %v2423 = vld [vmem:[%s2422] sm:$0x3]
        %v2424 = vrot.slane %v2226, 2
        %v2425 = vrot.slane %v2227, 2
        %v2426 = vsel %vm803, %v2424, %v2425
        %v2427 = vrot.slane %v2228, 2
        %v2428 = vsel %vm803, %v2425, %v2427
        %v2429 = vrot.slane %v2229, 2
        %v2430 = vsel %vm803, %v2427, %v2429
        %v2431 = vrot.slane %v2230, 2
        %v2432 = vsel %vm803, %v2429, %v2431
        %v2433 = vrot.slane %v2231, 2
        %v2434 = vsel %vm803, %v2431, %v2433
        %v2436 = vsel %vm423, %v2426, 0
        %v2439 = vsel %vm423, %v2428, 0
        %v2442 = vsel %vm423, %v2430, 0
        %v2445 = vsel %vm423, %v2432, 0
        %v2448 = vsel %vm423, %v2434, 0
        %v2451 = vsel %vm439, %v2423, 0
        %2453 = vmatpush.bf16.msra.mxu0 0
        %2454 = vmatpush.bf16.msra.mxu0 0
        %2455 = vmatpush.bf16.msra.mxu0 0
        %2456 = vmatpush.bf16.msra.mxu0 0
        %2457 = vmatpush.bf16.msra.mxu0 0
        %2458 = vmatpush.bf16.msra.mxu0 0
        %2459 = vmatpush.bf16.msra.mxu0 0
        %2460 = vmatpush.bf16.msra.mxu0 %v2451
        %2461 = vmatmul.bf16.gmra.mxu0 %v2436
        %v2462 = vpop.f32.mrf.mxu0
        %v2463 = vadd.f32 0.0, %v2462
        %v2464 = vpop.f32.mrf.mxu0
        %v2465 = vadd.f32 0.0, %v2464
        %2466 = vmatmul.bf16.gmra.mxu0 %v2439
        %v2467 = vpop.f32.mrf.mxu0
        %v2468 = vadd.f32 0.0, %v2467
        %v2469 = vpop.f32.mrf.mxu0
        %v2470 = vadd.f32 0.0, %v2469
        %2471 = vmatmul.bf16.gmra.mxu0 %v2442
        %v2472 = vpop.f32.mrf.mxu0
        %v2473 = vadd.f32 0.0, %v2472
        %v2474 = vpop.f32.mrf.mxu0
        %v2475 = vadd.f32 0.0, %v2474
        %2476 = vmatmul.bf16.gmra.mxu0 %v2445
        %v2477 = vpop.f32.mrf.mxu0
        %v2478 = vadd.f32 0.0, %v2477
        %v2479 = vpop.f32.mrf.mxu0
        %v2480 = vadd.f32 0.0, %v2479
        %2481 = vmatmul.bf16.gmra.mxu0 %v2448
        %v2482 = vpop.f32.mrf.mxu0
        %v2483 = vadd.f32 0.0, %v2482
        %v2484 = vpop.f32.mrf.mxu0
        %v2485 = vadd.f32 0.0, %v2484
        %2486 = vdwg.mxu0
        %v2487 = vadd.f32 %v2412, %v2463
        %v2488 = vadd.f32 %v2413, %v2465
        %v2489 = vadd.f32 %v2414, %v2468
        %v2490 = vadd.f32 %v2415, %v2470
        %v2491 = vadd.f32 %v2416, %v2473
        %v2492 = vadd.f32 %v2417, %v2475
        %v2493 = vadd.f32 %v2418, %v2478
        %v2494 = vadd.f32 %v2419, %v2480
        %v2495 = vadd.f32 %v2420, %v2483
        %v2496 = vadd.f32 %v2421, %v2485
        %s2497 = scalar_lea.vmem %s3, 48
        %v2498 = vld [vmem:[%s2497] sm:$0x3]
        %v2500 = vunpack.c.l.b16 %v1951
        %v2501 = vpack.c.b16 %v2225, %v2044
        %v2502 = vpack.c.b16 %v2500, %v2500
        %v2503 = vrot.slane %v1975, 2
        %v2504 = vrot.slane %v1976, 2
        %v2505 = vsel %vm803, %v2503, %v2504
        %v2506 = vrot.slane %v1977, 2
        %v2507 = vsel %vm803, %v2504, %v2506
        %v2508 = vrot.slane %v1978, 2
        %v2509 = vsel %vm803, %v2506, %v2508
        %v2510 = vrot.slane %v2501, 2
        %v2511 = vsel %vm803, %v2508, %v2510
        %v2512 = vrot.slane %v2502, 2
        %v2513 = vsel %vm803, %v2510, %v2512
        %v2515 = vsel %vm423, %v2505, 0
        %v2518 = vsel %vm423, %v2507, 0
        %v2521 = vsel %vm423, %v2509, 0
        %v2524 = vsel %vm423, %v2511, 0
        %v2527 = vsel %vm423, %v2513, 0
        %v2530 = vsel %vm439, %v2498, 0
        %2532 = vmatpush.bf16.msra.mxu0 0
        %2533 = vmatpush.bf16.msra.mxu0 0
        %2534 = vmatpush.bf16.msra.mxu0 0
        %2535 = vmatpush.bf16.msra.mxu0 0
        %2536 = vmatpush.bf16.msra.mxu0 0
        %2537 = vmatpush.bf16.msra.mxu0 0
        %2538 = vmatpush.bf16.msra.mxu0 0
        %2539 = vmatpush.bf16.msra.mxu0 %v2530
        %2540 = vmatmul.bf16.gmra.mxu0 %v2515
        %v2541 = vpop.f32.mrf.mxu0
        %v2542 = vadd.f32 0.0, %v2541
        %v2543 = vpop.f32.mrf.mxu0
        %v2544 = vadd.f32 0.0, %v2543
        %2545 = vmatmul.bf16.gmra.mxu0 %v2518
        %v2546 = vpop.f32.mrf.mxu0
        %v2547 = vadd.f32 0.0, %v2546
        %v2548 = vpop.f32.mrf.mxu0
        %v2549 = vadd.f32 0.0, %v2548
        %2550 = vmatmul.bf16.gmra.mxu0 %v2521
        %v2551 = vpop.f32.mrf.mxu0
        %v2552 = vadd.f32 0.0, %v2551
        %v2553 = vpop.f32.mrf.mxu0
        %v2554 = vadd.f32 0.0, %v2553
        %2555 = vmatmul.bf16.gmra.mxu0 %v2524
        %v2556 = vpop.f32.mrf.mxu0
        %v2557 = vadd.f32 0.0, %v2556
        %v2558 = vpop.f32.mrf.mxu0
        %v2559 = vadd.f32 0.0, %v2558
        %2560 = vmatmul.bf16.gmra.mxu0 %v2527
        %v2561 = vpop.f32.mrf.mxu0
        %v2562 = vadd.f32 0.0, %v2561
        %v2563 = vpop.f32.mrf.mxu0
        %v2564 = vadd.f32 0.0, %v2563
        %2565 = vdwg.mxu0
        %v2566 = vadd.f32 %v2487, %v2542
        %v2567 = vadd.f32 %v2488, %v2544
        %v2568 = vadd.f32 %v2489, %v2547
        %v2569 = vadd.f32 %v2490, %v2549
        %v2570 = vadd.f32 %v2491, %v2552
        %v2571 = vadd.f32 %v2492, %v2554
        %v2572 = vadd.f32 %v2493, %v2557
        %v2573 = vadd.f32 %v2494, %v2559
        %v2574 = vadd.f32 %v2495, %v2562
        %v2575 = vadd.f32 %v2496, %v2564
        %s2576 = scalar_lea.vmem %s3, 50
        %v2577 = vld [vmem:[%s2576] sm:$0x3]
        %v2578 = vrot.slane %v2056, 2
        %v2579 = vrot.slane %v2052, 3
        %v2580 = vor.u32 %v2578, %v2579
        %v2581 = vrot.slane %v2063, 2
        %v2582 = vrot.slane %v2059, 3
        %v2583 = vor.u32 %v2581, %v2582
        %v2584 = vsel %vm958, %v2580, %v2583
        %v2585 = vrot.slane %v2070, 2
        %v2586 = vrot.slane %v2066, 3
        %v2587 = vor.u32 %v2585, %v2586
        %v2588 = vsel %vm958, %v2583, %v2587
        %v2589 = vrot.slane %v2077, 2
        %v2590 = vrot.slane %v2073, 3
        %v2591 = vor.u32 %v2589, %v2590
        %v2592 = vsel %vm958, %v2587, %v2591
        %v2594 = vshrl.u32 %v2501, 16
        %v2596 = vrot.slane %v2594, 2
        %v2597 = vshll.u32 %v2501, 16
        %v2599 = vrot.slane %v2597, 3
        %v2600 = vor.u32 %v2596, %v2599
        %v2601 = vsel %vm958, %v2591, %v2600
        %v2603 = vshrl.u32 %v2502, 16
        %v2605 = vrot.slane %v2603, 2
        %v2606 = vshll.u32 %v2502, 16
        %v2608 = vrot.slane %v2606, 3
        %v2609 = vor.u32 %v2605, %v2608
        %v2610 = vsel %vm958, %v2600, %v2609
        %v2612 = vsel %vm423, %v2584, 0
        %v2615 = vsel %vm423, %v2588, 0
        %v2618 = vsel %vm423, %v2592, 0
        %v2621 = vsel %vm423, %v2601, 0
        %v2624 = vsel %vm423, %v2610, 0
        %v2627 = vsel %vm439, %v2577, 0
        %2629 = vmatpush.bf16.msra.mxu0 0
        %2630 = vmatpush.bf16.msra.mxu0 0
        %2631 = vmatpush.bf16.msra.mxu0 0
        %2632 = vmatpush.bf16.msra.mxu0 0
        %2633 = vmatpush.bf16.msra.mxu0 0
        %2634 = vmatpush.bf16.msra.mxu0 0
        %2635 = vmatpush.bf16.msra.mxu0 0
        %2636 = vmatpush.bf16.msra.mxu0 %v2627
        %2637 = vmatmul.bf16.gmra.mxu0 %v2612
        %v2638 = vpop.f32.mrf.mxu0
        %v2639 = vadd.f32 0.0, %v2638
        %v2640 = vpop.f32.mrf.mxu0
        %v2641 = vadd.f32 0.0, %v2640
        %2642 = vmatmul.bf16.gmra.mxu0 %v2615
        %v2643 = vpop.f32.mrf.mxu0
        %v2644 = vadd.f32 0.0, %v2643
        %v2645 = vpop.f32.mrf.mxu0
        %v2646 = vadd.f32 0.0, %v2645
        %2647 = vmatmul.bf16.gmra.mxu0 %v2618
        %v2648 = vpop.f32.mrf.mxu0
        %v2649 = vadd.f32 0.0, %v2648
        %v2650 = vpop.f32.mrf.mxu0
        %v2651 = vadd.f32 0.0, %v2650
        %2652 = vmatmul.bf16.gmra.mxu0 %v2621
        %v2653 = vpop.f32.mrf.mxu0
        %v2654 = vadd.f32 0.0, %v2653
        %v2655 = vpop.f32.mrf.mxu0
        %v2656 = vadd.f32 0.0, %v2655
        %2657 = vmatmul.bf16.gmra.mxu0 %v2624
        %v2658 = vpop.f32.mrf.mxu0
        %v2659 = vadd.f32 0.0, %v2658
        %v2660 = vpop.f32.mrf.mxu0
        %v2661 = vadd.f32 0.0, %v2660
        %2662 = vdwg.mxu0
        %v2663 = vadd.f32 %v2566, %v2639
        %v2664 = vadd.f32 %v2567, %v2641
        %v2665 = vadd.f32 %v2568, %v2644
        %v2666 = vadd.f32 %v2569, %v2646
        %v2667 = vadd.f32 %v2570, %v2649
        %v2668 = vadd.f32 %v2571, %v2651
        %v2669 = vadd.f32 %v2572, %v2654
        %v2670 = vadd.f32 %v2573, %v2656
        %v2671 = vadd.f32 %v2574, %v2659
        %v2672 = vadd.f32 %v2575, %v2661
        %s2673 = scalar_lea.vmem %s3, 52
        %v2674 = vld [vmem:[%s2673] sm:$0x3]
        %v2675 = vrot.slane %v1975, 3
        %v2676 = vrot.slane %v1976, 3
        %v2677 = vsel %vm1056, %v2675, %v2676
        %v2678 = vrot.slane %v1977, 3
        %v2679 = vsel %vm1056, %v2676, %v2678
        %v2680 = vrot.slane %v1978, 3
        %v2681 = vsel %vm1056, %v2678, %v2680
        %v2682 = vrot.slane %v2501, 3
        %v2683 = vsel %vm1056, %v2680, %v2682
        %v2684 = vrot.slane %v2502, 3
        %v2685 = vsel %vm1056, %v2682, %v2684
        %v2687 = vsel %vm423, %v2677, 0
        %v2690 = vsel %vm423, %v2679, 0
        %v2693 = vsel %vm423, %v2681, 0
        %v2696 = vsel %vm423, %v2683, 0
        %v2699 = vsel %vm423, %v2685, 0
        %v2702 = vsel %vm439, %v2674, 0
        %2704 = vmatpush.bf16.msra.mxu0 0
        %2705 = vmatpush.bf16.msra.mxu0 0
        %2706 = vmatpush.bf16.msra.mxu0 0
        %2707 = vmatpush.bf16.msra.mxu0 0
        %2708 = vmatpush.bf16.msra.mxu0 0
        %2709 = vmatpush.bf16.msra.mxu0 0
        %2710 = vmatpush.bf16.msra.mxu0 0
        %2711 = vmatpush.bf16.msra.mxu0 %v2702
        %2712 = vmatmul.bf16.gmra.mxu0 %v2687
        %v2713 = vpop.f32.mrf.mxu0
        %v2714 = vadd.f32 0.0, %v2713
        %v2715 = vpop.f32.mrf.mxu0
        %v2716 = vadd.f32 0.0, %v2715
        %2717 = vmatmul.bf16.gmra.mxu0 %v2690
        %v2718 = vpop.f32.mrf.mxu0
        %v2719 = vadd.f32 0.0, %v2718
        %v2720 = vpop.f32.mrf.mxu0
        %v2721 = vadd.f32 0.0, %v2720
        %2722 = vmatmul.bf16.gmra.mxu0 %v2693
        %v2723 = vpop.f32.mrf.mxu0
        %v2724 = vadd.f32 0.0, %v2723
        %v2725 = vpop.f32.mrf.mxu0
        %v2726 = vadd.f32 0.0, %v2725
        %2727 = vmatmul.bf16.gmra.mxu0 %v2696
        %v2728 = vpop.f32.mrf.mxu0
        %v2729 = vadd.f32 0.0, %v2728
        %v2730 = vpop.f32.mrf.mxu0
        %v2731 = vadd.f32 0.0, %v2730
        %2732 = vmatmul.bf16.gmra.mxu0 %v2699
        %v2733 = vpop.f32.mrf.mxu0
        %v2734 = vadd.f32 0.0, %v2733
        %v2735 = vpop.f32.mrf.mxu0
        %v2736 = vadd.f32 0.0, %v2735
        %2737 = vdwg.mxu0
        %v2738 = vadd.f32 %v2663, %v2714
        %v2739 = vadd.f32 %v2664, %v2716
        %v2740 = vadd.f32 %v2665, %v2719
        %v2741 = vadd.f32 %v2666, %v2721
        %v2742 = vadd.f32 %v2667, %v2724
        %v2743 = vadd.f32 %v2668, %v2726
        %v2744 = vadd.f32 %v2669, %v2729
        %v2745 = vadd.f32 %v2670, %v2731
        %v2746 = vadd.f32 %v2671, %v2734
        %v2747 = vadd.f32 %v2672, %v2736
        %v2758 = vrot.slane %v2738, 2
        %v2759 = vrot.slane %v2738, 4
        %v2760 = vrot.slane %v2738, 6
        %v2761 = vrot.slane %v2739, 2
        %v2762 = vrot.slane %v2739, 4
        %v2763 = vrot.slane %v2739, 6
        %v2764 = vrot.slane %v2740, 4
        %v2765 = vrot.slane %v2740, 6
        %v2766 = vrot.slane %v2741, 2
        %v2767 = vrot.slane %v2741, 6
        %v2768 = vrot.slane %v2742, 2
        %v2769 = vrot.slane %v2742, 4
        %v2770 = vrot.slane %v2743, 2
        %v2771 = vrot.slane %v2743, 4
        %v2772 = vrot.slane %v2743, 6
        %v2773 = vrot.slane %v2744, 2
        %v2774 = vrot.slane %v2744, 4
        %v2775 = vrot.slane %v2744, 6
        %v2776 = vrot.slane %v2745, 4
        %v2777 = vrot.slane %v2745, 6
        %v2778 = vrot.slane %v2746, 2
        %v2779 = vrot.slane %v2746, 6
        %v2780 = vrot.slane %v2747, 2
        %v2781 = vrot.slane %v2747, 4
        %v2806 = vld [vmem:[%s4] sm:$0x1]
        %v2808 = vperm.slane %v2806, 0
        %v2810 = vrot.slane %v2808, 2
        %v2811 = vrot.slane %v2808, 4
        %v2812 = vrot.slane %v2808, 6
        %v2816 = vadd.f32 %v2738, %v2808
        %v2817 = vadd.f32 %v2758, %v2810
        %v2818 = vadd.f32 %v2759, %v2811
        %v2819 = vadd.f32 %v2760, %v2812
        %v2820 = vadd.f32 %v2761, %v2808
        %v2821 = vadd.f32 %v2762, %v2810
        %v2822 = vadd.f32 %v2763, %v2811
        %v2823 = vadd.f32 %v2740, %v2812
        %v2824 = vadd.f32 %v2764, %v2808
        %v2825 = vadd.f32 %v2765, %v2810
        %v2826 = vadd.f32 %v2741, %v2811
        %v2827 = vadd.f32 %v2766, %v2812
        %v2828 = vadd.f32 %v2767, %v2808
        %v2829 = vadd.f32 %v2742, %v2810
        %v2830 = vadd.f32 %v2768, %v2811
        %v2831 = vadd.f32 %v2769, %v2812
        %v2832 = vadd.f32 %v2743, %v2808
        %v2833 = vadd.f32 %v2770, %v2810
        %v2834 = vadd.f32 %v2771, %v2811
        %v2835 = vadd.f32 %v2772, %v2812
        %v2836 = vadd.f32 %v2773, %v2808
        %v2837 = vadd.f32 %v2774, %v2810
        %v2838 = vadd.f32 %v2775, %v2811
        %v2839 = vadd.f32 %v2745, %v2812
        %v2840 = vadd.f32 %v2776, %v2808
        %v2841 = vadd.f32 %v2777, %v2810
        %v2842 = vadd.f32 %v2746, %v2811
        %v2843 = vadd.f32 %v2778, %v2812
        %v2844 = vadd.f32 %v2779, %v2808
        %v2845 = vadd.f32 %v2747, %v2810
        %v2846 = vadd.f32 %v2780, %v2811
        %v2847 = vadd.f32 %v2781, %v2812
        %2880 = vst [vmem:[#allocation1] ss:$4 sm:$0xff] %v2816
        %s2881 = scalar_lea.vmem [#allocation1], 1
        %2882 = vst [vmem:[%s2881] ss:$4 sm:$0xff] %v2817
        %s2883 = scalar_lea.vmem [#allocation1], 2
        %2884 = vst [vmem:[%s2883] ss:$4 sm:$0xff] %v2818
        %s2885 = scalar_lea.vmem [#allocation1], 3
        %2886 = vst [vmem:[%s2885] ss:$4 sm:$0xff] %v2819
        %v2887 = vld.sshfl [vmem:[#allocation1] sm:$0xff pattern:$0x73625140]
        %s2888 = scalar_lea.vmem [#allocation1], 32
        %2889 = vst [vmem:[%s2888] ss:$4 sm:$0xff] %v2820
        %s2890 = scalar_lea.vmem [#allocation1], 33
        %2891 = vst [vmem:[%s2890] ss:$4 sm:$0xff] %v2821
        %s2892 = scalar_lea.vmem [#allocation1], 34
        %2893 = vst [vmem:[%s2892] ss:$4 sm:$0xff] %v2822
        %s2894 = scalar_lea.vmem [#allocation1], 35
        %2895 = vst [vmem:[%s2894] ss:$4 sm:$0xff] %v2823
        %v2896 = vld.sshfl [vmem:[#allocation1 + $0x20] sm:$0xff pattern:$0x73625140]
        %2897 = vst [vmem:[#allocation1] ss:$4 sm:$0xff] %v2824
        %2898 = vst [vmem:[%s2881] ss:$4 sm:$0xff] %v2825
        %2899 = vst [vmem:[%s2883] ss:$4 sm:$0xff] %v2826
        %2900 = vst [vmem:[%s2885] ss:$4 sm:$0xff] %v2827
        %v2901 = vld.sshfl [vmem:[#allocation1] sm:$0xff pattern:$0x73625140]
        %2902 = vst [vmem:[%s2888] ss:$4 sm:$0xff] %v2828
        %2903 = vst [vmem:[%s2890] ss:$4 sm:$0xff] %v2829
        %2904 = vst [vmem:[%s2892] ss:$4 sm:$0xff] %v2830
        %2905 = vst [vmem:[%s2894] ss:$4 sm:$0xff] %v2831
        %v2906 = vld.sshfl [vmem:[#allocation1 + $0x20] sm:$0xff pattern:$0x73625140]
        %2907 = vst [vmem:[#allocation1] ss:$4 sm:$0xff] %v2832
        %2908 = vst [vmem:[%s2881] ss:$4 sm:$0xff] %v2833
        %2909 = vst [vmem:[%s2883] ss:$4 sm:$0xff] %v2834
        %2910 = vst [vmem:[%s2885] ss:$4 sm:$0xff] %v2835
        %v2911 = vld.sshfl [vmem:[#allocation1] sm:$0xff pattern:$0x73625140]
        %2912 = vst [vmem:[%s2888] ss:$4 sm:$0xff] %v2836
        %2913 = vst [vmem:[%s2890] ss:$4 sm:$0xff] %v2837
        %2914 = vst [vmem:[%s2892] ss:$4 sm:$0xff] %v2838
        %2915 = vst [vmem:[%s2894] ss:$4 sm:$0xff] %v2839
        %v2916 = vld.sshfl [vmem:[#allocation1 + $0x20] sm:$0xff pattern:$0x73625140]
        %2917 = vst [vmem:[#allocation1] ss:$4 sm:$0xff] %v2840
        %2918 = vst [vmem:[%s2881] ss:$4 sm:$0xff] %v2841
        %2919 = vst [vmem:[%s2883] ss:$4 sm:$0xff] %v2842
        %2920 = vst [vmem:[%s2885] ss:$4 sm:$0xff] %v2843
        %v2921 = vld.sshfl [vmem:[#allocation1] sm:$0xff pattern:$0x73625140]
        %2922 = vst [vmem:[%s2888] ss:$4 sm:$0xff] %v2844
        %2923 = vst [vmem:[%s2890] ss:$4 sm:$0xff] %v2845
        %2924 = vst [vmem:[%s2892] ss:$4 sm:$0xff] %v2846
        %2925 = vst [vmem:[%s2894] ss:$4 sm:$0xff] %v2847
        %v2926 = vld.sshfl [vmem:[#allocation1 + $0x20] sm:$0xff pattern:$0x73625140]
        %v2935 = vpack.c.bf16 %v2887, %v2887
        %v2936 = vpack.c.bf16 %v2896, %v2896
        %v2937 = vpack.c.bf16 %v2901, %v2901
        %v2938 = vpack.c.bf16 %v2906, %v2906
        %v2939 = vpack.c.bf16 %v2911, %v2911
        %v2940 = vpack.c.bf16 %v2916, %v2916
        %v2941 = vpack.c.bf16 %v2921, %v2921
        %v2942 = vpack.c.bf16 %v2926, %v2926
        %vm2943 = vcmask 519168
        %2944 = vst.msk [vmem:[%s301] sm:$0xf] %vm2943, %v2935
        %2945 = vst.msk [vmem:[%s301 + $0x4] sm:$0xf] %vm2943, %v2936
        %2946 = vst.msk [vmem:[%s301 + $0x8] sm:$0xf] %vm2943, %v2937
        %2947 = vst.msk [vmem:[%s301 + $0xc] sm:$0xf] %vm2943, %v2938
        %2948 = vst.msk [vmem:[%s301 + $0x10] sm:$0xf] %vm2943, %v2939
        %2949 = vst.msk [vmem:[%s301 + $0x14] sm:$0xf] %vm2943, %v2940
        %2950 = vst.msk [vmem:[%s301 + $0x18] sm:$0xf] %vm2943, %v2941
        %2951 = vst.msk [vmem:[%s301 + $0x1c] sm:$0xf] %vm2943, %v2942
        %s2952 = sand.u32 %s171, 1
        %s2953 = scalar_lea.sflag [#allocation3], %s2952
        %s2954 = sand.u32 %s171, 1
        %s2955 = smul.addr %s2954, 32
        %s2956 = scalar_lea.vmem [#allocation2], %s2955
        // Predicated region
        $region41: #{tpu_custom_call.1} parent=39 // pred_check
          %p2957 = pneg %p181
        $region42: #{tpu_custom_call.1} parent=39 // pred_check_branch
          %2959 = sbr.rel (%p2957) target = $region44
        $region43: #{tpu_custom_call.1} parent=39 // pred_region
          %2961 = vsyncadd %s2953, 0
          %s2962 = smul.addr %s24, 8
          %s2963 = smul.addr %s23, 16
          %s2964 = sadd.s32 %s2962, %s2963
          %s2965 = smul.addr %s2964, 4
          %s2966 = scalar_lea.hbm %s5, %s2965
          %s2967 = sshll.u32 %s2956, 4
          %s2968 = int_to_ptr.vmem [resolvable:$true] %s2967
          %s2969 = sshll.u32 %s2966, 4
          %s2970 = int_to_ptr.hbm [resolvable:$true] %s2969
          %2975 = dma.vmem_to_hbm [thread:$0]  %s2968, 512, %s2970, %s2953, 64, 64, 4
        $region44: #{tpu_custom_call.1} parent=39 // pred_fallthru
          _
      $region40: #{tpu_custom_call.1} parent=5 // pred_fallthru
        _
      %p2976 = scmp.le.s32.totalorder 2, %s14
      // Predicated region
      $region45: #{tpu_custom_call.1} parent=5 // pred_check
        %p2977 = pneg %p2976
      $region46: #{tpu_custom_call.1} parent=5 // pred_check_branch
        %2979 = sbr.rel (%p2977) target = $region48
      $region47: #{tpu_custom_call.1} parent=5 // pred_region
        %s2980 = ssub.s32 %s14, 2
        // Predicated region
        $region49: #{tpu_custom_call.1} parent=47 // pred_check
          %p2981 = pneg %p187
        $region50: #{tpu_custom_call.1} parent=47 // pred_check_branch
          %2983 = sbr.rel (%p2981) target = $region52
        $region51: #{tpu_custom_call.1} parent=47 // pred_region
          %s2984 = sand.u32 %s172, 1
          %s2985 = scalar_lea.sflag [#allocation3], %s2984
          %s2986 = sand.u32 %s172, 1
          %s2987 = smul.addr %s2986, 32
          %s2988 = scalar_lea.vmem [#allocation2], %s2987
          %2990 = dma.done %s2985, 512
        $region52: #{tpu_custom_call.1} parent=47 // pred_fallthru
          _
      $region48: #{tpu_custom_call.1} parent=5 // pred_fallthru
        _
    $region6: #{tpu_custom_call.1} parent=1 // loop_footer
      %s18 = sadd.s32 1, %s14
    $region7: #{tpu_custom_call.1} parent=1 // loop_footer_branch
      %13 = sbr.rel target = $region3
    $region8: #{tpu_custom_call.1} parent=1 // loop_exit
      _
    %2991 = vsyncpa [#allocation3], 1
    %s2992 = scalar_lea.sflag [#allocation3], 1
    %2993 = vsyncpa %s2992, 1

</llo_original>
